<compile_context>
chip_gen: v7x
topology: tpu7x:2x2x1
jax: 0.10.0
libtpu: 0.0.40
codegen_flags: <defaults>
</compile_context>

<pallas_src>
import numpy as np
import jax
import jax.numpy as jnp
from jax.experimental import pallas as pl
from jax.experimental.pallas import tpu as pltpu


# ---------------------------------------------------------------------------
# Fused kernel: wavefront 3-layer LSTM + final Linear, bf16 MXU / f32 state
# ---------------------------------------------------------------------------
def make_wavefront_lstm_kernel(num_layers, T, B, H):
    """Kernel args (in order):
       x      (T*B, E)  bf16   time-major flattened embeddings
       wih0   (E, 4H)   bf16   layer-0 W_ih^T
       whh0   (H, 4H)   bf16   layer-0 W_hh^T
       b0     (1, 4H)   f32    layer-0 b_ih + b_hh
       [wcat_l (2H, 4H) bf16, b_l (1, 4H) f32]  for layers 1..L-1
           wcat_l = concat([W_hh_l^T, W_ih_l^T], axis=0)
       fcw    (H, V)    bf16
       fcb    (1, V)    f32
       out    (B, V)    f32
    """

    def kernel(*refs):
        x_ref = refs[0]
        wih0_ref, whh0_ref, b0_ref = refs[1], refs[2], refs[3]
        wcat_refs = [refs[4 + 2 * i] for i in range(num_layers - 1)]
        bl_refs = [refs[5 + 2 * i] for i in range(num_layers - 1)]
        base = 4 + 2 * (num_layers - 1)
        fcw_ref, fcb_ref, out_ref = refs[base], refs[base + 1], refs[base + 2]

        bf16 = jnp.bfloat16

        def cell_update(pre, c):
            i = jax.nn.sigmoid(pre[:, 0:H])
            f = jax.nn.sigmoid(pre[:, H:2 * H])
            g = jnp.tanh(pre[:, 2 * H:3 * H])
            o = jax.nn.sigmoid(pre[:, 3 * H:4 * H])
            c_new = f * c + i * g
            h_new = o * jnp.tanh(c_new)
            return h_new, c_new

        # Hoisted layer-0 input projection: one (T*B, E) @ (E, 4H) bf16 matmul
        # with f32 accumulation; kept as a value (no VMEM scratch round trip).
        gx0 = (jnp.dot(x_ref[...], wih0_ref[...],
                       preferred_element_type=jnp.float32)
               + b0_ref[...])                                      # (T*B, 4H) f32

        zeros = jnp.zeros((B, H), jnp.float32)
        h = [zeros for _ in range(num_layers)]                     # f32 state
        c = [zeros for _ in range(num_layers)]                     # f32 state
        y_prev = [None] * num_layers   # bf16 layer outputs from previous diagonal

        # Wavefront over diagonals: layer l handles timestep t = d - l.
        # Layer l at time t needs layer l-1's output at the same t, which was
        # produced one diagonal earlier -> all per-layer updates inside one
        # diagonal are independent and overlap on the MXU/VPU/EUP.
        for d in range(T + num_layers - 1):
            y_new = list(y_prev)

            # Layer 0 (hoisted input projection already in gx0).
            if d < T:
                pre = (gx0[d * B:(d + 1) * B, :]
                       + jnp.dot(h[0].astype(bf16), whh0_ref[...],
                                 preferred_element_type=jnp.float32))
                h[0], c[0] = cell_update(pre, c[0])
                y_new[0] = h[0].astype(bf16)

            # Layers 1..L-1: fold input projection into the recurrent matmul
            # via a concatenated [h ; y_{l-1}] bf16 LHS.
            for l in range(1, num_layers):
                t = d - l
                if 0 <= t < T:
                    lhs = jnp.concatenate(
                        [h[l].astype(bf16), y_prev[l - 1]], axis=1)   # (B, 2H)
                    pre = (jnp.dot(lhs, wcat_refs[l - 1][...],
                                   preferred_element_type=jnp.float32)
                           + bl_refs[l - 1][...])
                    h[l], c[l] = cell_update(pre, c[l])
                    y_new[l] = h[l].astype(bf16)

            y_prev = y_new

        # Final Linear on the last layer's final hidden state.
        out_ref[...] = (jnp.dot(h[num_layers - 1].astype(bf16), fcw_ref[...],
                                preferred_element_type=jnp.float32)
                        + fcb_ref[...])

    return kernel


# ---------------------------------------------------------------------------
# Wrapper: one grid-less pallas_call for the whole LSTM stack + fc
# ---------------------------------------------------------------------------
def lstm_model_forward(params, ids):
    """Equivalent of LSTM.forward: embedding -> num_layers LSTM -> fc(last step)."""
    num_layers = len(params["lstm"])
    B, T = ids.shape
    H = params["lstm"][0]["w_hh"].shape[1]
    V = params["fc_w"].shape[0]
    E = params["embedding"].shape[1]

    # Embedding gather (plain-JAX glue). Indexing with ids.T directly yields a
    # time-major (T, B, E) activation; flatten to (T*B, E) and cast to bf16 so
    # the kernel's hoisted projection feeds the MXU in its native input dtype.
    x_flat = (jnp.take(params["embedding"], ids.T, axis=0)
              .reshape(T * B, E).astype(jnp.bfloat16))

    l0 = params["lstm"][0]
    flat_w = [
        jnp.asarray(l0["w_ih"].T, jnp.bfloat16),                     # (E, 4H)
        jnp.asarray(l0["w_hh"].T, jnp.bfloat16),                     # (H, 4H)
        (l0["b_ih"] + l0["b_hh"]).reshape(1, 4 * H).astype(jnp.float32),
    ]
    for layer in params["lstm"][1:]:
        wcat = jnp.concatenate([layer["w_hh"].T, layer["w_ih"].T], axis=0)
        flat_w.append(jnp.asarray(wcat, jnp.bfloat16))               # (2H, 4H)
        flat_w.append((layer["b_ih"] + layer["b_hh"])
                      .reshape(1, 4 * H).astype(jnp.float32))
    fcw_t = jnp.asarray(params["fc_w"].T, jnp.bfloat16)              # (H, V)
    fcb = params["fc_b"].reshape(1, V).astype(jnp.float32)           # (1, V)

    kernel = make_wavefront_lstm_kernel(num_layers, T, B, H)
    return pl.pallas_call(
        kernel,
        out_shape=jax.ShapeDtypeStruct((B, V), jnp.float32),
        compiler_params=pltpu.CompilerParams(vmem_limit_bytes=32 * 1024 * 1024),
    )(x_flat, *flat_w, fcw_t, fcb)


# ---------------------------------------------------------------------------
# Pure-JAX f32 reference (for correctness check)
# ---------------------------------------------------------------------------
def reference_forward(params, ids):
    emb = jnp.take(params["embedding"], ids, axis=0)
    x = jnp.transpose(emb, (1, 0, 2)).astype(jnp.float32)   # (T, B, E)
    for layer in params["lstm"]:
        T, B, _ = x.shape
        H = layer["w_hh"].shape[1]
        h = jnp.zeros((B, H), jnp.float32)
        c = jnp.zeros((B, H), jnp.float32)
        ys = []
        for t in range(T):
            gates = (x[t] @ layer["w_ih"].T + layer["b_ih"]
                     + h @ layer["w_hh"].T + layer["b_hh"])
            i = jax.nn.sigmoid(gates[:, 0:H])
            f = jax.nn.sigmoid(gates[:, H:2 * H])
            g = jnp.tanh(gates[:, 2 * H:3 * H])
            o = jax.nn.sigmoid(gates[:, 3 * H:4 * H])
            c = f * c + i * g
            h = o * jnp.tanh(c)
            ys.append(h)
        x = jnp.stack(ys, axis=0)
    return x[-1] @ params["fc_w"].T + params["fc_b"]


# ---------------------------------------------------------------------------
# Deterministic parameter init (shapes follow nn.Embedding / nn.LSTM / nn.Linear)
# ---------------------------------------------------------------------------
def init_params(key, vocab_size, embedding_dim, hidden_dim, num_layers):
    keys = jax.random.split(key, 2 + 4 * num_layers + 2)
    ki = iter(keys)
    params = {}
    params["embedding"] = jax.random.normal(
        next(ki), (vocab_size, embedding_dim), jnp.float32)
    bound = 1.0 / np.sqrt(hidden_dim)
    layers = []
    for l in range(num_layers):
        in_dim = embedding_dim if l == 0 else hidden_dim
        layers.append({
            "w_ih": jax.random.uniform(next(ki), (4 * hidden_dim, in_dim),
                                       jnp.float32, -bound, bound),
            "w_hh": jax.random.uniform(next(ki), (4 * hidden_dim, hidden_dim),
                                       jnp.float32, -bound, bound),
            "b_ih": jax.random.uniform(next(ki), (4 * hidden_dim,),
                                       jnp.float32, -bound, bound),
            "b_hh": jax.random.uniform(next(ki), (4 * hidden_dim,),
                                       jnp.float32, -bound, bound),
        })
    params["lstm"] = layers
    fc_bound = 1.0 / np.sqrt(hidden_dim)
    params["fc_w"] = jax.random.uniform(next(ki), (vocab_size, hidden_dim),
                                        jnp.float32, -fc_bound, fc_bound)
    params["fc_b"] = jax.random.uniform(next(ki), (vocab_size,),
                                        jnp.float32, -fc_bound, fc_bound)
    return params


if __name__ == "__main__":
    # Small, TPU-friendly shapes consistent with the module (lanes = 128).
    VOCAB, EMB, HID, LAYERS = 256, 128, 128, 3
    B, T = 8, 8

    key = jax.random.PRNGKey(0)
    k_param, k_ids = jax.random.split(key)
    params = init_params(k_param, VOCAB, EMB, HID, LAYERS)
    ids = jax.random.randint(k_ids, (B, T), 0, VOCAB, dtype=jnp.int32)

    out = jax.block_until_ready(lstm_model_forward(params, ids))

    with jax.default_matmul_precision("float32"):
        ref = jax.block_until_ready(reference_forward(params, ids))

    assert out.shape == (B, VOCAB) and out.dtype == jnp.float32
    # Tolerance accommodates bf16 matmul inputs (f32 accumulation, f32 state).
    if not np.allclose(np.asarray(out), np.asarray(ref), atol=4e-2, rtol=4e-2):
        raise AssertionError(
            "mismatch vs reference, max abs diff = "
            f"{np.abs(np.asarray(out) - np.asarray(ref)).max()}")
    print("KERNEL_OK")
</pallas_src>

<mosaic_0001>
module attributes {stable_mosaic.version = 11 : i64} {
  func.func @kernel(%arg0: memref<64x128xbf16, #tpu.memory_space<vmem>>, %arg1: memref<128x512xbf16, #tpu.memory_space<vmem>>, %arg2: memref<128x512xbf16, #tpu.memory_space<vmem>>, %arg3: memref<1x512xf32, #tpu.memory_space<vmem>>, %arg4: memref<256x512xbf16, #tpu.memory_space<vmem>>, %arg5: memref<1x512xf32, #tpu.memory_space<vmem>>, %arg6: memref<256x512xbf16, #tpu.memory_space<vmem>>, %arg7: memref<1x512xf32, #tpu.memory_space<vmem>>, %arg8: memref<128x256xbf16, #tpu.memory_space<vmem>>, %arg9: memref<1x256xf32, #tpu.memory_space<vmem>>, %arg10: memref<8x256xf32, #tpu.memory_space<vmem>>) attributes {dimension_semantics = [], scalar_prefetch = 0 : i64, scratch_operands = 0 : i64, tpu.core_type = #tpu.core_type<tc>} {
    %c0 = arith.constant 0 : index
    %c0_0 = arith.constant 0 : index
    %0 = vector.load %arg0[%c0, %c0_0] : memref<64x128xbf16, #tpu.memory_space<vmem>>, vector<64x128xbf16>
    %c0_1 = arith.constant 0 : index
    %c0_2 = arith.constant 0 : index
    %1 = vector.load %arg1[%c0_1, %c0_2] : memref<128x512xbf16, #tpu.memory_space<vmem>>, vector<128x512xbf16>
    %cst = arith.constant dense<0.000000e+00> : vector<64x512xf32>
    %2 = tpu.matmul %0, %1, %cst {dimension_numbers = #tpu.dot_dimension_numbers<[1], [0], [0], [1], [0, 0, 1, 1], [], []>} : vector<64x128xbf16>, vector<128x512xbf16>, vector<64x512xf32> -> vector<64x512xf32>
    %c0_3 = arith.constant 0 : index
    %c0_4 = arith.constant 0 : index
    %3 = vector.load %arg3[%c0_3, %c0_4] : memref<1x512xf32, #tpu.memory_space<vmem>>, vector<1x512xf32>
    %4 = vector.broadcast %3 : vector<1x512xf32> to vector<64x512xf32>
    %5 = arith.addf %2, %4 : vector<64x512xf32>
    %cst_5 = arith.constant 0.000000e+00 : f32
    %6 = vector.broadcast %cst_5 : f32 to vector<8x128xf32>
    %7 = vector.extract_strided_slice %5 {offsets = [0, 0], sizes = [8, 512], strides = [1, 1]} : vector<64x512xf32> to vector<8x512xf32>
    %8 = arith.truncf %6 : vector<8x128xf32> to vector<8x128xbf16>
    %c0_6 = arith.constant 0 : index
    %c0_7 = arith.constant 0 : index
    %9 = vector.load %arg2[%c0_6, %c0_7] : memref<128x512xbf16, #tpu.memory_space<vmem>>, vector<128x512xbf16>
    %cst_8 = arith.constant dense<0.000000e+00> : vector<8x512xf32>
    %10 = tpu.matmul %8, %9, %cst_8 {dimension_numbers = #tpu.dot_dimension_numbers<[1], [0], [0], [1], [0, 0, 1, 1], [], []>} : vector<8x128xbf16>, vector<128x512xbf16>, vector<8x512xf32> -> vector<8x512xf32>
    %11 = arith.addf %7, %10 : vector<8x512xf32>
    %12 = vector.extract_strided_slice %11 {offsets = [0, 0], sizes = [8, 128], strides = [1, 1]} : vector<8x512xf32> to vector<8x128xf32>
    %13 = arith.negf %12 : vector<8x128xf32>
    %14 = math.exp %13 : vector<8x128xf32>
    %cst_9 = arith.constant 1.000000e+00 : f32
    %15 = vector.broadcast %cst_9 : f32 to vector<8x128xf32>
    %16 = arith.addf %15, %14 : vector<8x128xf32>
    %17 = arith.divf %15, %16 : vector<8x128xf32>
    %18 = vector.extract_strided_slice %11 {offsets = [0, 128], sizes = [8, 128], strides = [1, 1]} : vector<8x512xf32> to vector<8x128xf32>
    %19 = arith.negf %18 : vector<8x128xf32>
    %20 = math.exp %19 : vector<8x128xf32>
    %cst_10 = arith.constant 1.000000e+00 : f32
    %21 = vector.broadcast %cst_10 : f32 to vector<8x128xf32>
    %22 = arith.addf %21, %20 : vector<8x128xf32>
    %23 = arith.divf %21, %22 : vector<8x128xf32>
    %24 = vector.extract_strided_slice %11 {offsets = [0, 256], sizes = [8, 128], strides = [1, 1]} : vector<8x512xf32> to vector<8x128xf32>
    %25 = math.tanh %24 : vector<8x128xf32>
    %26 = vector.extract_strided_slice %11 {offsets = [0, 384], sizes = [8, 128], strides = [1, 1]} : vector<8x512xf32> to vector<8x128xf32>
    %27 = arith.negf %26 : vector<8x128xf32>
    %28 = math.exp %27 : vector<8x128xf32>
    %cst_11 = arith.constant 1.000000e+00 : f32
    %29 = vector.broadcast %cst_11 : f32 to vector<8x128xf32>
    %30 = arith.addf %29, %28 : vector<8x128xf32>
    %31 = arith.divf %29, %30 : vector<8x128xf32>
    %32 = arith.mulf %23, %6 : vector<8x128xf32>
    %33 = arith.mulf %17, %25 : vector<8x128xf32>
    %34 = arith.addf %32, %33 : vector<8x128xf32>
    %35 = math.tanh %34 : vector<8x128xf32>
    %36 = arith.mulf %31, %35 : vector<8x128xf32>
    %37 = arith.truncf %36 : vector<8x128xf32> to vector<8x128xbf16>
    %38 = vector.extract_strided_slice %5 {offsets = [8, 0], sizes = [8, 512], strides = [1, 1]} : vector<64x512xf32> to vector<8x512xf32>
    %39 = arith.truncf %36 : vector<8x128xf32> to vector<8x128xbf16>
    %c0_12 = arith.constant 0 : index
    %c0_13 = arith.constant 0 : index
    %40 = vector.load %arg2[%c0_12, %c0_13] : memref<128x512xbf16, #tpu.memory_space<vmem>>, vector<128x512xbf16>
    %cst_14 = arith.constant dense<0.000000e+00> : vector<8x512xf32>
    %41 = tpu.matmul %39, %40, %cst_14 {dimension_numbers = #tpu.dot_dimension_numbers<[1], [0], [0], [1], [0, 0, 1, 1], [], []>} : vector<8x128xbf16>, vector<128x512xbf16>, vector<8x512xf32> -> vector<8x512xf32>
    %42 = arith.addf %38, %41 : vector<8x512xf32>
    %43 = vector.extract_strided_slice %42 {offsets = [0, 0], sizes = [8, 128], strides = [1, 1]} : vector<8x512xf32> to vector<8x128xf32>
    %44 = arith.negf %43 : vector<8x128xf32>
    %45 = math.exp %44 : vector<8x128xf32>
    %cst_15 = arith.constant 1.000000e+00 : f32
    %46 = vector.broadcast %cst_15 : f32 to vector<8x128xf32>
    %47 = arith.addf %46, %45 : vector<8x128xf32>
    %48 = arith.divf %46, %47 : vector<8x128xf32>
    %49 = vector.extract_strided_slice %42 {offsets = [0, 128], sizes = [8, 128], strides = [1, 1]} : vector<8x512xf32> to vector<8x128xf32>
    %50 = arith.negf %49 : vector<8x128xf32>
    %51 = math.exp %50 : vector<8x128xf32>
    %cst_16 = arith.constant 1.000000e+00 : f32
    %52 = vector.broadcast %cst_16 : f32 to vector<8x128xf32>
    %53 = arith.addf %52, %51 : vector<8x128xf32>
    %54 = arith.divf %52, %53 : vector<8x128xf32>
    %55 = vector.extract_strided_slice %42 {offsets = [0, 256], sizes = [8, 128], strides = [1, 1]} : vector<8x512xf32> to vector<8x128xf32>
    %56 = math.tanh %55 : vector<8x128xf32>
    %57 = vector.extract_strided_slice %42 {offsets = [0, 384], sizes = [8, 128], strides = [1, 1]} : vector<8x512xf32> to vector<8x128xf32>
    %58 = arith.negf %57 : vector<8x128xf32>
    %59 = math.exp %58 : vector<8x128xf32>
    %cst_17 = arith.constant 1.000000e+00 : f32
    %60 = vector.broadcast %cst_17 : f32 to vector<8x128xf32>
    %61 = arith.addf %60, %59 : vector<8x128xf32>
    %62 = arith.divf %60, %61 : vector<8x128xf32>
    %63 = arith.mulf %54, %34 : vector<8x128xf32>
    %64 = arith.mulf %48, %56 : vector<8x128xf32>
    %65 = arith.addf %63, %64 : vector<8x128xf32>
    %66 = math.tanh %65 : vector<8x128xf32>
    %67 = arith.mulf %62, %66 : vector<8x128xf32>
    %68 = arith.truncf %67 : vector<8x128xf32> to vector<8x128xbf16>
    %69 = arith.truncf %6 : vector<8x128xf32> to vector<8x128xbf16>
    %70 = tpu.concatenate %69, %37 in 1 : vector<8x128xbf16>, vector<8x128xbf16> -> vector<8x256xbf16>
    %c0_18 = arith.constant 0 : index
    %c0_19 = arith.constant 0 : index
    %71 = vector.load %arg4[%c0_18, %c0_19] : memref<256x512xbf16, #tpu.memory_space<vmem>>, vector<256x512xbf16>
    %cst_20 = arith.constant dense<0.000000e+00> : vector<8x512xf32>
    %72 = tpu.matmul %70, %71, %cst_20 {dimension_numbers = #tpu.dot_dimension_numbers<[1], [0], [0], [1], [0, 0, 1, 1], [], []>} : vector<8x256xbf16>, vector<256x512xbf16>, vector<8x512xf32> -> vector<8x512xf32>
    %c0_21 = arith.constant 0 : index
    %c0_22 = arith.constant 0 : index
    %73 = vector.load %arg5[%c0_21, %c0_22] : memref<1x512xf32, #tpu.memory_space<vmem>>, vector<1x512xf32>
    %74 = vector.broadcast %73 : vector<1x512xf32> to vector<8x512xf32>
    %75 = arith.addf %72, %74 : vector<8x512xf32>
    %76 = vector.extract_strided_slice %75 {offsets = [0, 0], sizes = [8, 128], strides = [1, 1]} : vector<8x512xf32> to vector<8x128xf32>
    %77 = arith.negf %76 : vector<8x128xf32>
    %78 = math.exp %77 : vector<8x128xf32>
    %cst_23 = arith.constant 1.000000e+00 : f32
    %79 = vector.broadcast %cst_23 : f32 to vector<8x128xf32>
    %80 = arith.addf %79, %78 : vector<8x128xf32>
    %81 = arith.divf %79, %80 : vector<8x128xf32>
    %82 = vector.extract_strided_slice %75 {offsets = [0, 128], sizes = [8, 128], strides = [1, 1]} : vector<8x512xf32> to vector<8x128xf32>
    %83 = arith.negf %82 : vector<8x128xf32>
    %84 = math.exp %83 : vector<8x128xf32>
    %cst_24 = arith.constant 1.000000e+00 : f32
    %85 = vector.broadcast %cst_24 : f32 to vector<8x128xf32>
    %86 = arith.addf %85, %84 : vector<8x128xf32>
    %87 = arith.divf %85, %86 : vector<8x128xf32>
    %88 = vector.extract_strided_slice %75 {offsets = [0, 256], sizes = [8, 128], strides = [1, 1]} : vector<8x512xf32> to vector<8x128xf32>
    %89 = math.tanh %88 : vector<8x128xf32>
    %90 = vector.extract_strided_slice %75 {offsets = [0, 384], sizes = [8, 128], strides = [1, 1]} : vector<8x512xf32> to vector<8x128xf32>
    %91 = arith.negf %90 : vector<8x128xf32>
    %92 = math.exp %91 : vector<8x128xf32>
    %cst_25 = arith.constant 1.000000e+00 : f32
    %93 = vector.broadcast %cst_25 : f32 to vector<8x128xf32>
    %94 = arith.addf %93, %92 : vector<8x128xf32>
    %95 = arith.divf %93, %94 : vector<8x128xf32>
    %96 = arith.mulf %87, %6 : vector<8x128xf32>
    %97 = arith.mulf %81, %89 : vector<8x128xf32>
    %98 = arith.addf %96, %97 : vector<8x128xf32>
    %99 = math.tanh %98 : vector<8x128xf32>
    %100 = arith.mulf %95, %99 : vector<8x128xf32>
    %101 = arith.truncf %100 : vector<8x128xf32> to vector<8x128xbf16>
    %102 = vector.extract_strided_slice %5 {offsets = [16, 0], sizes = [8, 512], strides = [1, 1]} : vector<64x512xf32> to vector<8x512xf32>
    %103 = arith.truncf %67 : vector<8x128xf32> to vector<8x128xbf16>
    %c0_26 = arith.constant 0 : index
    %c0_27 = arith.constant 0 : index
    %104 = vector.load %arg2[%c0_26, %c0_27] : memref<128x512xbf16, #tpu.memory_space<vmem>>, vector<128x512xbf16>
    %cst_28 = arith.constant dense<0.000000e+00> : vector<8x512xf32>
    %105 = tpu.matmul %103, %104, %cst_28 {dimension_numbers = #tpu.dot_dimension_numbers<[1], [0], [0], [1], [0, 0, 1, 1], [], []>} : vector<8x128xbf16>, vector<128x512xbf16>, vector<8x512xf32> -> vector<8x512xf32>
    %106 = arith.addf %102, %105 : vector<8x512xf32>
    %107 = vector.extract_strided_slice %106 {offsets = [0, 0], sizes = [8, 128], strides = [1, 1]} : vector<8x512xf32> to vector<8x128xf32>
    %108 = arith.negf %107 : vector<8x128xf32>
    %109 = math.exp %108 : vector<8x128xf32>
    %cst_29 = arith.constant 1.000000e+00 : f32
    %110 = vector.broadcast %cst_29 : f32 to vector<8x128xf32>
    %111 = arith.addf %110, %109 : vector<8x128xf32>
    %112 = arith.divf %110, %111 : vector<8x128xf32>
    %113 = vector.extract_strided_slice %106 {offsets = [0, 128], sizes = [8, 128], strides = [1, 1]} : vector<8x512xf32> to vector<8x128xf32>
    %114 = arith.negf %113 : vector<8x128xf32>
    %115 = math.exp %114 : vector<8x128xf32>
    %cst_30 = arith.constant 1.000000e+00 : f32
    %116 = vector.broadcast %cst_30 : f32 to vector<8x128xf32>
    %117 = arith.addf %116, %115 : vector<8x128xf32>
    %118 = arith.divf %116, %117 : vector<8x128xf32>
    %119 = vector.extract_strided_slice %106 {offsets = [0, 256], sizes = [8, 128], strides = [1, 1]} : vector<8x512xf32> to vector<8x128xf32>
    %120 = math.tanh %119 : vector<8x128xf32>
    %121 = vector.extract_strided_slice %106 {offsets = [0, 384], sizes = [8, 128], strides = [1, 1]} : vector<8x512xf32> to vector<8x128xf32>
    %122 = arith.negf %121 : vector<8x128xf32>
    %123 = math.exp %122 : vector<8x128xf32>
    %cst_31 = arith.constant 1.000000e+00 : f32
    %124 = vector.broadcast %cst_31 : f32 to vector<8x128xf32>
    %125 = arith.addf %124, %123 : vector<8x128xf32>
    %126 = arith.divf %124, %125 : vector<8x128xf32>
    %127 = arith.mulf %118, %65 : vector<8x128xf32>
    %128 = arith.mulf %112, %120 : vector<8x128xf32>
    %129 = arith.addf %127, %128 : vector<8x128xf32>
    %130 = math.tanh %129 : vector<8x128xf32>
    %131 = arith.mulf %126, %130 : vector<8x128xf32>
    %132 = arith.truncf %131 : vector<8x128xf32> to vector<8x128xbf16>
    %133 = arith.truncf %100 : vector<8x128xf32> to vector<8x128xbf16>
    %134 = tpu.concatenate %133, %68 in 1 : vector<8x128xbf16>, vector<8x128xbf16> -> vector<8x256xbf16>
    %c0_32 = arith.constant 0 : index
    %c0_33 = arith.constant 0 : index
    %135 = vector.load %arg4[%c0_32, %c0_33] : memref<256x512xbf16, #tpu.memory_space<vmem>>, vector<256x512xbf16>
    %cst_34 = arith.constant dense<0.000000e+00> : vector<8x512xf32>
    %136 = tpu.matmul %134, %135, %cst_34 {dimension_numbers = #tpu.dot_dimension_numbers<[1], [0], [0], [1], [0, 0, 1, 1], [], []>} : vector<8x256xbf16>, vector<256x512xbf16>, vector<8x512xf32> -> vector<8x512xf32>
    %c0_35 = arith.constant 0 : index
    %c0_36 = arith.constant 0 : index
    %137 = vector.load %arg5[%c0_35, %c0_36] : memref<1x512xf32, #tpu.memory_space<vmem>>, vector<1x512xf32>
    %138 = vector.broadcast %137 : vector<1x512xf32> to vector<8x512xf32>
    %139 = arith.addf %136, %138 : vector<8x512xf32>
    %140 = vector.extract_strided_slice %139 {offsets = [0, 0], sizes = [8, 128], strides = [1, 1]} : vector<8x512xf32> to vector<8x128xf32>
    %141 = arith.negf %140 : vector<8x128xf32>
    %142 = math.exp %141 : vector<8x128xf32>
    %cst_37 = arith.constant 1.000000e+00 : f32
    %143 = vector.broadcast %cst_37 : f32 to vector<8x128xf32>
    %144 = arith.addf %143, %142 : vector<8x128xf32>
    %145 = arith.divf %143, %144 : vector<8x128xf32>
    %146 = vector.extract_strided_slice %139 {offsets = [0, 128], sizes = [8, 128], strides = [1, 1]} : vector<8x512xf32> to vector<8x128xf32>
    %147 = arith.negf %146 : vector<8x128xf32>
    %148 = math.exp %147 : vector<8x128xf32>
    %cst_38 = arith.constant 1.000000e+00 : f32
    %149 = vector.broadcast %cst_38 : f32 to vector<8x128xf32>
    %150 = arith.addf %149, %148 : vector<8x128xf32>
    %151 = arith.divf %149, %150 : vector<8x128xf32>
    %152 = vector.extract_strided_slice %139 {offsets = [0, 256], sizes = [8, 128], strides = [1, 1]} : vector<8x512xf32> to vector<8x128xf32>
    %153 = math.tanh %152 : vector<8x128xf32>
    %154 = vector.extract_strided_slice %139 {offsets = [0, 384], sizes = [8, 128], strides = [1, 1]} : vector<8x512xf32> to vector<8x128xf32>
    %155 = arith.negf %154 : vector<8x128xf32>
    %156 = math.exp %155 : vector<8x128xf32>
    %cst_39 = arith.constant 1.000000e+00 : f32
    %157 = vector.broadcast %cst_39 : f32 to vector<8x128xf32>
    %158 = arith.addf %157, %156 : vector<8x128xf32>
    %159 = arith.divf %157, %158 : vector<8x128xf32>
    %160 = arith.mulf %151, %98 : vector<8x128xf32>
    %161 = arith.mulf %145, %153 : vector<8x128xf32>
    %162 = arith.addf %160, %161 : vector<8x128xf32>
    %163 = math.tanh %162 : vector<8x128xf32>
    %164 = arith.mulf %159, %163 : vector<8x128xf32>
    %165 = arith.truncf %164 : vector<8x128xf32> to vector<8x128xbf16>
    %166 = arith.truncf %6 : vector<8x128xf32> to vector<8x128xbf16>
    %167 = tpu.concatenate %166, %101 in 1 : vector<8x128xbf16>, vector<8x128xbf16> -> vector<8x256xbf16>
    %c0_40 = arith.constant 0 : index
    %c0_41 = arith.constant 0 : index
    %168 = vector.load %arg6[%c0_40, %c0_41] : memref<256x512xbf16, #tpu.memory_space<vmem>>, vector<256x512xbf16>
    %cst_42 = arith.constant dense<0.000000e+00> : vector<8x512xf32>
    %169 = tpu.matmul %167, %168, %cst_42 {dimension_numbers = #tpu.dot_dimension_numbers<[1], [0], [0], [1], [0, 0, 1, 1], [], []>} : vector<8x256xbf16>, vector<256x512xbf16>, vector<8x512xf32> -> vector<8x512xf32>
    %c0_43 = arith.constant 0 : index
    %c0_44 = arith.constant 0 : index
    %170 = vector.load %arg7[%c0_43, %c0_44] : memref<1x512xf32, #tpu.memory_space<vmem>>, vector<1x512xf32>
    %171 = vector.broadcast %170 : vector<1x512xf32> to vector<8x512xf32>
    %172 = arith.addf %169, %171 : vector<8x512xf32>
    %173 = vector.extract_strided_slice %172 {offsets = [0, 0], sizes = [8, 128], strides = [1, 1]} : vector<8x512xf32> to vector<8x128xf32>
    %174 = arith.negf %173 : vector<8x128xf32>
    %175 = math.exp %174 : vector<8x128xf32>
    %cst_45 = arith.constant 1.000000e+00 : f32
    %176 = vector.broadcast %cst_45 : f32 to vector<8x128xf32>
    %177 = arith.addf %176, %175 : vector<8x128xf32>
    %178 = arith.divf %176, %177 : vector<8x128xf32>
    %179 = vector.extract_strided_slice %172 {offsets = [0, 128], sizes = [8, 128], strides = [1, 1]} : vector<8x512xf32> to vector<8x128xf32>
    %180 = arith.negf %179 : vector<8x128xf32>
    %181 = math.exp %180 : vector<8x128xf32>
    %cst_46 = arith.constant 1.000000e+00 : f32
    %182 = vector.broadcast %cst_46 : f32 to vector<8x128xf32>
    %183 = arith.addf %182, %181 : vector<8x128xf32>
    %184 = arith.divf %182, %183 : vector<8x128xf32>
    %185 = vector.extract_strided_slice %172 {offsets = [0, 256], sizes = [8, 128], strides = [1, 1]} : vector<8x512xf32> to vector<8x128xf32>
    %186 = math.tanh %185 : vector<8x128xf32>
    %187 = vector.extract_strided_slice %172 {offsets = [0, 384], sizes = [8, 128], strides = [1, 1]} : vector<8x512xf32> to vector<8x128xf32>
    %188 = arith.negf %187 : vector<8x128xf32>
    %189 = math.exp %188 : vector<8x128xf32>
    %cst_47 = arith.constant 1.000000e+00 : f32
    %190 = vector.broadcast %cst_47 : f32 to vector<8x128xf32>
    %191 = arith.addf %190, %189 : vector<8x128xf32>
    %192 = arith.divf %190, %191 : vector<8x128xf32>
    %193 = arith.mulf %184, %6 : vector<8x128xf32>
    %194 = arith.mulf %178, %186 : vector<8x128xf32>
    %195 = arith.addf %193, %194 : vector<8x128xf32>
    %196 = math.tanh %195 : vector<8x128xf32>
    %197 = arith.mulf %192, %196 : vector<8x128xf32>
    %198 = vector.extract_strided_slice %5 {offsets = [24, 0], sizes = [8, 512], strides = [1, 1]} : vector<64x512xf32> to vector<8x512xf32>
    %199 = arith.truncf %131 : vector<8x128xf32> to vector<8x128xbf16>
    %c0_48 = arith.constant 0 : index
    %c0_49 = arith.constant 0 : index
    %200 = vector.load %arg2[%c0_48, %c0_49] : memref<128x512xbf16, #tpu.memory_space<vmem>>, vector<128x512xbf16>
    %cst_50 = arith.constant dense<0.000000e+00> : vector<8x512xf32>
    %201 = tpu.matmul %199, %200, %cst_50 {dimension_numbers = #tpu.dot_dimension_numbers<[1], [0], [0], [1], [0, 0, 1, 1], [], []>} : vector<8x128xbf16>, vector<128x512xbf16>, vector<8x512xf32> -> vector<8x512xf32>
    %202 = arith.addf %198, %201 : vector<8x512xf32>
    %203 = vector.extract_strided_slice %202 {offsets = [0, 0], sizes = [8, 128], strides = [1, 1]} : vector<8x512xf32> to vector<8x128xf32>
    %204 = arith.negf %203 : vector<8x128xf32>
    %205 = math.exp %204 : vector<8x128xf32>
    %cst_51 = arith.constant 1.000000e+00 : f32
    %206 = vector.broadcast %cst_51 : f32 to vector<8x128xf32>
    %207 = arith.addf %206, %205 : vector<8x128xf32>
    %208 = arith.divf %206, %207 : vector<8x128xf32>
    %209 = vector.extract_strided_slice %202 {offsets = [0, 128], sizes = [8, 128], strides = [1, 1]} : vector<8x512xf32> to vector<8x128xf32>
    %210 = arith.negf %209 : vector<8x128xf32>
    %211 = math.exp %210 : vector<8x128xf32>
    %cst_52 = arith.constant 1.000000e+00 : f32
    %212 = vector.broadcast %cst_52 : f32 to vector<8x128xf32>
    %213 = arith.addf %212, %211 : vector<8x128xf32>
    %214 = arith.divf %212, %213 : vector<8x128xf32>
    %215 = vector.extract_strided_slice %202 {offsets = [0, 256], sizes = [8, 128], strides = [1, 1]} : vector<8x512xf32> to vector<8x128xf32>
    %216 = math.tanh %215 : vector<8x128xf32>
    %217 = vector.extract_strided_slice %202 {offsets = [0, 384], sizes = [8, 128], strides = [1, 1]} : vector<8x512xf32> to vector<8x128xf32>
    %218 = arith.negf %217 : vector<8x128xf32>
    %219 = math.exp %218 : vector<8x128xf32>
    %cst_53 = arith.constant 1.000000e+00 : f32
    %220 = vector.broadcast %cst_53 : f32 to vector<8x128xf32>
    %221 = arith.addf %220, %219 : vector<8x128xf32>
    %222 = arith.divf %220, %221 : vector<8x128xf32>
    %223 = arith.mulf %214, %129 : vector<8x128xf32>
    %224 = arith.mulf %208, %216 : vector<8x128xf32>
    %225 = arith.addf %223, %224 : vector<8x128xf32>
    %226 = math.tanh %225 : vector<8x128xf32>
    %227 = arith.mulf %222, %226 : vector<8x128xf32>
    %228 = arith.truncf %227 : vector<8x128xf32> to vector<8x128xbf16>
    %229 = arith.truncf %164 : vector<8x128xf32> to vector<8x128xbf16>
    %230 = tpu.concatenate %229, %132 in 1 : vector<8x128xbf16>, vector<8x128xbf16> -> vector<8x256xbf16>
    %c0_54 = arith.constant 0 : index
    %c0_55 = arith.constant 0 : index
    %231 = vector.load %arg4[%c0_54, %c0_55] : memref<256x512xbf16, #tpu.memory_space<vmem>>, vector<256x512xbf16>
    %cst_56 = arith.constant dense<0.000000e+00> : vector<8x512xf32>
    %232 = tpu.matmul %230, %231, %cst_56 {dimension_numbers = #tpu.dot_dimension_numbers<[1], [0], [0], [1], [0, 0, 1, 1], [], []>} : vector<8x256xbf16>, vector<256x512xbf16>, vector<8x512xf32> -> vector<8x512xf32>
    %c0_57 = arith.constant 0 : index
    %c0_58 = arith.constant 0 : index
    %233 = vector.load %arg5[%c0_57, %c0_58] : memref<1x512xf32, #tpu.memory_space<vmem>>, vector<1x512xf32>
    %234 = vector.broadcast %233 : vector<1x512xf32> to vector<8x512xf32>
    %235 = arith.addf %232, %234 : vector<8x512xf32>
    %236 = vector.extract_strided_slice %235 {offsets = [0, 0], sizes = [8, 128], strides = [1, 1]} : vector<8x512xf32> to vector<8x128xf32>
    %237 = arith.negf %236 : vector<8x128xf32>
    %238 = math.exp %237 : vector<8x128xf32>
    %cst_59 = arith.constant 1.000000e+00 : f32
    %239 = vector.broadcast %cst_59 : f32 to vector<8x128xf32>
    %240 = arith.addf %239, %238 : vector<8x128xf32>
    %241 = arith.divf %239, %240 : vector<8x128xf32>
    %242 = vector.extract_strided_slice %235 {offsets = [0, 128], sizes = [8, 128], strides = [1, 1]} : vector<8x512xf32> to vector<8x128xf32>
    %243 = arith.negf %242 : vector<8x128xf32>
    %244 = math.exp %243 : vector<8x128xf32>
    %cst_60 = arith.constant 1.000000e+00 : f32
    %245 = vector.broadcast %cst_60 : f32 to vector<8x128xf32>
    %246 = arith.addf %245, %244 : vector<8x128xf32>
    %247 = arith.divf %245, %246 : vector<8x128xf32>
    %248 = vector.extract_strided_slice %235 {offsets = [0, 256], sizes = [8, 128], strides = [1, 1]} : vector<8x512xf32> to vector<8x128xf32>
    %249 = math.tanh %248 : vector<8x128xf32>
    %250 = vector.extract_strided_slice %235 {offsets = [0, 384], sizes = [8, 128], strides = [1, 1]} : vector<8x512xf32> to vector<8x128xf32>
    %251 = arith.negf %250 : vector<8x128xf32>
    %252 = math.exp %251 : vector<8x128xf32>
    %cst_61 = arith.constant 1.000000e+00 : f32
    %253 = vector.broadcast %cst_61 : f32 to vector<8x128xf32>
    %254 = arith.addf %253, %252 : vector<8x128xf32>
    %255 = arith.divf %253, %254 : vector<8x128xf32>
    %256 = arith.mulf %247, %162 : vector<8x128xf32>
    %257 = arith.mulf %241, %249 : vector<8x128xf32>
    %258 = arith.addf %256, %257 : vector<8x128xf32>
    %259 = math.tanh %258 : vector<8x128xf32>
    %260 = arith.mulf %255, %259 : vector<8x128xf32>
    %261 = arith.truncf %260 : vector<8x128xf32> to vector<8x128xbf16>
    %262 = arith.truncf %197 : vector<8x128xf32> to vector<8x128xbf16>
    %263 = tpu.concatenate %262, %165 in 1 : vector<8x128xbf16>, vector<8x128xbf16> -> vector<8x256xbf16>
    %c0_62 = arith.constant 0 : index
    %c0_63 = arith.constant 0 : index
    %264 = vector.load %arg6[%c0_62, %c0_63] : memref<256x512xbf16, #tpu.memory_space<vmem>>, vector<256x512xbf16>
    %cst_64 = arith.constant dense<0.000000e+00> : vector<8x512xf32>
    %265 = tpu.matmul %263, %264, %cst_64 {dimension_numbers = #tpu.dot_dimension_numbers<[1], [0], [0], [1], [0, 0, 1, 1], [], []>} : vector<8x256xbf16>, vector<256x512xbf16>, vector<8x512xf32> -> vector<8x512xf32>
    %c0_65 = arith.constant 0 : index
    %c0_66 = arith.constant 0 : index
    %266 = vector.load %arg7[%c0_65, %c0_66] : memref<1x512xf32, #tpu.memory_space<vmem>>, vector<1x512xf32>
    %267 = vector.broadcast %266 : vector<1x512xf32> to vector<8x512xf32>
    %268 = arith.addf %265, %267 : vector<8x512xf32>
    %269 = vector.extract_strided_slice %268 {offsets = [0, 0], sizes = [8, 128], strides = [1, 1]} : vector<8x512xf32> to vector<8x128xf32>
    %270 = arith.negf %269 : vector<8x128xf32>
    %271 = math.exp %270 : vector<8x128xf32>
    %cst_67 = arith.constant 1.000000e+00 : f32
    %272 = vector.broadcast %cst_67 : f32 to vector<8x128xf32>
    %273 = arith.addf %272, %271 : vector<8x128xf32>
    %274 = arith.divf %272, %273 : vector<8x128xf32>
    %275 = vector.extract_strided_slice %268 {offsets = [0, 128], sizes = [8, 128], strides = [1, 1]} : vector<8x512xf32> to vector<8x128xf32>
    %276 = arith.negf %275 : vector<8x128xf32>
    %277 = math.exp %276 : vector<8x128xf32>
    %cst_68 = arith.constant 1.000000e+00 : f32
    %278 = vector.broadcast %cst_68 : f32 to vector<8x128xf32>
    %279 = arith.addf %278, %277 : vector<8x128xf32>
    %280 = arith.divf %278, %279 : vector<8x128xf32>
    %281 = vector.extract_strided_slice %268 {offsets = [0, 256], sizes = [8, 128], strides = [1, 1]} : vector<8x512xf32> to vector<8x128xf32>
    %282 = math.tanh %281 : vector<8x128xf32>
    %283 = vector.extract_strided_slice %268 {offsets = [0, 384], sizes = [8, 128], strides = [1, 1]} : vector<8x512xf32> to vector<8x128xf32>
    %284 = arith.negf %283 : vector<8x128xf32>
    %285 = math.exp %284 : vector<8x128xf32>
    %cst_69 = arith.constant 1.000000e+00 : f32
    %286 = vector.broadcast %cst_69 : f32 to vector<8x128xf32>
    %287 = arith.addf %286, %285 : vector<8x128xf32>
    %288 = arith.divf %286, %287 : vector<8x128xf32>
    %289 = arith.mulf %280, %195 : vector<8x128xf32>
    %290 = arith.mulf %274, %282 : vector<8x128xf32>
    %291 = arith.addf %289, %290 : vector<8x128xf32>
    %292 = math.tanh %291 : vector<8x128xf32>
    %293 = arith.mulf %288, %292 : vector<8x128xf32>
    %294 = vector.extract_strided_slice %5 {offsets = [32, 0], sizes = [8, 512], strides = [1, 1]} : vector<64x512xf32> to vector<8x512xf32>
    %295 = arith.truncf %227 : vector<8x128xf32> to vector<8x128xbf16>
    %c0_70 = arith.constant 0 : index
    %c0_71 = arith.constant 0 : index
    %296 = vector.load %arg2[%c0_70, %c0_71] : memref<128x512xbf16, #tpu.memory_space<vmem>>, vector<128x512xbf16>
    %cst_72 = arith.constant dense<0.000000e+00> : vector<8x512xf32>
    %297 = tpu.matmul %295, %296, %cst_72 {dimension_numbers = #tpu.dot_dimension_numbers<[1], [0], [0], [1], [0, 0, 1, 1], [], []>} : vector<8x128xbf16>, vector<128x512xbf16>, vector<8x512xf32> -> vector<8x512xf32>
    %298 = arith.addf %294, %297 : vector<8x512xf32>
    %299 = vector.extract_strided_slice %298 {offsets = [0, 0], sizes = [8, 128], strides = [1, 1]} : vector<8x512xf32> to vector<8x128xf32>
    %300 = arith.negf %299 : vector<8x128xf32>
    %301 = math.exp %300 : vector<8x128xf32>
    %cst_73 = arith.constant 1.000000e+00 : f32
    %302 = vector.broadcast %cst_73 : f32 to vector<8x128xf32>
    %303 = arith.addf %302, %301 : vector<8x128xf32>
    %304 = arith.divf %302, %303 : vector<8x128xf32>
    %305 = vector.extract_strided_slice %298 {offsets = [0, 128], sizes = [8, 128], strides = [1, 1]} : vector<8x512xf32> to vector<8x128xf32>
    %306 = arith.negf %305 : vector<8x128xf32>
    %307 = math.exp %306 : vector<8x128xf32>
    %cst_74 = arith.constant 1.000000e+00 : f32
    %308 = vector.broadcast %cst_74 : f32 to vector<8x128xf32>
    %309 = arith.addf %308, %307 : vector<8x128xf32>
    %310 = arith.divf %308, %309 : vector<8x128xf32>
    %311 = vector.extract_strided_slice %298 {offsets = [0, 256], sizes = [8, 128], strides = [1, 1]} : vector<8x512xf32> to vector<8x128xf32>
    %312 = math.tanh %311 : vector<8x128xf32>
    %313 = vector.extract_strided_slice %298 {offsets = [0, 384], sizes = [8, 128], strides = [1, 1]} : vector<8x512xf32> to vector<8x128xf32>
    %314 = arith.negf %313 : vector<8x128xf32>
    %315 = math.exp %314 : vector<8x128xf32>
    %cst_75 = arith.constant 1.000000e+00 : f32
    %316 = vector.broadcast %cst_75 : f32 to vector<8x128xf32>
    %317 = arith.addf %316, %315 : vector<8x128xf32>
    %318 = arith.divf %316, %317 : vector<8x128xf32>
    %319 = arith.mulf %310, %225 : vector<8x128xf32>
    %320 = arith.mulf %304, %312 : vector<8x128xf32>
    %321 = arith.addf %319, %320 : vector<8x128xf32>
    %322 = math.tanh %321 : vector<8x128xf32>
    %323 = arith.mulf %318, %322 : vector<8x128xf32>
    %324 = arith.truncf %323 : vector<8x128xf32> to vector<8x128xbf16>
    %325 = arith.truncf %260 : vector<8x128xf32> to vector<8x128xbf16>
    %326 = tpu.concatenate %325, %228 in 1 : vector<8x128xbf16>, vector<8x128xbf16> -> vector<8x256xbf16>
    %c0_76 = arith.constant 0 : index
    %c0_77 = arith.constant 0 : index
    %327 = vector.load %arg4[%c0_76, %c0_77] : memref<256x512xbf16, #tpu.memory_space<vmem>>, vector<256x512xbf16>
    %cst_78 = arith.constant dense<0.000000e+00> : vector<8x512xf32>
    %328 = tpu.matmul %326, %327, %cst_78 {dimension_numbers = #tpu.dot_dimension_numbers<[1], [0], [0], [1], [0, 0, 1, 1], [], []>} : vector<8x256xbf16>, vector<256x512xbf16>, vector<8x512xf32> -> vector<8x512xf32>
    %c0_79 = arith.constant 0 : index
    %c0_80 = arith.constant 0 : index
    %329 = vector.load %arg5[%c0_79, %c0_80] : memref<1x512xf32, #tpu.memory_space<vmem>>, vector<1x512xf32>
    %330 = vector.broadcast %329 : vector<1x512xf32> to vector<8x512xf32>
    %331 = arith.addf %328, %330 : vector<8x512xf32>
    %332 = vector.extract_strided_slice %331 {offsets = [0, 0], sizes = [8, 128], strides = [1, 1]} : vector<8x512xf32> to vector<8x128xf32>
    %333 = arith.negf %332 : vector<8x128xf32>
    %334 = math.exp %333 : vector<8x128xf32>
    %cst_81 = arith.constant 1.000000e+00 : f32
    %335 = vector.broadcast %cst_81 : f32 to vector<8x128xf32>
    %336 = arith.addf %335, %334 : vector<8x128xf32>
    %337 = arith.divf %335, %336 : vector<8x128xf32>
    %338 = vector.extract_strided_slice %331 {offsets = [0, 128], sizes = [8, 128], strides = [1, 1]} : vector<8x512xf32> to vector<8x128xf32>
    %339 = arith.negf %338 : vector<8x128xf32>
    %340 = math.exp %339 : vector<8x128xf32>
    %cst_82 = arith.constant 1.000000e+00 : f32
    %341 = vector.broadcast %cst_82 : f32 to vector<8x128xf32>
    %342 = arith.addf %341, %340 : vector<8x128xf32>
    %343 = arith.divf %341, %342 : vector<8x128xf32>
    %344 = vector.extract_strided_slice %331 {offsets = [0, 256], sizes = [8, 128], strides = [1, 1]} : vector<8x512xf32> to vector<8x128xf32>
    %345 = math.tanh %344 : vector<8x128xf32>
    %346 = vector.extract_strided_slice %331 {offsets = [0, 384], sizes = [8, 128], strides = [1, 1]} : vector<8x512xf32> to vector<8x128xf32>
    %347 = arith.negf %346 : vector<8x128xf32>
    %348 = math.exp %347 : vector<8x128xf32>
    %cst_83 = arith.constant 1.000000e+00 : f32
    %349 = vector.broadcast %cst_83 : f32 to vector<8x128xf32>
    %350 = arith.addf %349, %348 : vector<8x128xf32>
    %351 = arith.divf %349, %350 : vector<8x128xf32>
    %352 = arith.mulf %343, %258 : vector<8x128xf32>
    %353 = arith.mulf %337, %345 : vector<8x128xf32>
    %354 = arith.addf %352, %353 : vector<8x128xf32>
    %355 = math.tanh %354 : vector<8x128xf32>
    %356 = arith.mulf %351, %355 : vector<8x128xf32>
    %357 = arith.truncf %356 : vector<8x128xf32> to vector<8x128xbf16>
    %358 = arith.truncf %293 : vector<8x128xf32> to vector<8x128xbf16>
    %359 = tpu.concatenate %358, %261 in 1 : vector<8x128xbf16>, vector<8x128xbf16> -> vector<8x256xbf16>
    %c0_84 = arith.constant 0 : index
    %c0_85 = arith.constant 0 : index
    %360 = vector.load %arg6[%c0_84, %c0_85] : memref<256x512xbf16, #tpu.memory_space<vmem>>, vector<256x512xbf16>
    %cst_86 = arith.constant dense<0.000000e+00> : vector<8x512xf32>
    %361 = tpu.matmul %359, %360, %cst_86 {dimension_numbers = #tpu.dot_dimension_numbers<[1], [0], [0], [1], [0, 0, 1, 1], [], []>} : vector<8x256xbf16>, vector<256x512xbf16>, vector<8x512xf32> -> vector<8x512xf32>
    %c0_87 = arith.constant 0 : index
    %c0_88 = arith.constant 0 : index
    %362 = vector.load %arg7[%c0_87, %c0_88] : memref<1x512xf32, #tpu.memory_space<vmem>>, vector<1x512xf32>
    %363 = vector.broadcast %362 : vector<1x512xf32> to vector<8x512xf32>
    %364 = arith.addf %361, %363 : vector<8x512xf32>
    %365 = vector.extract_strided_slice %364 {offsets = [0, 0], sizes = [8, 128], strides = [1, 1]} : vector<8x512xf32> to vector<8x128xf32>
    %366 = arith.negf %365 : vector<8x128xf32>
    %367 = math.exp %366 : vector<8x128xf32>
    %cst_89 = arith.constant 1.000000e+00 : f32
    %368 = vector.broadcast %cst_89 : f32 to vector<8x128xf32>
    %369 = arith.addf %368, %367 : vector<8x128xf32>
    %370 = arith.divf %368, %369 : vector<8x128xf32>
    %371 = vector.extract_strided_slice %364 {offsets = [0, 128], sizes = [8, 128], strides = [1, 1]} : vector<8x512xf32> to vector<8x128xf32>
    %372 = arith.negf %371 : vector<8x128xf32>
    %373 = math.exp %372 : vector<8x128xf32>
    %cst_90 = arith.constant 1.000000e+00 : f32
    %374 = vector.broadcast %cst_90 : f32 to vector<8x128xf32>
    %375 = arith.addf %374, %373 : vector<8x128xf32>
    %376 = arith.divf %374, %375 : vector<8x128xf32>
    %377 = vector.extract_strided_slice %364 {offsets = [0, 256], sizes = [8, 128], strides = [1, 1]} : vector<8x512xf32> to vector<8x128xf32>
    %378 = math.tanh %377 : vector<8x128xf32>
    %379 = vector.extract_strided_slice %364 {offsets = [0, 384], sizes = [8, 128], strides = [1, 1]} : vector<8x512xf32> to vector<8x128xf32>
    %380 = arith.negf %379 : vector<8x128xf32>
    %381 = math.exp %380 : vector<8x128xf32>
    %cst_91 = arith.constant 1.000000e+00 : f32
    %382 = vector.broadcast %cst_91 : f32 to vector<8x128xf32>
    %383 = arith.addf %382, %381 : vector<8x128xf32>
    %384 = arith.divf %382, %383 : vector<8x128xf32>
    %385 = arith.mulf %376, %291 : vector<8x128xf32>
    %386 = arith.mulf %370, %378 : vector<8x128xf32>
    %387 = arith.addf %385, %386 : vector<8x128xf32>
    %388 = math.tanh %387 : vector<8x128xf32>
    %389 = arith.mulf %384, %388 : vector<8x128xf32>
    %390 = vector.extract_strided_slice %5 {offsets = [40, 0], sizes = [8, 512], strides = [1, 1]} : vector<64x512xf32> to vector<8x512xf32>
    %391 = arith.truncf %323 : vector<8x128xf32> to vector<8x128xbf16>
    %c0_92 = arith.constant 0 : index
    %c0_93 = arith.constant 0 : index
    %392 = vector.load %arg2[%c0_92, %c0_93] : memref<128x512xbf16, #tpu.memory_space<vmem>>, vector<128x512xbf16>
    %cst_94 = arith.constant dense<0.000000e+00> : vector<8x512xf32>
    %393 = tpu.matmul %391, %392, %cst_94 {dimension_numbers = #tpu.dot_dimension_numbers<[1], [0], [0], [1], [0, 0, 1, 1], [], []>} : vector<8x128xbf16>, vector<128x512xbf16>, vector<8x512xf32> -> vector<8x512xf32>
    %394 = arith.addf %390, %393 : vector<8x512xf32>
    %395 = vector.extract_strided_slice %394 {offsets = [0, 0], sizes = [8, 128], strides = [1, 1]} : vector<8x512xf32> to vector<8x128xf32>
    %396 = arith.negf %395 : vector<8x128xf32>
    %397 = math.exp %396 : vector<8x128xf32>
    %cst_95 = arith.constant 1.000000e+00 : f32
    %398 = vector.broadcast %cst_95 : f32 to vector<8x128xf32>
    %399 = arith.addf %398, %397 : vector<8x128xf32>
    %400 = arith.divf %398, %399 : vector<8x128xf32>
    %401 = vector.extract_strided_slice %394 {offsets = [0, 128], sizes = [8, 128], strides = [1, 1]} : vector<8x512xf32> to vector<8x128xf32>
    %402 = arith.negf %401 : vector<8x128xf32>
    %403 = math.exp %402 : vector<8x128xf32>
    %cst_96 = arith.constant 1.000000e+00 : f32
    %404 = vector.broadcast %cst_96 : f32 to vector<8x128xf32>
    %405 = arith.addf %404, %403 : vector<8x128xf32>
    %406 = arith.divf %404, %405 : vector<8x128xf32>
    %407 = vector.extract_strided_slice %394 {offsets = [0, 256], sizes = [8, 128], strides = [1, 1]} : vector<8x512xf32> to vector<8x128xf32>
    %408 = math.tanh %407 : vector<8x128xf32>
    %409 = vector.extract_strided_slice %394 {offsets = [0, 384], sizes = [8, 128], strides = [1, 1]} : vector<8x512xf32> to vector<8x128xf32>
    %410 = arith.negf %409 : vector<8x128xf32>
    %411 = math.exp %410 : vector<8x128xf32>
    %cst_97 = arith.constant 1.000000e+00 : f32
    %412 = vector.broadcast %cst_97 : f32 to vector<8x128xf32>
    %413 = arith.addf %412, %411 : vector<8x128xf32>
    %414 = arith.divf %412, %413 : vector<8x128xf32>
    %415 = arith.mulf %406, %321 : vector<8x128xf32>
    %416 = arith.mulf %400, %408 : vector<8x128xf32>
    %417 = arith.addf %415, %416 : vector<8x128xf32>
    %418 = math.tanh %417 : vector<8x128xf32>
    %419 = arith.mulf %414, %418 : vector<8x128xf32>
    %420 = arith.truncf %419 : vector<8x128xf32> to vector<8x128xbf16>
    %421 = arith.truncf %356 : vector<8x128xf32> to vector<8x128xbf16>
    %422 = tpu.concatenate %421, %324 in 1 : vector<8x128xbf16>, vector<8x128xbf16> -> vector<8x256xbf16>
    %c0_98 = arith.constant 0 : index
    %c0_99 = arith.constant 0 : index
    %423 = vector.load %arg4[%c0_98, %c0_99] : memref<256x512xbf16, #tpu.memory_space<vmem>>, vector<256x512xbf16>
    %cst_100 = arith.constant dense<0.000000e+00> : vector<8x512xf32>
    %424 = tpu.matmul %422, %423, %cst_100 {dimension_numbers = #tpu.dot_dimension_numbers<[1], [0], [0], [1], [0, 0, 1, 1], [], []>} : vector<8x256xbf16>, vector<256x512xbf16>, vector<8x512xf32> -> vector<8x512xf32>
    %c0_101 = arith.constant 0 : index
    %c0_102 = arith.constant 0 : index
    %425 = vector.load %arg5[%c0_101, %c0_102] : memref<1x512xf32, #tpu.memory_space<vmem>>, vector<1x512xf32>
    %426 = vector.broadcast %425 : vector<1x512xf32> to vector<8x512xf32>
    %427 = arith.addf %424, %426 : vector<8x512xf32>
    %428 = vector.extract_strided_slice %427 {offsets = [0, 0], sizes = [8, 128], strides = [1, 1]} : vector<8x512xf32> to vector<8x128xf32>
    %429 = arith.negf %428 : vector<8x128xf32>
    %430 = math.exp %429 : vector<8x128xf32>
    %cst_103 = arith.constant 1.000000e+00 : f32
    %431 = vector.broadcast %cst_103 : f32 to vector<8x128xf32>
    %432 = arith.addf %431, %430 : vector<8x128xf32>
    %433 = arith.divf %431, %432 : vector<8x128xf32>
    %434 = vector.extract_strided_slice %427 {offsets = [0, 128], sizes = [8, 128], strides = [1, 1]} : vector<8x512xf32> to vector<8x128xf32>
    %435 = arith.negf %434 : vector<8x128xf32>
    %436 = math.exp %435 : vector<8x128xf32>
    %cst_104 = arith.constant 1.000000e+00 : f32
    %437 = vector.broadcast %cst_104 : f32 to vector<8x128xf32>
    %438 = arith.addf %437, %436 : vector<8x128xf32>
    %439 = arith.divf %437, %438 : vector<8x128xf32>
    %440 = vector.extract_strided_slice %427 {offsets = [0, 256], sizes = [8, 128], strides = [1, 1]} : vector<8x512xf32> to vector<8x128xf32>
    %441 = math.tanh %440 : vector<8x128xf32>
    %442 = vector.extract_strided_slice %427 {offsets = [0, 384], sizes = [8, 128], strides = [1, 1]} : vector<8x512xf32> to vector<8x128xf32>
    %443 = arith.negf %442 : vector<8x128xf32>
    %444 = math.exp %443 : vector<8x128xf32>
    %cst_105 = arith.constant 1.000000e+00 : f32
    %445 = vector.broadcast %cst_105 : f32 to vector<8x128xf32>
    %446 = arith.addf %445, %444 : vector<8x128xf32>
    %447 = arith.divf %445, %446 : vector<8x128xf32>
    %448 = arith.mulf %439, %354 : vector<8x128xf32>
    %449 = arith.mulf %433, %441 : vector<8x128xf32>
    %450 = arith.addf %448, %449 : vector<8x128xf32>
    %451 = math.tanh %450 : vector<8x128xf32>
    %452 = arith.mulf %447, %451 : vector<8x128xf32>
    %453 = arith.truncf %452 : vector<8x128xf32> to vector<8x128xbf16>
    %454 = arith.truncf %389 : vector<8x128xf32> to vector<8x128xbf16>
    %455 = tpu.concatenate %454, %357 in 1 : vector<8x128xbf16>, vector<8x128xbf16> -> vector<8x256xbf16>
    %c0_106 = arith.constant 0 : index
    %c0_107 = arith.constant 0 : index
    %456 = vector.load %arg6[%c0_106, %c0_107] : memref<256x512xbf16, #tpu.memory_space<vmem>>, vector<256x512xbf16>
    %cst_108 = arith.constant dense<0.000000e+00> : vector<8x512xf32>
    %457 = tpu.matmul %455, %456, %cst_108 {dimension_numbers = #tpu.dot_dimension_numbers<[1], [0], [0], [1], [0, 0, 1, 1], [], []>} : vector<8x256xbf16>, vector<256x512xbf16>, vector<8x512xf32> -> vector<8x512xf32>
    %c0_109 = arith.constant 0 : index
    %c0_110 = arith.constant 0 : index
    %458 = vector.load %arg7[%c0_109, %c0_110] : memref<1x512xf32, #tpu.memory_space<vmem>>, vector<1x512xf32>
    %459 = vector.broadcast %458 : vector<1x512xf32> to vector<8x512xf32>
    %460 = arith.addf %457, %459 : vector<8x512xf32>
    %461 = vector.extract_strided_slice %460 {offsets = [0, 0], sizes = [8, 128], strides = [1, 1]} : vector<8x512xf32> to vector<8x128xf32>
    %462 = arith.negf %461 : vector<8x128xf32>
    %463 = math.exp %462 : vector<8x128xf32>
    %cst_111 = arith.constant 1.000000e+00 : f32
    %464 = vector.broadcast %cst_111 : f32 to vector<8x128xf32>
    %465 = arith.addf %464, %463 : vector<8x128xf32>
    %466 = arith.divf %464, %465 : vector<8x128xf32>
    %467 = vector.extract_strided_slice %460 {offsets = [0, 128], sizes = [8, 128], strides = [1, 1]} : vector<8x512xf32> to vector<8x128xf32>
    %468 = arith.negf %467 : vector<8x128xf32>
    %469 = math.exp %468 : vector<8x128xf32>
    %cst_112 = arith.constant 1.000000e+00 : f32
    %470 = vector.broadcast %cst_112 : f32 to vector<8x128xf32>
    %471 = arith.addf %470, %469 : vector<8x128xf32>
    %472 = arith.divf %470, %471 : vector<8x128xf32>
    %473 = vector.extract_strided_slice %460 {offsets = [0, 256], sizes = [8, 128], strides = [1, 1]} : vector<8x512xf32> to vector<8x128xf32>
    %474 = math.tanh %473 : vector<8x128xf32>
    %475 = vector.extract_strided_slice %460 {offsets = [0, 384], sizes = [8, 128], strides = [1, 1]} : vector<8x512xf32> to vector<8x128xf32>
    %476 = arith.negf %475 : vector<8x128xf32>
    %477 = math.exp %476 : vector<8x128xf32>
    %cst_113 = arith.constant 1.000000e+00 : f32
    %478 = vector.broadcast %cst_113 : f32 to vector<8x128xf32>
    %479 = arith.addf %478, %477 : vector<8x128xf32>
    %480 = arith.divf %478, %479 : vector<8x128xf32>
    %481 = arith.mulf %472, %387 : vector<8x128xf32>
    %482 = arith.mulf %466, %474 : vector<8x128xf32>
    %483 = arith.addf %481, %482 : vector<8x128xf32>
    %484 = math.tanh %483 : vector<8x128xf32>
    %485 = arith.mulf %480, %484 : vector<8x128xf32>
    %486 = vector.extract_strided_slice %5 {offsets = [48, 0], sizes = [8, 512], strides = [1, 1]} : vector<64x512xf32> to vector<8x512xf32>
    %487 = arith.truncf %419 : vector<8x128xf32> to vector<8x128xbf16>
    %c0_114 = arith.constant 0 : index
    %c0_115 = arith.constant 0 : index
    %488 = vector.load %arg2[%c0_114, %c0_115] : memref<128x512xbf16, #tpu.memory_space<vmem>>, vector<128x512xbf16>
    %cst_116 = arith.constant dense<0.000000e+00> : vector<8x512xf32>
    %489 = tpu.matmul %487, %488, %cst_116 {dimension_numbers = #tpu.dot_dimension_numbers<[1], [0], [0], [1], [0, 0, 1, 1], [], []>} : vector<8x128xbf16>, vector<128x512xbf16>, vector<8x512xf32> -> vector<8x512xf32>
    %490 = arith.addf %486, %489 : vector<8x512xf32>
    %491 = vector.extract_strided_slice %490 {offsets = [0, 0], sizes = [8, 128], strides = [1, 1]} : vector<8x512xf32> to vector<8x128xf32>
    %492 = arith.negf %491 : vector<8x128xf32>
    %493 = math.exp %492 : vector<8x128xf32>
    %cst_117 = arith.constant 1.000000e+00 : f32
    %494 = vector.broadcast %cst_117 : f32 to vector<8x128xf32>
    %495 = arith.addf %494, %493 : vector<8x128xf32>
    %496 = arith.divf %494, %495 : vector<8x128xf32>
    %497 = vector.extract_strided_slice %490 {offsets = [0, 128], sizes = [8, 128], strides = [1, 1]} : vector<8x512xf32> to vector<8x128xf32>
    %498 = arith.negf %497 : vector<8x128xf32>
    %499 = math.exp %498 : vector<8x128xf32>
    %cst_118 = arith.constant 1.000000e+00 : f32
    %500 = vector.broadcast %cst_118 : f32 to vector<8x128xf32>
    %501 = arith.addf %500, %499 : vector<8x128xf32>
    %502 = arith.divf %500, %501 : vector<8x128xf32>
    %503 = vector.extract_strided_slice %490 {offsets = [0, 256], sizes = [8, 128], strides = [1, 1]} : vector<8x512xf32> to vector<8x128xf32>
    %504 = math.tanh %503 : vector<8x128xf32>
    %505 = vector.extract_strided_slice %490 {offsets = [0, 384], sizes = [8, 128], strides = [1, 1]} : vector<8x512xf32> to vector<8x128xf32>
    %506 = arith.negf %505 : vector<8x128xf32>
    %507 = math.exp %506 : vector<8x128xf32>
    %cst_119 = arith.constant 1.000000e+00 : f32
    %508 = vector.broadcast %cst_119 : f32 to vector<8x128xf32>
    %509 = arith.addf %508, %507 : vector<8x128xf32>
    %510 = arith.divf %508, %509 : vector<8x128xf32>
    %511 = arith.mulf %502, %417 : vector<8x128xf32>
    %512 = arith.mulf %496, %504 : vector<8x128xf32>
    %513 = arith.addf %511, %512 : vector<8x128xf32>
    %514 = math.tanh %513 : vector<8x128xf32>
    %515 = arith.mulf %510, %514 : vector<8x128xf32>
    %516 = arith.truncf %515 : vector<8x128xf32> to vector<8x128xbf16>
    %517 = arith.truncf %452 : vector<8x128xf32> to vector<8x128xbf16>
    %518 = tpu.concatenate %517, %420 in 1 : vector<8x128xbf16>, vector<8x128xbf16> -> vector<8x256xbf16>
    %c0_120 = arith.constant 0 : index
    %c0_121 = arith.constant 0 : index
    %519 = vector.load %arg4[%c0_120, %c0_121] : memref<256x512xbf16, #tpu.memory_space<vmem>>, vector<256x512xbf16>
    %cst_122 = arith.constant dense<0.000000e+00> : vector<8x512xf32>
    %520 = tpu.matmul %518, %519, %cst_122 {dimension_numbers = #tpu.dot_dimension_numbers<[1], [0], [0], [1], [0, 0, 1, 1], [], []>} : vector<8x256xbf16>, vector<256x512xbf16>, vector<8x512xf32> -> vector<8x512xf32>
    %c0_123 = arith.constant 0 : index
    %c0_124 = arith.constant 0 : index
    %521 = vector.load %arg5[%c0_123, %c0_124] : memref<1x512xf32, #tpu.memory_space<vmem>>, vector<1x512xf32>
    %522 = vector.broadcast %521 : vector<1x512xf32> to vector<8x512xf32>
    %523 = arith.addf %520, %522 : vector<8x512xf32>
    %524 = vector.extract_strided_slice %523 {offsets = [0, 0], sizes = [8, 128], strides = [1, 1]} : vector<8x512xf32> to vector<8x128xf32>
    %525 = arith.negf %524 : vector<8x128xf32>
    %526 = math.exp %525 : vector<8x128xf32>
    %cst_125 = arith.constant 1.000000e+00 : f32
    %527 = vector.broadcast %cst_125 : f32 to vector<8x128xf32>
    %528 = arith.addf %527, %526 : vector<8x128xf32>
    %529 = arith.divf %527, %528 : vector<8x128xf32>
    %530 = vector.extract_strided_slice %523 {offsets = [0, 128], sizes = [8, 128], strides = [1, 1]} : vector<8x512xf32> to vector<8x128xf32>
    %531 = arith.negf %530 : vector<8x128xf32>
    %532 = math.exp %531 : vector<8x128xf32>
    %cst_126 = arith.constant 1.000000e+00 : f32
    %533 = vector.broadcast %cst_126 : f32 to vector<8x128xf32>
    %534 = arith.addf %533, %532 : vector<8x128xf32>
    %535 = arith.divf %533, %534 : vector<8x128xf32>
    %536 = vector.extract_strided_slice %523 {offsets = [0, 256], sizes = [8, 128], strides = [1, 1]} : vector<8x512xf32> to vector<8x128xf32>
    %537 = math.tanh %536 : vector<8x128xf32>
    %538 = vector.extract_strided_slice %523 {offsets = [0, 384], sizes = [8, 128], strides = [1, 1]} : vector<8x512xf32> to vector<8x128xf32>
    %539 = arith.negf %538 : vector<8x128xf32>
    %540 = math.exp %539 : vector<8x128xf32>
    %cst_127 = arith.constant 1.000000e+00 : f32
    %541 = vector.broadcast %cst_127 : f32 to vector<8x128xf32>
    %542 = arith.addf %541, %540 : vector<8x128xf32>
    %543 = arith.divf %541, %542 : vector<8x128xf32>
    %544 = arith.mulf %535, %450 : vector<8x128xf32>
    %545 = arith.mulf %529, %537 : vector<8x128xf32>
    %546 = arith.addf %544, %545 : vector<8x128xf32>
    %547 = math.tanh %546 : vector<8x128xf32>
    %548 = arith.mulf %543, %547 : vector<8x128xf32>
    %549 = arith.truncf %548 : vector<8x128xf32> to vector<8x128xbf16>
    %550 = arith.truncf %485 : vector<8x128xf32> to vector<8x128xbf16>
    %551 = tpu.concatenate %550, %453 in 1 : vector<8x128xbf16>, vector<8x128xbf16> -> vector<8x256xbf16>
    %c0_128 = arith.constant 0 : index
    %c0_129 = arith.constant 0 : index
    %552 = vector.load %arg6[%c0_128, %c0_129] : memref<256x512xbf16, #tpu.memory_space<vmem>>, vector<256x512xbf16>
    %cst_130 = arith.constant dense<0.000000e+00> : vector<8x512xf32>
    %553 = tpu.matmul %551, %552, %cst_130 {dimension_numbers = #tpu.dot_dimension_numbers<[1], [0], [0], [1], [0, 0, 1, 1], [], []>} : vector<8x256xbf16>, vector<256x512xbf16>, vector<8x512xf32> -> vector<8x512xf32>
    %c0_131 = arith.constant 0 : index
    %c0_132 = arith.constant 0 : index
    %554 = vector.load %arg7[%c0_131, %c0_132] : memref<1x512xf32, #tpu.memory_space<vmem>>, vector<1x512xf32>
    %555 = vector.broadcast %554 : vector<1x512xf32> to vector<8x512xf32>
    %556 = arith.addf %553, %555 : vector<8x512xf32>
    %557 = vector.extract_strided_slice %556 {offsets = [0, 0], sizes = [8, 128], strides = [1, 1]} : vector<8x512xf32> to vector<8x128xf32>
    %558 = arith.negf %557 : vector<8x128xf32>
    %559 = math.exp %558 : vector<8x128xf32>
    %cst_133 = arith.constant 1.000000e+00 : f32
    %560 = vector.broadcast %cst_133 : f32 to vector<8x128xf32>
    %561 = arith.addf %560, %559 : vector<8x128xf32>
    %562 = arith.divf %560, %561 : vector<8x128xf32>
    %563 = vector.extract_strided_slice %556 {offsets = [0, 128], sizes = [8, 128], strides = [1, 1]} : vector<8x512xf32> to vector<8x128xf32>
    %564 = arith.negf %563 : vector<8x128xf32>
    %565 = math.exp %564 : vector<8x128xf32>
    %cst_134 = arith.constant 1.000000e+00 : f32
    %566 = vector.broadcast %cst_134 : f32 to vector<8x128xf32>
    %567 = arith.addf %566, %565 : vector<8x128xf32>
    %568 = arith.divf %566, %567 : vector<8x128xf32>
    %569 = vector.extract_strided_slice %556 {offsets = [0, 256], sizes = [8, 128], strides = [1, 1]} : vector<8x512xf32> to vector<8x128xf32>
    %570 = math.tanh %569 : vector<8x128xf32>
    %571 = vector.extract_strided_slice %556 {offsets = [0, 384], sizes = [8, 128], strides = [1, 1]} : vector<8x512xf32> to vector<8x128xf32>
    %572 = arith.negf %571 : vector<8x128xf32>
    %573 = math.exp %572 : vector<8x128xf32>
    %cst_135 = arith.constant 1.000000e+00 : f32
    %574 = vector.broadcast %cst_135 : f32 to vector<8x128xf32>
    %575 = arith.addf %574, %573 : vector<8x128xf32>
    %576 = arith.divf %574, %575 : vector<8x128xf32>
    %577 = arith.mulf %568, %483 : vector<8x128xf32>
    %578 = arith.mulf %562, %570 : vector<8x128xf32>
    %579 = arith.addf %577, %578 : vector<8x128xf32>
    %580 = math.tanh %579 : vector<8x128xf32>
    %581 = arith.mulf %576, %580 : vector<8x128xf32>
    %582 = vector.extract_strided_slice %5 {offsets = [56, 0], sizes = [8, 512], strides = [1, 1]} : vector<64x512xf32> to vector<8x512xf32>
    %583 = arith.truncf %515 : vector<8x128xf32> to vector<8x128xbf16>
    %c0_136 = arith.constant 0 : index
    %c0_137 = arith.constant 0 : index
    %584 = vector.load %arg2[%c0_136, %c0_137] : memref<128x512xbf16, #tpu.memory_space<vmem>>, vector<128x512xbf16>
    %cst_138 = arith.constant dense<0.000000e+00> : vector<8x512xf32>
    %585 = tpu.matmul %583, %584, %cst_138 {dimension_numbers = #tpu.dot_dimension_numbers<[1], [0], [0], [1], [0, 0, 1, 1], [], []>} : vector<8x128xbf16>, vector<128x512xbf16>, vector<8x512xf32> -> vector<8x512xf32>
    %586 = arith.addf %582, %585 : vector<8x512xf32>
    %587 = vector.extract_strided_slice %586 {offsets = [0, 0], sizes = [8, 128], strides = [1, 1]} : vector<8x512xf32> to vector<8x128xf32>
    %588 = arith.negf %587 : vector<8x128xf32>
    %589 = math.exp %588 : vector<8x128xf32>
    %cst_139 = arith.constant 1.000000e+00 : f32
    %590 = vector.broadcast %cst_139 : f32 to vector<8x128xf32>
    %591 = arith.addf %590, %589 : vector<8x128xf32>
    %592 = arith.divf %590, %591 : vector<8x128xf32>
    %593 = vector.extract_strided_slice %586 {offsets = [0, 128], sizes = [8, 128], strides = [1, 1]} : vector<8x512xf32> to vector<8x128xf32>
    %594 = arith.negf %593 : vector<8x128xf32>
    %595 = math.exp %594 : vector<8x128xf32>
    %cst_140 = arith.constant 1.000000e+00 : f32
    %596 = vector.broadcast %cst_140 : f32 to vector<8x128xf32>
    %597 = arith.addf %596, %595 : vector<8x128xf32>
    %598 = arith.divf %596, %597 : vector<8x128xf32>
    %599 = vector.extract_strided_slice %586 {offsets = [0, 256], sizes = [8, 128], strides = [1, 1]} : vector<8x512xf32> to vector<8x128xf32>
    %600 = math.tanh %599 : vector<8x128xf32>
    %601 = vector.extract_strided_slice %586 {offsets = [0, 384], sizes = [8, 128], strides = [1, 1]} : vector<8x512xf32> to vector<8x128xf32>
    %602 = arith.negf %601 : vector<8x128xf32>
    %603 = math.exp %602 : vector<8x128xf32>
    %cst_141 = arith.constant 1.000000e+00 : f32
    %604 = vector.broadcast %cst_141 : f32 to vector<8x128xf32>
    %605 = arith.addf %604, %603 : vector<8x128xf32>
    %606 = arith.divf %604, %605 : vector<8x128xf32>
    %607 = arith.mulf %598, %513 : vector<8x128xf32>
    %608 = arith.mulf %592, %600 : vector<8x128xf32>
    %609 = arith.addf %607, %608 : vector<8x128xf32>
    %610 = math.tanh %609 : vector<8x128xf32>
    %611 = arith.mulf %606, %610 : vector<8x128xf32>
    %612 = arith.truncf %611 : vector<8x128xf32> to vector<8x128xbf16>
    %613 = arith.truncf %548 : vector<8x128xf32> to vector<8x128xbf16>
    %614 = tpu.concatenate %613, %516 in 1 : vector<8x128xbf16>, vector<8x128xbf16> -> vector<8x256xbf16>
    %c0_142 = arith.constant 0 : index
    %c0_143 = arith.constant 0 : index
    %615 = vector.load %arg4[%c0_142, %c0_143] : memref<256x512xbf16, #tpu.memory_space<vmem>>, vector<256x512xbf16>
    %cst_144 = arith.constant dense<0.000000e+00> : vector<8x512xf32>
    %616 = tpu.matmul %614, %615, %cst_144 {dimension_numbers = #tpu.dot_dimension_numbers<[1], [0], [0], [1], [0, 0, 1, 1], [], []>} : vector<8x256xbf16>, vector<256x512xbf16>, vector<8x512xf32> -> vector<8x512xf32>
    %c0_145 = arith.constant 0 : index
    %c0_146 = arith.constant 0 : index
    %617 = vector.load %arg5[%c0_145, %c0_146] : memref<1x512xf32, #tpu.memory_space<vmem>>, vector<1x512xf32>
    %618 = vector.broadcast %617 : vector<1x512xf32> to vector<8x512xf32>
    %619 = arith.addf %616, %618 : vector<8x512xf32>
    %620 = vector.extract_strided_slice %619 {offsets = [0, 0], sizes = [8, 128], strides = [1, 1]} : vector<8x512xf32> to vector<8x128xf32>
    %621 = arith.negf %620 : vector<8x128xf32>
    %622 = math.exp %621 : vector<8x128xf32>
    %cst_147 = arith.constant 1.000000e+00 : f32
    %623 = vector.broadcast %cst_147 : f32 to vector<8x128xf32>
    %624 = arith.addf %623, %622 : vector<8x128xf32>
    %625 = arith.divf %623, %624 : vector<8x128xf32>
    %626 = vector.extract_strided_slice %619 {offsets = [0, 128], sizes = [8, 128], strides = [1, 1]} : vector<8x512xf32> to vector<8x128xf32>
    %627 = arith.negf %626 : vector<8x128xf32>
    %628 = math.exp %627 : vector<8x128xf32>
    %cst_148 = arith.constant 1.000000e+00 : f32
    %629 = vector.broadcast %cst_148 : f32 to vector<8x128xf32>
    %630 = arith.addf %629, %628 : vector<8x128xf32>
    %631 = arith.divf %629, %630 : vector<8x128xf32>
    %632 = vector.extract_strided_slice %619 {offsets = [0, 256], sizes = [8, 128], strides = [1, 1]} : vector<8x512xf32> to vector<8x128xf32>
    %633 = math.tanh %632 : vector<8x128xf32>
    %634 = vector.extract_strided_slice %619 {offsets = [0, 384], sizes = [8, 128], strides = [1, 1]} : vector<8x512xf32> to vector<8x128xf32>
    %635 = arith.negf %634 : vector<8x128xf32>
    %636 = math.exp %635 : vector<8x128xf32>
    %cst_149 = arith.constant 1.000000e+00 : f32
    %637 = vector.broadcast %cst_149 : f32 to vector<8x128xf32>
    %638 = arith.addf %637, %636 : vector<8x128xf32>
    %639 = arith.divf %637, %638 : vector<8x128xf32>
    %640 = arith.mulf %631, %546 : vector<8x128xf32>
    %641 = arith.mulf %625, %633 : vector<8x128xf32>
    %642 = arith.addf %640, %641 : vector<8x128xf32>
    %643 = math.tanh %642 : vector<8x128xf32>
    %644 = arith.mulf %639, %643 : vector<8x128xf32>
    %645 = arith.truncf %644 : vector<8x128xf32> to vector<8x128xbf16>
    %646 = arith.truncf %581 : vector<8x128xf32> to vector<8x128xbf16>
    %647 = tpu.concatenate %646, %549 in 1 : vector<8x128xbf16>, vector<8x128xbf16> -> vector<8x256xbf16>
    %c0_150 = arith.constant 0 : index
    %c0_151 = arith.constant 0 : index
    %648 = vector.load %arg6[%c0_150, %c0_151] : memref<256x512xbf16, #tpu.memory_space<vmem>>, vector<256x512xbf16>
    %cst_152 = arith.constant dense<0.000000e+00> : vector<8x512xf32>
    %649 = tpu.matmul %647, %648, %cst_152 {dimension_numbers = #tpu.dot_dimension_numbers<[1], [0], [0], [1], [0, 0, 1, 1], [], []>} : vector<8x256xbf16>, vector<256x512xbf16>, vector<8x512xf32> -> vector<8x512xf32>
    %c0_153 = arith.constant 0 : index
    %c0_154 = arith.constant 0 : index
    %650 = vector.load %arg7[%c0_153, %c0_154] : memref<1x512xf32, #tpu.memory_space<vmem>>, vector<1x512xf32>
    %651 = vector.broadcast %650 : vector<1x512xf32> to vector<8x512xf32>
    %652 = arith.addf %649, %651 : vector<8x512xf32>
    %653 = vector.extract_strided_slice %652 {offsets = [0, 0], sizes = [8, 128], strides = [1, 1]} : vector<8x512xf32> to vector<8x128xf32>
    %654 = arith.negf %653 : vector<8x128xf32>
    %655 = math.exp %654 : vector<8x128xf32>
    %cst_155 = arith.constant 1.000000e+00 : f32
    %656 = vector.broadcast %cst_155 : f32 to vector<8x128xf32>
    %657 = arith.addf %656, %655 : vector<8x128xf32>
    %658 = arith.divf %656, %657 : vector<8x128xf32>
    %659 = vector.extract_strided_slice %652 {offsets = [0, 128], sizes = [8, 128], strides = [1, 1]} : vector<8x512xf32> to vector<8x128xf32>
    %660 = arith.negf %659 : vector<8x128xf32>
    %661 = math.exp %660 : vector<8x128xf32>
    %cst_156 = arith.constant 1.000000e+00 : f32
    %662 = vector.broadcast %cst_156 : f32 to vector<8x128xf32>
    %663 = arith.addf %662, %661 : vector<8x128xf32>
    %664 = arith.divf %662, %663 : vector<8x128xf32>
    %665 = vector.extract_strided_slice %652 {offsets = [0, 256], sizes = [8, 128], strides = [1, 1]} : vector<8x512xf32> to vector<8x128xf32>
    %666 = math.tanh %665 : vector<8x128xf32>
    %667 = vector.extract_strided_slice %652 {offsets = [0, 384], sizes = [8, 128], strides = [1, 1]} : vector<8x512xf32> to vector<8x128xf32>
    %668 = arith.negf %667 : vector<8x128xf32>
    %669 = math.exp %668 : vector<8x128xf32>
    %cst_157 = arith.constant 1.000000e+00 : f32
    %670 = vector.broadcast %cst_157 : f32 to vector<8x128xf32>
    %671 = arith.addf %670, %669 : vector<8x128xf32>
    %672 = arith.divf %670, %671 : vector<8x128xf32>
    %673 = arith.mulf %664, %579 : vector<8x128xf32>
    %674 = arith.mulf %658, %666 : vector<8x128xf32>
    %675 = arith.addf %673, %674 : vector<8x128xf32>
    %676 = math.tanh %675 : vector<8x128xf32>
    %677 = arith.mulf %672, %676 : vector<8x128xf32>
    %678 = arith.truncf %644 : vector<8x128xf32> to vector<8x128xbf16>
    %679 = tpu.concatenate %678, %612 in 1 : vector<8x128xbf16>, vector<8x128xbf16> -> vector<8x256xbf16>
    %c0_158 = arith.constant 0 : index
    %c0_159 = arith.constant 0 : index
    %680 = vector.load %arg4[%c0_158, %c0_159] : memref<256x512xbf16, #tpu.memory_space<vmem>>, vector<256x512xbf16>
    %cst_160 = arith.constant dense<0.000000e+00> : vector<8x512xf32>
    %681 = tpu.matmul %679, %680, %cst_160 {dimension_numbers = #tpu.dot_dimension_numbers<[1], [0], [0], [1], [0, 0, 1, 1], [], []>} : vector<8x256xbf16>, vector<256x512xbf16>, vector<8x512xf32> -> vector<8x512xf32>
    %c0_161 = arith.constant 0 : index
    %c0_162 = arith.constant 0 : index
    %682 = vector.load %arg5[%c0_161, %c0_162] : memref<1x512xf32, #tpu.memory_space<vmem>>, vector<1x512xf32>
    %683 = vector.broadcast %682 : vector<1x512xf32> to vector<8x512xf32>
    %684 = arith.addf %681, %683 : vector<8x512xf32>
    %685 = vector.extract_strided_slice %684 {offsets = [0, 0], sizes = [8, 128], strides = [1, 1]} : vector<8x512xf32> to vector<8x128xf32>
    %686 = arith.negf %685 : vector<8x128xf32>
    %687 = math.exp %686 : vector<8x128xf32>
    %cst_163 = arith.constant 1.000000e+00 : f32
    %688 = vector.broadcast %cst_163 : f32 to vector<8x128xf32>
    %689 = arith.addf %688, %687 : vector<8x128xf32>
    %690 = arith.divf %688, %689 : vector<8x128xf32>
    %691 = vector.extract_strided_slice %684 {offsets = [0, 128], sizes = [8, 128], strides = [1, 1]} : vector<8x512xf32> to vector<8x128xf32>
    %692 = arith.negf %691 : vector<8x128xf32>
    %693 = math.exp %692 : vector<8x128xf32>
    %cst_164 = arith.constant 1.000000e+00 : f32
    %694 = vector.broadcast %cst_164 : f32 to vector<8x128xf32>
    %695 = arith.addf %694, %693 : vector<8x128xf32>
    %696 = arith.divf %694, %695 : vector<8x128xf32>
    %697 = vector.extract_strided_slice %684 {offsets = [0, 256], sizes = [8, 128], strides = [1, 1]} : vector<8x512xf32> to vector<8x128xf32>
    %698 = math.tanh %697 : vector<8x128xf32>
    %699 = vector.extract_strided_slice %684 {offsets = [0, 384], sizes = [8, 128], strides = [1, 1]} : vector<8x512xf32> to vector<8x128xf32>
    %700 = arith.negf %699 : vector<8x128xf32>
    %701 = math.exp %700 : vector<8x128xf32>
    %cst_165 = arith.constant 1.000000e+00 : f32
    %702 = vector.broadcast %cst_165 : f32 to vector<8x128xf32>
    %703 = arith.addf %702, %701 : vector<8x128xf32>
    %704 = arith.divf %702, %703 : vector<8x128xf32>
    %705 = arith.mulf %696, %642 : vector<8x128xf32>
    %706 = arith.mulf %690, %698 : vector<8x128xf32>
    %707 = arith.addf %705, %706 : vector<8x128xf32>
    %708 = math.tanh %707 : vector<8x128xf32>
    %709 = arith.mulf %704, %708 : vector<8x128xf32>
    %710 = arith.truncf %709 : vector<8x128xf32> to vector<8x128xbf16>
    %711 = arith.truncf %677 : vector<8x128xf32> to vector<8x128xbf16>
    %712 = tpu.concatenate %711, %645 in 1 : vector<8x128xbf16>, vector<8x128xbf16> -> vector<8x256xbf16>
    %c0_166 = arith.constant 0 : index
    %c0_167 = arith.constant 0 : index
    %713 = vector.load %arg6[%c0_166, %c0_167] : memref<256x512xbf16, #tpu.memory_space<vmem>>, vector<256x512xbf16>
    %cst_168 = arith.constant dense<0.000000e+00> : vector<8x512xf32>
    %714 = tpu.matmul %712, %713, %cst_168 {dimension_numbers = #tpu.dot_dimension_numbers<[1], [0], [0], [1], [0, 0, 1, 1], [], []>} : vector<8x256xbf16>, vector<256x512xbf16>, vector<8x512xf32> -> vector<8x512xf32>
    %c0_169 = arith.constant 0 : index
    %c0_170 = arith.constant 0 : index
    %715 = vector.load %arg7[%c0_169, %c0_170] : memref<1x512xf32, #tpu.memory_space<vmem>>, vector<1x512xf32>
    %716 = vector.broadcast %715 : vector<1x512xf32> to vector<8x512xf32>
    %717 = arith.addf %714, %716 : vector<8x512xf32>
    %718 = vector.extract_strided_slice %717 {offsets = [0, 0], sizes = [8, 128], strides = [1, 1]} : vector<8x512xf32> to vector<8x128xf32>
    %719 = arith.negf %718 : vector<8x128xf32>
    %720 = math.exp %719 : vector<8x128xf32>
    %cst_171 = arith.constant 1.000000e+00 : f32
    %721 = vector.broadcast %cst_171 : f32 to vector<8x128xf32>
    %722 = arith.addf %721, %720 : vector<8x128xf32>
    %723 = arith.divf %721, %722 : vector<8x128xf32>
    %724 = vector.extract_strided_slice %717 {offsets = [0, 128], sizes = [8, 128], strides = [1, 1]} : vector<8x512xf32> to vector<8x128xf32>
    %725 = arith.negf %724 : vector<8x128xf32>
    %726 = math.exp %725 : vector<8x128xf32>
    %cst_172 = arith.constant 1.000000e+00 : f32
    %727 = vector.broadcast %cst_172 : f32 to vector<8x128xf32>
    %728 = arith.addf %727, %726 : vector<8x128xf32>
    %729 = arith.divf %727, %728 : vector<8x128xf32>
    %730 = vector.extract_strided_slice %717 {offsets = [0, 256], sizes = [8, 128], strides = [1, 1]} : vector<8x512xf32> to vector<8x128xf32>
    %731 = math.tanh %730 : vector<8x128xf32>
    %732 = vector.extract_strided_slice %717 {offsets = [0, 384], sizes = [8, 128], strides = [1, 1]} : vector<8x512xf32> to vector<8x128xf32>
    %733 = arith.negf %732 : vector<8x128xf32>
    %734 = math.exp %733 : vector<8x128xf32>
    %cst_173 = arith.constant 1.000000e+00 : f32
    %735 = vector.broadcast %cst_173 : f32 to vector<8x128xf32>
    %736 = arith.addf %735, %734 : vector<8x128xf32>
    %737 = arith.divf %735, %736 : vector<8x128xf32>
    %738 = arith.mulf %729, %675 : vector<8x128xf32>
    %739 = arith.mulf %723, %731 : vector<8x128xf32>
    %740 = arith.addf %738, %739 : vector<8x128xf32>
    %741 = math.tanh %740 : vector<8x128xf32>
    %742 = arith.mulf %737, %741 : vector<8x128xf32>
    %743 = arith.truncf %742 : vector<8x128xf32> to vector<8x128xbf16>
    %744 = tpu.concatenate %743, %710 in 1 : vector<8x128xbf16>, vector<8x128xbf16> -> vector<8x256xbf16>
    %c0_174 = arith.constant 0 : index
    %c0_175 = arith.constant 0 : index
    %745 = vector.load %arg6[%c0_174, %c0_175] : memref<256x512xbf16, #tpu.memory_space<vmem>>, vector<256x512xbf16>
    %cst_176 = arith.constant dense<0.000000e+00> : vector<8x512xf32>
    %746 = tpu.matmul %744, %745, %cst_176 {dimension_numbers = #tpu.dot_dimension_numbers<[1], [0], [0], [1], [0, 0, 1, 1], [], []>} : vector<8x256xbf16>, vector<256x512xbf16>, vector<8x512xf32> -> vector<8x512xf32>
    %c0_177 = arith.constant 0 : index
    %c0_178 = arith.constant 0 : index
    %747 = vector.load %arg7[%c0_177, %c0_178] : memref<1x512xf32, #tpu.memory_space<vmem>>, vector<1x512xf32>
    %748 = vector.broadcast %747 : vector<1x512xf32> to vector<8x512xf32>
    %749 = arith.addf %746, %748 : vector<8x512xf32>
    %750 = vector.extract_strided_slice %749 {offsets = [0, 0], sizes = [8, 128], strides = [1, 1]} : vector<8x512xf32> to vector<8x128xf32>
    %751 = arith.negf %750 : vector<8x128xf32>
    %752 = math.exp %751 : vector<8x128xf32>
    %cst_179 = arith.constant 1.000000e+00 : f32
    %753 = vector.broadcast %cst_179 : f32 to vector<8x128xf32>
    %754 = arith.addf %753, %752 : vector<8x128xf32>
    %755 = arith.divf %753, %754 : vector<8x128xf32>
    %756 = vector.extract_strided_slice %749 {offsets = [0, 128], sizes = [8, 128], strides = [1, 1]} : vector<8x512xf32> to vector<8x128xf32>
    %757 = arith.negf %756 : vector<8x128xf32>
    %758 = math.exp %757 : vector<8x128xf32>
    %cst_180 = arith.constant 1.000000e+00 : f32
    %759 = vector.broadcast %cst_180 : f32 to vector<8x128xf32>
    %760 = arith.addf %759, %758 : vector<8x128xf32>
    %761 = arith.divf %759, %760 : vector<8x128xf32>
    %762 = vector.extract_strided_slice %749 {offsets = [0, 256], sizes = [8, 128], strides = [1, 1]} : vector<8x512xf32> to vector<8x128xf32>
    %763 = math.tanh %762 : vector<8x128xf32>
    %764 = vector.extract_strided_slice %749 {offsets = [0, 384], sizes = [8, 128], strides = [1, 1]} : vector<8x512xf32> to vector<8x128xf32>
    %765 = arith.negf %764 : vector<8x128xf32>
    %766 = math.exp %765 : vector<8x128xf32>
    %cst_181 = arith.constant 1.000000e+00 : f32
    %767 = vector.broadcast %cst_181 : f32 to vector<8x128xf32>
    %768 = arith.addf %767, %766 : vector<8x128xf32>
    %769 = arith.divf %767, %768 : vector<8x128xf32>
    %770 = arith.mulf %761, %740 : vector<8x128xf32>
    %771 = arith.mulf %755, %763 : vector<8x128xf32>
    %772 = arith.addf %770, %771 : vector<8x128xf32>
    %773 = math.tanh %772 : vector<8x128xf32>
    %774 = arith.mulf %769, %773 : vector<8x128xf32>
    %775 = arith.truncf %774 : vector<8x128xf32> to vector<8x128xbf16>
    %c0_182 = arith.constant 0 : index
    %c0_183 = arith.constant 0 : index
    %776 = vector.load %arg8[%c0_182, %c0_183] : memref<128x256xbf16, #tpu.memory_space<vmem>>, vector<128x256xbf16>
    %cst_184 = arith.constant dense<0.000000e+00> : vector<8x256xf32>
    %777 = tpu.matmul %775, %776, %cst_184 {dimension_numbers = #tpu.dot_dimension_numbers<[1], [0], [0], [1], [0, 0, 1, 1], [], []>} : vector<8x128xbf16>, vector<128x256xbf16>, vector<8x256xf32> -> vector<8x256xf32>
    %c0_185 = arith.constant 0 : index
    %c0_186 = arith.constant 0 : index
    %778 = vector.load %arg9[%c0_185, %c0_186] : memref<1x256xf32, #tpu.memory_space<vmem>>, vector<1x256xf32>
    %779 = vector.broadcast %778 : vector<1x256xf32> to vector<8x256xf32>
    %780 = arith.addf %777, %779 : vector<8x256xf32>
    %c0_187 = arith.constant 0 : index
    %c0_188 = arith.constant 0 : index
    %781 = vector.load %arg10[%c0_187, %c0_188] : memref<8x256xf32, #tpu.memory_space<vmem>>, vector<8x256xf32>
    tpu.vector_store %arg10[%c0_187, %c0_188], %780 {strides = array<i32>} : memref<8x256xf32, #tpu.memory_space<vmem>>, vector<8x256xf32>,
    return
  }
}

</mosaic_0001>

<llo_original>
// kernel: tpu_custom_call.1
$region0: #{tpu_custom_call.1}
  #allocation0 [shape = 'u32[]', space=smem, size = 0x4, offset = 0x4, fixed_abs, tag = 'smem constant byte address 0x4 - core index']
  #allocation1 [shape = 'u32[144,128]{1,0:T(1,128)}', space=vmem, size = 0x12000, scoped, tag = 'internal scratch']
  %s0 = inlined_call_operand.hbm [shape: bf16[64,128], index: 0, kind: input, shape index: {}]
  %s1 = inlined_call_operand.hbm [shape: bf16[128,512], index: 1, kind: input, shape index: {}]
  %s2 = inlined_call_operand.hbm [shape: bf16[128,512], index: 2, kind: input, shape index: {}]
  %s3 = inlined_call_operand.vmem [shape: f32[1,512], index: 3, kind: input, shape index: {}]
  %s4 = inlined_call_operand.hbm [shape: bf16[256,512], index: 4, kind: input, shape index: {}]
  %s5 = inlined_call_operand.vmem [shape: f32[1,512], index: 5, kind: input, shape index: {}]
  %s6 = inlined_call_operand.hbm [shape: bf16[256,512], index: 6, kind: input, shape index: {}]
  %s7 = inlined_call_operand.vmem [shape: f32[1,512], index: 7, kind: input, shape index: {}]
  %s8 = inlined_call_operand.hbm [shape: bf16[128,256], index: 8, kind: input, shape index: {}]
  %s9 = inlined_call_operand.vmem [shape: f32[1,256], index: 9, kind: input, shape index: {}]
  %s10 = inlined_call_operand.hbm [shape: f32[8,256], index: 10, kind: output, shape index: {}]
  %s11 = sld [smem:[#allocation0]]
  $region74: #{tpu_custom_call.1} parent=0
    _
  %s13 = ssub.s32 1, %s11
  %s14 = scalar_select 0, %s13, %s11
  $region1: #{tpu_custom_call.1} parent=0
    #allocation2 [shape = 'u8[16384]{0}', space=vmem, size = 0x4000, scoped, tag = 'input window, operand 0, single buffered']
    #allocation3 [shape = 's32[1]{0}', space=sflag, size = 0x4, scoped, tag = 'scoped memory for tpu_custom_call.1']
    #allocation4 [shape = 's32[1]{0}', space=sflag, size = 0x4, scoped, tag = 'scoped memory for tpu_custom_call.1']
    #allocation5 [shape = 'u8[131072]{0}', space=vmem, size = 0x20000, scoped, tag = 'input window, operand 1, single buffered']
    #allocation6 [shape = 's32[1]{0}', space=sflag, size = 0x4, scoped, tag = 'scoped memory for tpu_custom_call.1']
    #allocation7 [shape = 'u8[131072]{0}', space=vmem, size = 0x20000, scoped, tag = 'input window, operand 2, single buffered']
    #allocation8 [shape = 'u8[262144]{0}', space=vmem, size = 0x40000, scoped, tag = 'input window, operand 4, single buffered']
    #allocation9 [shape = 's32[1]{0}', space=sflag, size = 0x4, scoped, tag = 'scoped memory for tpu_custom_call.1']
    #allocation10 [shape = 'u8[262144]{0}', space=vmem, size = 0x40000, scoped, tag = 'input window, operand 6, single buffered']
    #allocation11 [shape = 'u8[65536]{0}', space=vmem, size = 0x10000, scoped, tag = 'input window, operand 8, single buffered']
    #allocation12 [shape = 's32[1]{0}', space=sflag, size = 0x4, scoped, tag = 'scoped memory for tpu_custom_call.1']
    #allocation13 [shape = 'u8[8192]{0}', space=vmem, size = 0x2000, scoped, tag = 'output window, operand 0, single buffered']
    %15 = vsyncpa [#allocation3], 0
    %16 = vsyncpa [#allocation6], 0
    %17 = vsyncpa [#allocation9], 0
    %18 = vsyncpa [#allocation12], 0
    %19 = vsyncpa [#allocation4], 0
    // Predicated region
    $region2: #{tpu_custom_call.1} parent=1 // pred_check
      _
    $region3: #{tpu_custom_call.1} parent=1 // pred_check_branch
      %21 = sbr.rel (0) target = $region5
    $region4: #{tpu_custom_call.1} parent=1 // pred_region
      %s23 = ssub.s32 512, 512
      %24 = vsyncadd [#allocation3], %s23
      %s25 = sshll.u32 [#allocation2], 4
      %s26 = int_to_ptr.vmem [resolvable:$true] %s25
      %31 = dma.hbm_to_vmem [thread:$0]  %s0, 512, %s26, [#allocation3], 64, 64, 4
    $region5: #{tpu_custom_call.1} parent=1 // pred_fallthru
      _
    // Predicated region
    $region6: #{tpu_custom_call.1} parent=1 // pred_check
      _
    $region7: #{tpu_custom_call.1} parent=1 // pred_check_branch
      %33 = sbr.rel (0) target = $region9
    $region8: #{tpu_custom_call.1} parent=1 // pred_region
      %s35 = ssub.s32 4096, 4096
      %36 = vsyncadd [#allocation6], %s35
      %s37 = sshll.u32 [#allocation5], 4
      %s38 = int_to_ptr.vmem [resolvable:$true] %s37
      %43 = dma.hbm_to_vmem [thread:$0]  %s1, 4096, %s38, [#allocation6], 256, 256, 16
    $region9: #{tpu_custom_call.1} parent=1 // pred_fallthru
      _
    // Predicated region
    $region10: #{tpu_custom_call.1} parent=1 // pred_check
      _
    $region11: #{tpu_custom_call.1} parent=1 // pred_check_branch
      %45 = sbr.rel (0) target = $region13
    $region12: #{tpu_custom_call.1} parent=1 // pred_region
      %s47 = ssub.s32 4096, 4096
      %48 = vsyncadd [#allocation6], %s47
      %s49 = sshll.u32 [#allocation7], 4
      %s50 = int_to_ptr.vmem [resolvable:$true] %s49
      %55 = dma.hbm_to_vmem [thread:$0]  %s2, 4096, %s50, [#allocation6], 256, 256, 16
    $region13: #{tpu_custom_call.1} parent=1 // pred_fallthru
      _
    // Predicated region
    $region14: #{tpu_custom_call.1} parent=1 // pred_check
      _
    $region15: #{tpu_custom_call.1} parent=1 // pred_check_branch
      %57 = sbr.rel (0) target = $region17
    $region16: #{tpu_custom_call.1} parent=1 // pred_region
      _
    $region17: #{tpu_custom_call.1} parent=1 // pred_fallthru
      _
    // Predicated region
    $region18: #{tpu_custom_call.1} parent=1 // pred_check
      _
    $region19: #{tpu_custom_call.1} parent=1 // pred_check_branch
      %59 = sbr.rel (0) target = $region21
    $region20: #{tpu_custom_call.1} parent=1 // pred_region
      %s61 = ssub.s32 8192, 8192
      %62 = vsyncadd [#allocation9], %s61
      %s63 = sshll.u32 [#allocation8], 4
      %s64 = int_to_ptr.vmem [resolvable:$true] %s63
      %69 = dma.hbm_to_vmem [thread:$0]  %s4, 8192, %s64, [#allocation9], 256, 256, 16
    $region21: #{tpu_custom_call.1} parent=1 // pred_fallthru
      _
    // Predicated region
    $region22: #{tpu_custom_call.1} parent=1 // pred_check
      _
    $region23: #{tpu_custom_call.1} parent=1 // pred_check_branch
      %71 = sbr.rel (0) target = $region25
    $region24: #{tpu_custom_call.1} parent=1 // pred_region
      _
    $region25: #{tpu_custom_call.1} parent=1 // pred_fallthru
      _
    // Predicated region
    $region26: #{tpu_custom_call.1} parent=1 // pred_check
      _
    $region27: #{tpu_custom_call.1} parent=1 // pred_check_branch
      %73 = sbr.rel (0) target = $region29
    $region28: #{tpu_custom_call.1} parent=1 // pred_region
      %s75 = ssub.s32 8192, 8192
      %76 = vsyncadd [#allocation9], %s75
      %s77 = sshll.u32 [#allocation10], 4
      %s78 = int_to_ptr.vmem [resolvable:$true] %s77
      %83 = dma.hbm_to_vmem [thread:$0]  %s6, 8192, %s78, [#allocation9], 256, 256, 16
    $region29: #{tpu_custom_call.1} parent=1 // pred_fallthru
      _
    // Predicated region
    $region30: #{tpu_custom_call.1} parent=1 // pred_check
      _
    $region31: #{tpu_custom_call.1} parent=1 // pred_check_branch
      %85 = sbr.rel (0) target = $region33
    $region32: #{tpu_custom_call.1} parent=1 // pred_region
      _
    $region33: #{tpu_custom_call.1} parent=1 // pred_fallthru
      _
    // Predicated region
    $region34: #{tpu_custom_call.1} parent=1 // pred_check
      _
    $region35: #{tpu_custom_call.1} parent=1 // pred_check_branch
      %87 = sbr.rel (0) target = $region37
    $region36: #{tpu_custom_call.1} parent=1 // pred_region
      %s89 = ssub.s32 2048, 2048
      %90 = vsyncadd [#allocation12], %s89
      %s91 = sshll.u32 [#allocation11], 4
      %s92 = int_to_ptr.vmem [resolvable:$true] %s91
      %97 = dma.hbm_to_vmem [thread:$0]  %s8, 2048, %s92, [#allocation12], 128, 128, 8
    $region37: #{tpu_custom_call.1} parent=1 // pred_fallthru
      _
    // Predicated region
    $region38: #{tpu_custom_call.1} parent=1 // pred_check
      _
    $region39: #{tpu_custom_call.1} parent=1 // pred_check_branch
      %99 = sbr.rel (0) target = $region41
    $region40: #{tpu_custom_call.1} parent=1 // pred_region
      _
    $region41: #{tpu_custom_call.1} parent=1 // pred_fallthru
      _
    // Predicated region
    $region42: #{tpu_custom_call.1} parent=1 // pred_check
      _
    $region43: #{tpu_custom_call.1} parent=1 // pred_check_branch
      %101 = sbr.rel (0) target = $region45
    $region44: #{tpu_custom_call.1} parent=1 // pred_region
      %102 = dma.done [#allocation3], 512
    $region45: #{tpu_custom_call.1} parent=1 // pred_fallthru
      _
    // Predicated region
    $region46: #{tpu_custom_call.1} parent=1 // pred_check
      _
    $region47: #{tpu_custom_call.1} parent=1 // pred_check_branch
      %104 = sbr.rel (0) target = $region49
    $region48: #{tpu_custom_call.1} parent=1 // pred_region
      %105 = dma.done [#allocation6], 4096
    $region49: #{tpu_custom_call.1} parent=1 // pred_fallthru
      _
    // Predicated region
    $region50: #{tpu_custom_call.1} parent=1 // pred_check
      _
    $region51: #{tpu_custom_call.1} parent=1 // pred_check_branch
      %107 = sbr.rel (0) target = $region53
    $region52: #{tpu_custom_call.1} parent=1 // pred_region
      %108 = dma.done [#allocation6], 4096
    $region53: #{tpu_custom_call.1} parent=1 // pred_fallthru
      _
    // Predicated region
    $region54: #{tpu_custom_call.1} parent=1 // pred_check
      _
    $region55: #{tpu_custom_call.1} parent=1 // pred_check_branch
      %110 = sbr.rel (0) target = $region57
    $region56: #{tpu_custom_call.1} parent=1 // pred_region
      %111 = dma.done [#allocation9], 8192
    $region57: #{tpu_custom_call.1} parent=1 // pred_fallthru
      _
    // Predicated region
    $region58: #{tpu_custom_call.1} parent=1 // pred_check
      _
    $region59: #{tpu_custom_call.1} parent=1 // pred_check_branch
      %113 = sbr.rel (0) target = $region61
    $region60: #{tpu_custom_call.1} parent=1 // pred_region
      %114 = dma.done [#allocation9], 8192
    $region61: #{tpu_custom_call.1} parent=1 // pred_fallthru
      _
    // Predicated region
    $region62: #{tpu_custom_call.1} parent=1 // pred_check
      _
    $region63: #{tpu_custom_call.1} parent=1 // pred_check_branch
      %116 = sbr.rel (0) target = $region65
    $region64: #{tpu_custom_call.1} parent=1 // pred_region
      %117 = dma.done [#allocation12], 2048
    $region65: #{tpu_custom_call.1} parent=1 // pred_fallthru
      _
    %v119 = vld [vmem:[#allocation2] sm:$0xf]
    %v120 = vld [vmem:[#allocation2 + $0x4] sm:$0xf]
    %v121 = vld [vmem:[#allocation2 + $0x8] sm:$0xf]
    %v122 = vld [vmem:[#allocation2 + $0xc] sm:$0xf]
    %v123 = vld [vmem:[#allocation2 + $0x10] sm:$0xf]
    %v124 = vld [vmem:[#allocation2 + $0x14] sm:$0xf]
    %v125 = vld [vmem:[#allocation2 + $0x18] sm:$0xf]
    %v126 = vld [vmem:[#allocation2 + $0x1c] sm:$0xf]
    %v127 = vld [vmem:[#allocation5] sm:$0xff]
    %v128 = vld [vmem:[#allocation5 + $0x8] sm:$0xff]
    %v129 = vld [vmem:[#allocation5 + $0x10] sm:$0xff]
    %v130 = vld [vmem:[#allocation5 + $0x18] sm:$0xff]
    %v131 = vld [vmem:[#allocation5 + $0x20] sm:$0xff]
    %v132 = vld [vmem:[#allocation5 + $0x28] sm:$0xff]
    %v133 = vld [vmem:[#allocation5 + $0x30] sm:$0xff]
    %v134 = vld [vmem:[#allocation5 + $0x38] sm:$0xff]
    %v135 = vld [vmem:[#allocation5 + $0x40] sm:$0xff]
    %v136 = vld [vmem:[#allocation5 + $0x48] sm:$0xff]
    %v137 = vld [vmem:[#allocation5 + $0x50] sm:$0xff]
    %v138 = vld [vmem:[#allocation5 + $0x58] sm:$0xff]
    %v139 = vld [vmem:[#allocation5 + $0x60] sm:$0xff]
    %v140 = vld [vmem:[#allocation5 + $0x68] sm:$0xff]
    %v141 = vld [vmem:[#allocation5 + $0x70] sm:$0xff]
    %v142 = vld [vmem:[#allocation5 + $0x78] sm:$0xff]
    %v143 = vld [vmem:[#allocation5 + $0x80] sm:$0xff]
    %v144 = vld [vmem:[#allocation5 + $0x88] sm:$0xff]
    %v145 = vld [vmem:[#allocation5 + $0x90] sm:$0xff]
    %v146 = vld [vmem:[#allocation5 + $0x98] sm:$0xff]
    %v147 = vld [vmem:[#allocation5 + $0xa0] sm:$0xff]
    %v148 = vld [vmem:[#allocation5 + $0xa8] sm:$0xff]
    %v149 = vld [vmem:[#allocation5 + $0xb0] sm:$0xff]
    %v150 = vld [vmem:[#allocation5 + $0xb8] sm:$0xff]
    %v151 = vld [vmem:[#allocation5 + $0xc0] sm:$0xff]
    %v152 = vld [vmem:[#allocation5 + $0xc8] sm:$0xff]
    %v153 = vld [vmem:[#allocation5 + $0xd0] sm:$0xff]
    %v154 = vld [vmem:[#allocation5 + $0xd8] sm:$0xff]
    %v155 = vld [vmem:[#allocation5 + $0xe0] sm:$0xff]
    %v156 = vld [vmem:[#allocation5 + $0xe8] sm:$0xff]
    %v157 = vld [vmem:[#allocation5 + $0xf0] sm:$0xff]
    %v158 = vld [vmem:[#allocation5 + $0xf8] sm:$0xff]
    %v159 = vld [vmem:[%s3] sm:$0xf]
    %v161 = vlaneseq
    %v162 = vshrl.u32 %v161, 7
    %v163 = vsub.s32 0, %v162
    %v164 = vrot.slane %v159, %v163
    %v165 = vlaneseq
    %v166 = vshrl.u32 %v165, 7
    %v167 = vsub.s32 1, %v166
    %v168 = vrot.slane %v159, %v167
    %v169 = vlaneseq
    %v170 = vshrl.u32 %v169, 7
    %v171 = vsub.s32 2, %v170
    %v172 = vrot.slane %v159, %v171
    %v173 = vlaneseq
    %v174 = vshrl.u32 %v173, 7
    %v175 = vsub.s32 3, %v174
    %v176 = vrot.slane %v159, %v175
    %v189 = vunpack.c.l.b16 %v119
    %v190 = vunpack.c.l.b16 %v120
    %v191 = vunpack.c.l.b16 %v121
    %v192 = vunpack.c.l.b16 %v122
    %v193 = vunpack.c.l.b16 %v123
    %v194 = vunpack.c.l.b16 %v124
    %v195 = vunpack.c.l.b16 %v125
    %v196 = vunpack.c.l.b16 %v126
    %v197 = vpack.c.b16 %v190, %v189
    %v198 = vpack.c.b16 %v192, %v191
    %v199 = vpack.c.b16 %v194, %v193
    %v200 = vpack.c.b16 %v196, %v195
    %v237 = vunpack.c.l.b16 %v127
    %v238 = vunpack.c.h.b16 %v127
    %v239 = vunpack.c.l.b16 %v128
    %v240 = vunpack.c.h.b16 %v128
    %v241 = vunpack.c.l.b16 %v129
    %v242 = vunpack.c.h.b16 %v129
    %v243 = vunpack.c.l.b16 %v130
    %v244 = vunpack.c.h.b16 %v130
    %v245 = vunpack.c.l.b16 %v131
    %v246 = vunpack.c.h.b16 %v131
    %v247 = vunpack.c.l.b16 %v132
    %v248 = vunpack.c.h.b16 %v132
    %v249 = vunpack.c.l.b16 %v133
    %v250 = vunpack.c.h.b16 %v133
    %v251 = vunpack.c.l.b16 %v134
    %v252 = vunpack.c.h.b16 %v134
    %v253 = vunpack.c.l.b16 %v135
    %v254 = vunpack.c.h.b16 %v135
    %v255 = vunpack.c.l.b16 %v136
    %v256 = vunpack.c.h.b16 %v136
    %v257 = vunpack.c.l.b16 %v137
    %v258 = vunpack.c.h.b16 %v137
    %v259 = vunpack.c.l.b16 %v138
    %v260 = vunpack.c.h.b16 %v138
    %v261 = vunpack.c.l.b16 %v139
    %v262 = vunpack.c.h.b16 %v139
    %v263 = vunpack.c.l.b16 %v140
    %v264 = vunpack.c.h.b16 %v140
    %v265 = vunpack.c.l.b16 %v141
    %v266 = vunpack.c.h.b16 %v141
    %v267 = vunpack.c.l.b16 %v142
    %v268 = vunpack.c.h.b16 %v142
    %v269 = vunpack.c.l.b16 %v143
    %v270 = vunpack.c.h.b16 %v143
    %v271 = vunpack.c.l.b16 %v144
    %v272 = vunpack.c.h.b16 %v144
    %v273 = vunpack.c.l.b16 %v145
    %v274 = vunpack.c.h.b16 %v145
    %v275 = vunpack.c.l.b16 %v146
    %v276 = vunpack.c.h.b16 %v146
    %v277 = vunpack.c.l.b16 %v147
    %v278 = vunpack.c.h.b16 %v147
    %v279 = vunpack.c.l.b16 %v148
    %v280 = vunpack.c.h.b16 %v148
    %v281 = vunpack.c.l.b16 %v149
    %v282 = vunpack.c.h.b16 %v149
    %v283 = vunpack.c.l.b16 %v150
    %v284 = vunpack.c.h.b16 %v150
    %v285 = vunpack.c.l.b16 %v151
    %v286 = vunpack.c.h.b16 %v151
    %v287 = vunpack.c.l.b16 %v152
    %v288 = vunpack.c.h.b16 %v152
    %v289 = vunpack.c.l.b16 %v153
    %v290 = vunpack.c.h.b16 %v153
    %v291 = vunpack.c.l.b16 %v154
    %v292 = vunpack.c.h.b16 %v154
    %v293 = vunpack.c.l.b16 %v155
    %v294 = vunpack.c.h.b16 %v155
    %v295 = vunpack.c.l.b16 %v156
    %v296 = vunpack.c.h.b16 %v156
    %v297 = vunpack.c.l.b16 %v157
    %v298 = vunpack.c.h.b16 %v157
    %v299 = vunpack.c.l.b16 %v158
    %v300 = vunpack.c.h.b16 %v158
    %v301 = vpack.c.b16 %v241, %v237
    %v302 = vpack.c.b16 %v242, %v238
    %v303 = vpack.c.b16 %v243, %v239
    %v304 = vpack.c.b16 %v244, %v240
    %v305 = vpack.c.b16 %v249, %v245
    %v306 = vpack.c.b16 %v250, %v246
    %v307 = vpack.c.b16 %v251, %v247
    %v308 = vpack.c.b16 %v252, %v248
    %v309 = vpack.c.b16 %v257, %v253
    %v310 = vpack.c.b16 %v258, %v254
    %v311 = vpack.c.b16 %v259, %v255
    %v312 = vpack.c.b16 %v260, %v256
    %v313 = vpack.c.b16 %v265, %v261
    %v314 = vpack.c.b16 %v266, %v262
    %v315 = vpack.c.b16 %v267, %v263
    %v316 = vpack.c.b16 %v268, %v264
    %v317 = vpack.c.b16 %v273, %v269
    %v318 = vpack.c.b16 %v274, %v270
    %v319 = vpack.c.b16 %v275, %v271
    %v320 = vpack.c.b16 %v276, %v272
    %v321 = vpack.c.b16 %v281, %v277
    %v322 = vpack.c.b16 %v282, %v278
    %v323 = vpack.c.b16 %v283, %v279
    %v324 = vpack.c.b16 %v284, %v280
    %v325 = vpack.c.b16 %v289, %v285
    %v326 = vpack.c.b16 %v290, %v286
    %v327 = vpack.c.b16 %v291, %v287
    %v328 = vpack.c.b16 %v292, %v288
    %v329 = vpack.c.b16 %v297, %v293
    %v330 = vpack.c.b16 %v298, %v294
    %v331 = vpack.c.b16 %v299, %v295
    %v332 = vpack.c.b16 %v300, %v296
    %365 = vmatprep.subr.bf16.mxu0 %v302
    %366 = vmatpush1.bf16.msra.mxu0 %v301
    %367 = vmatprep.subr.bf16.mxu0 %v306
    %368 = vmatpush1.bf16.msra.mxu0 %v305
    %369 = vmatprep.subr.bf16.mxu0 %v310
    %370 = vmatpush1.bf16.msra.mxu0 %v309
    %371 = vmatprep.subr.bf16.mxu0 %v314
    %372 = vmatpush1.bf16.msra.mxu0 %v313
    %373 = vmatprep.subr.bf16.mxu0 %v318
    %374 = vmatpush1.bf16.msra.mxu0 %v317
    %375 = vmatprep.subr.bf16.mxu0 %v322
    %376 = vmatpush1.bf16.msra.mxu0 %v321
    %377 = vmatprep.subr.bf16.mxu0 %v326
    %378 = vmatpush1.bf16.msra.mxu0 %v325
    %379 = vmatprep.subr.bf16.mxu0 %v330
    %380 = vmatpush1.bf16.msra.mxu0 %v329
    %381 = vmatprep.subr.bf16.mxu0 0
    %382 = vmatpush1.bf16.msra.mxu0 0
    %383 = vmatprep.subr.bf16.mxu0 0
    %384 = vmatpush1.bf16.msra.mxu0 0
    %385 = vmatprep.subr.bf16.mxu0 0
    %386 = vmatpush1.bf16.msra.mxu0 0
    %387 = vmatprep.subr.bf16.mxu0 0
    %388 = vmatpush1.bf16.msra.mxu0 0
    %389 = vmatprep.subr.bf16.mxu0 0
    %390 = vmatpush1.bf16.msra.mxu0 0
    %391 = vmatprep.subr.bf16.mxu0 0
    %392 = vmatpush1.bf16.msra.mxu0 0
    %393 = vmatprep.subr.bf16.mxu0 0
    %394 = vmatpush1.bf16.msra.mxu0 0
    %395 = vmatprep.subr.bf16.mxu0 0
    %396 = vmatpush1.bf16.msra.mxu0 0
    %397 = vmatprep.mubr.bf16.mxu0 0
    %398 = vmatmul.mubr.bf16.gmra.mrb[0].mxu0 %v197
    %v399 = vpop.f32.mrb[0].mxu0
    %v400 = vadd.f32 %v164, %v399
    %v401 = vpop.f32.mrb[0].mxu0
    %v402 = vadd.f32 %v168, %v401
    %v403 = vpop.f32.mrb[0].mxu0
    %v404 = vadd.f32 %v164, %v403
    %v405 = vpop.f32.mrb[0].mxu0
    %v406 = vadd.f32 %v168, %v405
    %407 = vmatprep.mubr.bf16.mxu0 0
    %408 = vmatmul.mubr.bf16.gmra.mrb[0].mxu0 %v198
    %v409 = vpop.f32.mrb[0].mxu0
    %v410 = vadd.f32 %v164, %v409
    %v411 = vpop.f32.mrb[0].mxu0
    %v412 = vadd.f32 %v168, %v411
    %v413 = vpop.f32.mrb[0].mxu0
    %v414 = vadd.f32 %v164, %v413
    %v415 = vpop.f32.mrb[0].mxu0
    %v416 = vadd.f32 %v168, %v415
    %417 = vmatprep.mubr.bf16.mxu0 0
    %418 = vmatmul.mubr.bf16.gmra.mrb[0].mxu0 %v199
    %v419 = vpop.f32.mrb[0].mxu0
    %v420 = vadd.f32 %v164, %v419
    %v421 = vpop.f32.mrb[0].mxu0
    %v422 = vadd.f32 %v168, %v421
    %v423 = vpop.f32.mrb[0].mxu0
    %v424 = vadd.f32 %v164, %v423
    %v425 = vpop.f32.mrb[0].mxu0
    %v426 = vadd.f32 %v168, %v425
    %427 = vmatprep.mubr.bf16.mxu0 0
    %428 = vmatmul.mubr.bf16.gmra.mrb[0].mxu0 %v200
    %v429 = vpop.f32.mrb[0].mxu0
    %v430 = vadd.f32 %v164, %v429
    %v431 = vpop.f32.mrb[0].mxu0
    %v432 = vadd.f32 %v168, %v431
    %v433 = vpop.f32.mrb[0].mxu0
    %v434 = vadd.f32 %v164, %v433
    %v435 = vpop.f32.mrb[0].mxu0
    %v436 = vadd.f32 %v168, %v435
    %437 = vdwg.mxu0
    %438 = vmatprep.subr.bf16.mxu0 %v304
    %439 = vmatpush1.bf16.msra.mxu0 %v303
    %440 = vmatprep.subr.bf16.mxu0 %v308
    %441 = vmatpush1.bf16.msra.mxu0 %v307
    %442 = vmatprep.subr.bf16.mxu0 %v312
    %443 = vmatpush1.bf16.msra.mxu0 %v311
    %444 = vmatprep.subr.bf16.mxu0 %v316
    %445 = vmatpush1.bf16.msra.mxu0 %v315
    %446 = vmatprep.subr.bf16.mxu0 %v320
    %447 = vmatpush1.bf16.msra.mxu0 %v319
    %448 = vmatprep.subr.bf16.mxu0 %v324
    %449 = vmatpush1.bf16.msra.mxu0 %v323
    %450 = vmatprep.subr.bf16.mxu0 %v328
    %451 = vmatpush1.bf16.msra.mxu0 %v327
    %452 = vmatprep.subr.bf16.mxu0 %v332
    %453 = vmatpush1.bf16.msra.mxu0 %v331
    %454 = vmatprep.subr.bf16.mxu0 0
    %455 = vmatpush1.bf16.msra.mxu0 0
    %456 = vmatprep.subr.bf16.mxu0 0
    %457 = vmatpush1.bf16.msra.mxu0 0
    %458 = vmatprep.subr.bf16.mxu0 0
    %459 = vmatpush1.bf16.msra.mxu0 0
    %460 = vmatprep.subr.bf16.mxu0 0
    %461 = vmatpush1.bf16.msra.mxu0 0
    %462 = vmatprep.subr.bf16.mxu0 0
    %463 = vmatpush1.bf16.msra.mxu0 0
    %464 = vmatprep.subr.bf16.mxu0 0
    %465 = vmatpush1.bf16.msra.mxu0 0
    %466 = vmatprep.subr.bf16.mxu0 0
    %467 = vmatpush1.bf16.msra.mxu0 0
    %468 = vmatprep.subr.bf16.mxu0 0
    %469 = vmatpush1.bf16.msra.mxu0 0
    %470 = vmatprep.mubr.bf16.mxu0 0
    %471 = vmatmul.mubr.bf16.gmra.mrb[0].mxu0 %v197
    %v472 = vpop.f32.mrb[0].mxu0
    %v473 = vadd.f32 %v172, %v472
    %v474 = vpop.f32.mrb[0].mxu0
    %v475 = vadd.f32 %v176, %v474
    %v476 = vpop.f32.mrb[0].mxu0
    %v477 = vadd.f32 %v172, %v476
    %v478 = vpop.f32.mrb[0].mxu0
    %v479 = vadd.f32 %v176, %v478
    %480 = vmatprep.mubr.bf16.mxu0 0
    %481 = vmatmul.mubr.bf16.gmra.mrb[0].mxu0 %v198
    %v482 = vpop.f32.mrb[0].mxu0
    %v483 = vadd.f32 %v172, %v482
    %v484 = vpop.f32.mrb[0].mxu0
    %v485 = vadd.f32 %v176, %v484
    %v486 = vpop.f32.mrb[0].mxu0
    %v487 = vadd.f32 %v172, %v486
    %v488 = vpop.f32.mrb[0].mxu0
    %v489 = vadd.f32 %v176, %v488
    %490 = vmatprep.mubr.bf16.mxu0 0
    %491 = vmatmul.mubr.bf16.gmra.mrb[0].mxu0 %v199
    %v492 = vpop.f32.mrb[0].mxu0
    %v493 = vadd.f32 %v172, %v492
    %v494 = vpop.f32.mrb[0].mxu0
    %v495 = vadd.f32 %v176, %v494
    %v496 = vpop.f32.mrb[0].mxu0
    %v497 = vadd.f32 %v172, %v496
    %v498 = vpop.f32.mrb[0].mxu0
    %v499 = vadd.f32 %v176, %v498
    %500 = vmatprep.mubr.bf16.mxu0 0
    %501 = vmatmul.mubr.bf16.gmra.mrb[0].mxu0 %v200
    %v502 = vpop.f32.mrb[0].mxu0
    %v503 = vadd.f32 %v172, %v502
    %v504 = vpop.f32.mrb[0].mxu0
    %v505 = vadd.f32 %v176, %v504
    %v506 = vpop.f32.mrb[0].mxu0
    %v507 = vadd.f32 %v172, %v506
    %v508 = vpop.f32.mrb[0].mxu0
    %v509 = vadd.f32 %v176, %v508
    %510 = vdwg.mxu0
    %v511 = vld [vmem:[#allocation7] sm:$0xff]
    %v512 = vld [vmem:[#allocation7 + $0x8] sm:$0xff]
    %v513 = vld [vmem:[#allocation7 + $0x10] sm:$0xff]
    %v514 = vld [vmem:[#allocation7 + $0x18] sm:$0xff]
    %v515 = vld [vmem:[#allocation7 + $0x20] sm:$0xff]
    %v516 = vld [vmem:[#allocation7 + $0x28] sm:$0xff]
    %v517 = vld [vmem:[#allocation7 + $0x30] sm:$0xff]
    %v518 = vld [vmem:[#allocation7 + $0x38] sm:$0xff]
    %v519 = vld [vmem:[#allocation7 + $0x40] sm:$0xff]
    %v520 = vld [vmem:[#allocation7 + $0x48] sm:$0xff]
    %v521 = vld [vmem:[#allocation7 + $0x50] sm:$0xff]
    %v522 = vld [vmem:[#allocation7 + $0x58] sm:$0xff]
    %v523 = vld [vmem:[#allocation7 + $0x60] sm:$0xff]
    %v524 = vld [vmem:[#allocation7 + $0x68] sm:$0xff]
    %v525 = vld [vmem:[#allocation7 + $0x70] sm:$0xff]
    %v526 = vld [vmem:[#allocation7 + $0x78] sm:$0xff]
    %v527 = vld [vmem:[#allocation7 + $0x80] sm:$0xff]
    %v528 = vld [vmem:[#allocation7 + $0x88] sm:$0xff]
    %v529 = vld [vmem:[#allocation7 + $0x90] sm:$0xff]
    %v530 = vld [vmem:[#allocation7 + $0x98] sm:$0xff]
    %v531 = vld [vmem:[#allocation7 + $0xa0] sm:$0xff]
    %v532 = vld [vmem:[#allocation7 + $0xa8] sm:$0xff]
    %v533 = vld [vmem:[#allocation7 + $0xb0] sm:$0xff]
    %v534 = vld [vmem:[#allocation7 + $0xb8] sm:$0xff]
    %v535 = vld [vmem:[#allocation7 + $0xc0] sm:$0xff]
    %v536 = vld [vmem:[#allocation7 + $0xc8] sm:$0xff]
    %v537 = vld [vmem:[#allocation7 + $0xd0] sm:$0xff]
    %v538 = vld [vmem:[#allocation7 + $0xd8] sm:$0xff]
    %v539 = vld [vmem:[#allocation7 + $0xe0] sm:$0xff]
    %v540 = vld [vmem:[#allocation7 + $0xe8] sm:$0xff]
    %v541 = vld [vmem:[#allocation7 + $0xf0] sm:$0xff]
    %v542 = vld [vmem:[#allocation7 + $0xf8] sm:$0xff]
    %v575 = vunpack.c.l.b16 %v511
    %v576 = vunpack.c.h.b16 %v511
    %v577 = vunpack.c.l.b16 %v512
    %v578 = vunpack.c.h.b16 %v512
    %v579 = vunpack.c.l.b16 %v513
    %v580 = vunpack.c.h.b16 %v513
    %v581 = vunpack.c.l.b16 %v514
    %v582 = vunpack.c.h.b16 %v514
    %v583 = vunpack.c.l.b16 %v515
    %v584 = vunpack.c.h.b16 %v515
    %v585 = vunpack.c.l.b16 %v516
    %v586 = vunpack.c.h.b16 %v516
    %v587 = vunpack.c.l.b16 %v517
    %v588 = vunpack.c.h.b16 %v517
    %v589 = vunpack.c.l.b16 %v518
    %v590 = vunpack.c.h.b16 %v518
    %v591 = vunpack.c.l.b16 %v519
    %v592 = vunpack.c.h.b16 %v519
    %v593 = vunpack.c.l.b16 %v520
    %v594 = vunpack.c.h.b16 %v520
    %v595 = vunpack.c.l.b16 %v521
    %v596 = vunpack.c.h.b16 %v521
    %v597 = vunpack.c.l.b16 %v522
    %v598 = vunpack.c.h.b16 %v522
    %v599 = vunpack.c.l.b16 %v523
    %v600 = vunpack.c.h.b16 %v523
    %v601 = vunpack.c.l.b16 %v524
    %v602 = vunpack.c.h.b16 %v524
    %v603 = vunpack.c.l.b16 %v525
    %v604 = vunpack.c.h.b16 %v525
    %v605 = vunpack.c.l.b16 %v526
    %v606 = vunpack.c.h.b16 %v526
    %v607 = vunpack.c.l.b16 %v527
    %v608 = vunpack.c.h.b16 %v527
    %v609 = vunpack.c.l.b16 %v528
    %v610 = vunpack.c.h.b16 %v528
    %v611 = vunpack.c.l.b16 %v529
    %v612 = vunpack.c.h.b16 %v529
    %v613 = vunpack.c.l.b16 %v530
    %v614 = vunpack.c.h.b16 %v530
    %v615 = vunpack.c.l.b16 %v531
    %v616 = vunpack.c.h.b16 %v531
    %v617 = vunpack.c.l.b16 %v532
    %v618 = vunpack.c.h.b16 %v532
    %v619 = vunpack.c.l.b16 %v533
    %v620 = vunpack.c.h.b16 %v533
    %v621 = vunpack.c.l.b16 %v534
    %v622 = vunpack.c.h.b16 %v534
    %v623 = vunpack.c.l.b16 %v535
    %v624 = vunpack.c.h.b16 %v535
    %v625 = vunpack.c.l.b16 %v536
    %v626 = vunpack.c.h.b16 %v536
    %v627 = vunpack.c.l.b16 %v537
    %v628 = vunpack.c.h.b16 %v537
    %v629 = vunpack.c.l.b16 %v538
    %v630 = vunpack.c.h.b16 %v538
    %v631 = vunpack.c.l.b16 %v539
    %v632 = vunpack.c.h.b16 %v539
    %v633 = vunpack.c.l.b16 %v540
    %v634 = vunpack.c.h.b16 %v540
    %v635 = vunpack.c.l.b16 %v541
    %v636 = vunpack.c.h.b16 %v541
    %v637 = vunpack.c.l.b16 %v542
    %v638 = vunpack.c.h.b16 %v542
    %v639 = vpack.c.b16 %v579, %v575
    %v640 = vpack.c.b16 %v580, %v576
    %v641 = vpack.c.b16 %v581, %v577
    %v642 = vpack.c.b16 %v582, %v578
    %v643 = vpack.c.b16 %v587, %v583
    %v644 = vpack.c.b16 %v588, %v584
    %v645 = vpack.c.b16 %v589, %v585
    %v646 = vpack.c.b16 %v590, %v586
    %v647 = vpack.c.b16 %v595, %v591
    %v648 = vpack.c.b16 %v596, %v592
    %v649 = vpack.c.b16 %v597, %v593
    %v650 = vpack.c.b16 %v598, %v594
    %v651 = vpack.c.b16 %v603, %v599
    %v652 = vpack.c.b16 %v604, %v600
    %v653 = vpack.c.b16 %v605, %v601
    %v654 = vpack.c.b16 %v606, %v602
    %v655 = vpack.c.b16 %v611, %v607
    %v656 = vpack.c.b16 %v612, %v608
    %v657 = vpack.c.b16 %v613, %v609
    %v658 = vpack.c.b16 %v614, %v610
    %v659 = vpack.c.b16 %v619, %v615
    %v660 = vpack.c.b16 %v620, %v616
    %v661 = vpack.c.b16 %v621, %v617
    %v662 = vpack.c.b16 %v622, %v618
    %v663 = vpack.c.b16 %v627, %v623
    %v664 = vpack.c.b16 %v628, %v624
    %v665 = vpack.c.b16 %v629, %v625
    %v666 = vpack.c.b16 %v630, %v626
    %v667 = vpack.c.b16 %v635, %v631
    %v668 = vpack.c.b16 %v636, %v632
    %v669 = vpack.c.b16 %v637, %v633
    %v670 = vpack.c.b16 %v638, %v634
    %703 = vmatprep.subr.bf16.mxu0 %v640
    %704 = vmatpush1.bf16.msra.mxu0 %v639
    %705 = vmatprep.subr.bf16.mxu0 %v644
    %706 = vmatpush1.bf16.msra.mxu0 %v643
    %707 = vmatprep.subr.bf16.mxu0 %v648
    %708 = vmatpush1.bf16.msra.mxu0 %v647
    %709 = vmatprep.subr.bf16.mxu0 %v652
    %710 = vmatpush1.bf16.msra.mxu0 %v651
    %711 = vmatprep.subr.bf16.mxu0 %v656
    %712 = vmatpush1.bf16.msra.mxu0 %v655
    %713 = vmatprep.subr.bf16.mxu0 %v660
    %714 = vmatpush1.bf16.msra.mxu0 %v659
    %715 = vmatprep.subr.bf16.mxu0 %v664
    %716 = vmatpush1.bf16.msra.mxu0 %v663
    %717 = vmatprep.subr.bf16.mxu0 %v668
    %718 = vmatpush1.bf16.msra.mxu0 %v667
    %719 = vmatprep.subr.bf16.mxu0 0
    %720 = vmatpush1.bf16.msra.mxu0 0
    %721 = vmatprep.subr.bf16.mxu0 0
    %722 = vmatpush1.bf16.msra.mxu0 0
    %723 = vmatprep.subr.bf16.mxu0 0
    %724 = vmatpush1.bf16.msra.mxu0 0
    %725 = vmatprep.subr.bf16.mxu0 0
    %726 = vmatpush1.bf16.msra.mxu0 0
    %727 = vmatprep.subr.bf16.mxu0 0
    %728 = vmatpush1.bf16.msra.mxu0 0
    %729 = vmatprep.subr.bf16.mxu0 0
    %730 = vmatpush1.bf16.msra.mxu0 0
    %731 = vmatprep.subr.bf16.mxu0 0
    %732 = vmatpush1.bf16.msra.mxu0 0
    %733 = vmatprep.subr.bf16.mxu0 0
    %734 = vmatpush1.bf16.msra.mxu0 0
    %735 = vmatprep.mubr.bf16.mxu0 0
    %736 = vmatmul.mubr.bf16.gmra.mrb[0].mxu0 0
    %v737 = vpop.f32.mrb[0].mxu0
    %v738 = vadd.f32 0.0, %v737
    %v739 = vpop.f32.mrb[0].mxu0
    %v740 = vadd.f32 0.0, %v739
    %v741 = vpop.f32.mrb[0].mxu0
    %v742 = vpop.f32.mrb[0].mxu0
    %743 = vdwg.mxu0
    %744 = vmatprep.subr.bf16.mxu0 %v642
    %745 = vmatpush1.bf16.msra.mxu0 %v641
    %746 = vmatprep.subr.bf16.mxu0 %v646
    %747 = vmatpush1.bf16.msra.mxu0 %v645
    %748 = vmatprep.subr.bf16.mxu0 %v650
    %749 = vmatpush1.bf16.msra.mxu0 %v649
    %750 = vmatprep.subr.bf16.mxu0 %v654
    %751 = vmatpush1.bf16.msra.mxu0 %v653
    %752 = vmatprep.subr.bf16.mxu0 %v658
    %753 = vmatpush1.bf16.msra.mxu0 %v657
    %754 = vmatprep.subr.bf16.mxu0 %v662
    %755 = vmatpush1.bf16.msra.mxu0 %v661
    %756 = vmatprep.subr.bf16.mxu0 %v666
    %757 = vmatpush1.bf16.msra.mxu0 %v665
    %758 = vmatprep.subr.bf16.mxu0 %v670
    %759 = vmatpush1.bf16.msra.mxu0 %v669
    %760 = vmatprep.subr.bf16.mxu0 0
    %761 = vmatpush1.bf16.msra.mxu0 0
    %762 = vmatprep.subr.bf16.mxu0 0
    %763 = vmatpush1.bf16.msra.mxu0 0
    %764 = vmatprep.subr.bf16.mxu0 0
    %765 = vmatpush1.bf16.msra.mxu0 0
    %766 = vmatprep.subr.bf16.mxu0 0
    %767 = vmatpush1.bf16.msra.mxu0 0
    %768 = vmatprep.subr.bf16.mxu0 0
    %769 = vmatpush1.bf16.msra.mxu0 0
    %770 = vmatprep.subr.bf16.mxu0 0
    %771 = vmatpush1.bf16.msra.mxu0 0
    %772 = vmatprep.subr.bf16.mxu0 0
    %773 = vmatpush1.bf16.msra.mxu0 0
    %774 = vmatprep.subr.bf16.mxu0 0
    %775 = vmatpush1.bf16.msra.mxu0 0
    %776 = vmatprep.mubr.bf16.mxu0 0
    %777 = vmatmul.mubr.bf16.gmra.mrb[0].mxu0 0
    %v778 = vpop.f32.mrb[0].mxu0
    %v779 = vadd.f32 0.0, %v778
    %v780 = vpop.f32.mrb[0].mxu0
    %v781 = vadd.f32 0.0, %v780
    %v782 = vpop.f32.mrb[0].mxu0
    %v783 = vpop.f32.mrb[0].mxu0
    %784 = vdwg.mxu0
    %v785 = vadd.f32 %v400, %v738
    %v786 = vadd.f32 %v402, %v740
    %v787 = vadd.f32 %v473, %v779
    %v788 = vadd.f32 %v475, %v781
    %v789 = vxor.u32 %v785, 2147483648
    %v790 = vmul.f32 %v789, 1.442695
    %v791 = vpow.pop %v790
    %v792 = vadd.f32 %v791, 1.0
    %v793 = vrcp.pop %v792
    %v794 = vmul.f32 1.0, %v793
    %v795 = vxor.u32 %v786, 2147483648
    %v796 = vmul.f32 %v795, 1.442695
    %v797 = vpow.pop %v796
    %v798 = vadd.f32 %v797, 1.0
    %v799 = vrcp.pop %v798
    %v800 = vmul.f32 1.0, %v799
    %v801 = vtanh.pop %v787
    %v802 = vxor.u32 %v788, 2147483648
    %v803 = vmul.f32 %v802, 1.442695
    %v804 = vpow.pop %v803
    %v805 = vadd.f32 %v804, 1.0
    %v806 = vrcp.pop %v805
    %v807 = vmul.f32 1.0, %v806
    %v808 = vmul.f32 %v800, 0.0
    %v809 = vmul.f32 %v794, %v801
    %v810 = vadd.f32 %v808, %v809
    %v811 = vtanh.pop %v810
    %v812 = vmul.f32 %v807, %v811
    %v813 = vpack.c.bf16 %v812, %v812
    %814 = vmatprep.subr.bf16.mxu0 %v640
    %815 = vmatpush1.bf16.msra.mxu0 %v639
    %816 = vmatprep.subr.bf16.mxu0 %v644
    %817 = vmatpush1.bf16.msra.mxu0 %v643
    %818 = vmatprep.subr.bf16.mxu0 %v648
    %819 = vmatpush1.bf16.msra.mxu0 %v647
    %820 = vmatprep.subr.bf16.mxu0 %v652
    %821 = vmatpush1.bf16.msra.mxu0 %v651
    %822 = vmatprep.subr.bf16.mxu0 %v656
    %823 = vmatpush1.bf16.msra.mxu0 %v655
    %824 = vmatprep.subr.bf16.mxu0 %v660
    %825 = vmatpush1.bf16.msra.mxu0 %v659
    %826 = vmatprep.subr.bf16.mxu0 %v664
    %827 = vmatpush1.bf16.msra.mxu0 %v663
    %828 = vmatprep.subr.bf16.mxu0 %v668
    %829 = vmatpush1.bf16.msra.mxu0 %v667
    %830 = vmatprep.subr.bf16.mxu0 0
    %831 = vmatpush1.bf16.msra.mxu0 0
    %832 = vmatprep.subr.bf16.mxu0 0
    %833 = vmatpush1.bf16.msra.mxu0 0
    %834 = vmatprep.subr.bf16.mxu0 0
    %835 = vmatpush1.bf16.msra.mxu0 0
    %836 = vmatprep.subr.bf16.mxu0 0
    %837 = vmatpush1.bf16.msra.mxu0 0
    %838 = vmatprep.subr.bf16.mxu0 0
    %839 = vmatpush1.bf16.msra.mxu0 0
    %840 = vmatprep.subr.bf16.mxu0 0
    %841 = vmatpush1.bf16.msra.mxu0 0
    %842 = vmatprep.subr.bf16.mxu0 0
    %843 = vmatpush1.bf16.msra.mxu0 0
    %844 = vmatprep.subr.bf16.mxu0 0
    %845 = vmatpush1.bf16.msra.mxu0 0
    %846 = vmatprep.mubr.bf16.mxu0 0
    %847 = vmatmul.mubr.bf16.gmra.mrb[0].mxu0 %v813
    %v848 = vpop.f32.mrb[0].mxu0
    %v849 = vadd.f32 0.0, %v848
    %v850 = vpop.f32.mrb[0].mxu0
    %v851 = vadd.f32 0.0, %v850
    %v852 = vpop.f32.mrb[0].mxu0
    %v853 = vpop.f32.mrb[0].mxu0
    %854 = vdwg.mxu0
    %855 = vmatprep.subr.bf16.mxu0 %v642
    %856 = vmatpush1.bf16.msra.mxu0 %v641
    %857 = vmatprep.subr.bf16.mxu0 %v646
    %858 = vmatpush1.bf16.msra.mxu0 %v645
    %859 = vmatprep.subr.bf16.mxu0 %v650
    %860 = vmatpush1.bf16.msra.mxu0 %v649
    %861 = vmatprep.subr.bf16.mxu0 %v654
    %862 = vmatpush1.bf16.msra.mxu0 %v653
    %863 = vmatprep.subr.bf16.mxu0 %v658
    %864 = vmatpush1.bf16.msra.mxu0 %v657
    %865 = vmatprep.subr.bf16.mxu0 %v662
    %866 = vmatpush1.bf16.msra.mxu0 %v661
    %867 = vmatprep.subr.bf16.mxu0 %v666
    %868 = vmatpush1.bf16.msra.mxu0 %v665
    %869 = vmatprep.subr.bf16.mxu0 %v670
    %870 = vmatpush1.bf16.msra.mxu0 %v669
    %871 = vmatprep.subr.bf16.mxu0 0
    %872 = vmatpush1.bf16.msra.mxu0 0
    %873 = vmatprep.subr.bf16.mxu0 0
    %874 = vmatpush1.bf16.msra.mxu0 0
    %875 = vmatprep.subr.bf16.mxu0 0
    %876 = vmatpush1.bf16.msra.mxu0 0
    %877 = vmatprep.subr.bf16.mxu0 0
    %878 = vmatpush1.bf16.msra.mxu0 0
    %879 = vmatprep.subr.bf16.mxu0 0
    %880 = vmatpush1.bf16.msra.mxu0 0
    %881 = vmatprep.subr.bf16.mxu0 0
    %882 = vmatpush1.bf16.msra.mxu0 0
    %883 = vmatprep.subr.bf16.mxu0 0
    %884 = vmatpush1.bf16.msra.mxu0 0
    %885 = vmatprep.subr.bf16.mxu0 0
    %886 = vmatpush1.bf16.msra.mxu0 0
    %887 = vmatprep.mubr.bf16.mxu0 0
    %888 = vmatmul.mubr.bf16.gmra.mrb[0].mxu0 %v813
    %v889 = vpop.f32.mrb[0].mxu0
    %v890 = vadd.f32 0.0, %v889
    %v891 = vpop.f32.mrb[0].mxu0
    %v892 = vadd.f32 0.0, %v891
    %v893 = vpop.f32.mrb[0].mxu0
    %v894 = vpop.f32.mrb[0].mxu0
    %895 = vdwg.mxu0
    %v896 = vadd.f32 %v404, %v849
    %v897 = vadd.f32 %v406, %v851
    %v898 = vadd.f32 %v477, %v890
    %v899 = vadd.f32 %v479, %v892
    %v900 = vxor.u32 %v896, 2147483648
    %v901 = vmul.f32 %v900, 1.442695
    %v902 = vpow.pop %v901
    %v903 = vadd.f32 %v902, 1.0
    %v904 = vrcp.pop %v903
    %v905 = vmul.f32 1.0, %v904
    %v906 = vxor.u32 %v897, 2147483648
    %v907 = vmul.f32 %v906, 1.442695
    %v908 = vpow.pop %v907
    %v909 = vadd.f32 %v908, 1.0
    %v910 = vrcp.pop %v909
    %v911 = vmul.f32 1.0, %v910
    %v912 = vtanh.pop %v898
    %v913 = vxor.u32 %v899, 2147483648
    %v914 = vmul.f32 %v913, 1.442695
    %v915 = vpow.pop %v914
    %v916 = vadd.f32 %v915, 1.0
    %v917 = vrcp.pop %v916
    %v918 = vmul.f32 1.0, %v917
    %v919 = vmul.f32 %v911, %v810
    %v920 = vmul.f32 %v905, %v912
    %v921 = vadd.f32 %v919, %v920
    %v922 = vtanh.pop %v921
    %v923 = vmul.f32 %v918, %v922
    %v924 = vpack.c.bf16 %v923, %v923
    %v925 = vld [vmem:[#allocation8] sm:$0xff]
    %v926 = vld [vmem:[#allocation8 + $0x8] sm:$0xff]
    %v927 = vld [vmem:[#allocation8 + $0x10] sm:$0xff]
    %v928 = vld [vmem:[#allocation8 + $0x18] sm:$0xff]
    %v929 = vld [vmem:[#allocation8 + $0x20] sm:$0xff]
    %v930 = vld [vmem:[#allocation8 + $0x28] sm:$0xff]
    %v931 = vld [vmem:[#allocation8 + $0x30] sm:$0xff]
    %v932 = vld [vmem:[#allocation8 + $0x38] sm:$0xff]
    %v933 = vld [vmem:[#allocation8 + $0x40] sm:$0xff]
    %v934 = vld [vmem:[#allocation8 + $0x48] sm:$0xff]
    %v935 = vld [vmem:[#allocation8 + $0x50] sm:$0xff]
    %v936 = vld [vmem:[#allocation8 + $0x58] sm:$0xff]
    %v937 = vld [vmem:[#allocation8 + $0x60] sm:$0xff]
    %v938 = vld [vmem:[#allocation8 + $0x68] sm:$0xff]
    %v939 = vld [vmem:[#allocation8 + $0x70] sm:$0xff]
    %v940 = vld [vmem:[#allocation8 + $0x78] sm:$0xff]
    %v941 = vld [vmem:[#allocation8 + $0x80] sm:$0xff]
    %v942 = vld [vmem:[#allocation8 + $0x88] sm:$0xff]
    %v943 = vld [vmem:[#allocation8 + $0x90] sm:$0xff]
    %v944 = vld [vmem:[#allocation8 + $0x98] sm:$0xff]
    %v945 = vld [vmem:[#allocation8 + $0xa0] sm:$0xff]
    %v946 = vld [vmem:[#allocation8 + $0xa8] sm:$0xff]
    %v947 = vld [vmem:[#allocation8 + $0xb0] sm:$0xff]
    %v948 = vld [vmem:[#allocation8 + $0xb8] sm:$0xff]
    %v949 = vld [vmem:[#allocation8 + $0xc0] sm:$0xff]
    %v950 = vld [vmem:[#allocation8 + $0xc8] sm:$0xff]
    %v951 = vld [vmem:[#allocation8 + $0xd0] sm:$0xff]
    %v952 = vld [vmem:[#allocation8 + $0xd8] sm:$0xff]
    %v953 = vld [vmem:[#allocation8 + $0xe0] sm:$0xff]
    %v954 = vld [vmem:[#allocation8 + $0xe8] sm:$0xff]
    %v955 = vld [vmem:[#allocation8 + $0xf0] sm:$0xff]
    %v956 = vld [vmem:[#allocation8 + $0xf8] sm:$0xff]
    %v957 = vld [vmem:[#allocation8 + $0x100] sm:$0xff]
    %v958 = vld [vmem:[#allocation8 + $0x108] sm:$0xff]
    %v959 = vld [vmem:[#allocation8 + $0x110] sm:$0xff]
    %v960 = vld [vmem:[#allocation8 + $0x118] sm:$0xff]
    %v961 = vld [vmem:[#allocation8 + $0x120] sm:$0xff]
    %v962 = vld [vmem:[#allocation8 + $0x128] sm:$0xff]
    %v963 = vld [vmem:[#allocation8 + $0x130] sm:$0xff]
    %v964 = vld [vmem:[#allocation8 + $0x138] sm:$0xff]
    %v965 = vld [vmem:[#allocation8 + $0x140] sm:$0xff]
    %v966 = vld [vmem:[#allocation8 + $0x148] sm:$0xff]
    %v967 = vld [vmem:[#allocation8 + $0x150] sm:$0xff]
    %v968 = vld [vmem:[#allocation8 + $0x158] sm:$0xff]
    %v969 = vld [vmem:[#allocation8 + $0x160] sm:$0xff]
    %v970 = vld [vmem:[#allocation8 + $0x168] sm:$0xff]
    %v971 = vld [vmem:[#allocation8 + $0x170] sm:$0xff]
    %v972 = vld [vmem:[#allocation8 + $0x178] sm:$0xff]
    %v973 = vld [vmem:[#allocation8 + $0x180] sm:$0xff]
    %v974 = vld [vmem:[#allocation8 + $0x188] sm:$0xff]
    %v975 = vld [vmem:[#allocation8 + $0x190] sm:$0xff]
    %v976 = vld [vmem:[#allocation8 + $0x198] sm:$0xff]
    %v977 = vld [vmem:[#allocation8 + $0x1a0] sm:$0xff]
    %v978 = vld [vmem:[#allocation8 + $0x1a8] sm:$0xff]
    %v979 = vld [vmem:[#allocation8 + $0x1b0] sm:$0xff]
    %v980 = vld [vmem:[#allocation8 + $0x1b8] sm:$0xff]
    %v981 = vld [vmem:[#allocation8 + $0x1c0] sm:$0xff]
    %v982 = vld [vmem:[#allocation8 + $0x1c8] sm:$0xff]
    %v983 = vld [vmem:[#allocation8 + $0x1d0] sm:$0xff]
    %v984 = vld [vmem:[#allocation8 + $0x1d8] sm:$0xff]
    %v985 = vld [vmem:[#allocation8 + $0x1e0] sm:$0xff]
    %v986 = vld [vmem:[#allocation8 + $0x1e8] sm:$0xff]
    %v987 = vld [vmem:[#allocation8 + $0x1f0] sm:$0xff]
    %v988 = vld [vmem:[#allocation8 + $0x1f8] sm:$0xff]
    %v989 = vld [vmem:[%s5] sm:$0xf]
    %v991 = vlaneseq
    %v992 = vshrl.u32 %v991, 7
    %v993 = vsub.s32 0, %v992
    %v994 = vrot.slane %v989, %v993
    %v995 = vlaneseq
    %v996 = vshrl.u32 %v995, 7
    %v997 = vsub.s32 1, %v996
    %v998 = vrot.slane %v989, %v997
    %v999 = vlaneseq
    %v1000 = vshrl.u32 %v999, 7
    %v1001 = vsub.s32 2, %v1000
    %v1002 = vrot.slane %v989, %v1001
    %v1003 = vlaneseq
    %v1004 = vshrl.u32 %v1003, 7
    %v1005 = vsub.s32 3, %v1004
    %v1006 = vrot.slane %v989, %v1005
    %v1075 = vunpack.c.l.b16 %v925
    %v1076 = vunpack.c.h.b16 %v925
    %v1077 = vunpack.c.l.b16 %v926
    %v1078 = vunpack.c.h.b16 %v926
    %v1079 = vunpack.c.l.b16 %v927
    %v1080 = vunpack.c.h.b16 %v927
    %v1081 = vunpack.c.l.b16 %v928
    %v1082 = vunpack.c.h.b16 %v928
    %v1083 = vunpack.c.l.b16 %v929
    %v1084 = vunpack.c.h.b16 %v929
    %v1085 = vunpack.c.l.b16 %v930
    %v1086 = vunpack.c.h.b16 %v930
    %v1087 = vunpack.c.l.b16 %v931
    %v1088 = vunpack.c.h.b16 %v931
    %v1089 = vunpack.c.l.b16 %v932
    %v1090 = vunpack.c.h.b16 %v932
    %v1091 = vunpack.c.l.b16 %v933
    %v1092 = vunpack.c.h.b16 %v933
    %v1093 = vunpack.c.l.b16 %v934
    %v1094 = vunpack.c.h.b16 %v934
    %v1095 = vunpack.c.l.b16 %v935
    %v1096 = vunpack.c.h.b16 %v935
    %v1097 = vunpack.c.l.b16 %v936
    %v1098 = vunpack.c.h.b16 %v936
    %v1099 = vunpack.c.l.b16 %v937
    %v1100 = vunpack.c.h.b16 %v937
    %v1101 = vunpack.c.l.b16 %v938
    %v1102 = vunpack.c.h.b16 %v938
    %v1103 = vunpack.c.l.b16 %v939
    %v1104 = vunpack.c.h.b16 %v939
    %v1105 = vunpack.c.l.b16 %v940
    %v1106 = vunpack.c.h.b16 %v940
    %v1107 = vunpack.c.l.b16 %v941
    %v1108 = vunpack.c.h.b16 %v941
    %v1109 = vunpack.c.l.b16 %v942
    %v1110 = vunpack.c.h.b16 %v942
    %v1111 = vunpack.c.l.b16 %v943
    %v1112 = vunpack.c.h.b16 %v943
    %v1113 = vunpack.c.l.b16 %v944
    %v1114 = vunpack.c.h.b16 %v944
    %v1115 = vunpack.c.l.b16 %v945
    %v1116 = vunpack.c.h.b16 %v945
    %v1117 = vunpack.c.l.b16 %v946
    %v1118 = vunpack.c.h.b16 %v946
    %v1119 = vunpack.c.l.b16 %v947
    %v1120 = vunpack.c.h.b16 %v947
    %v1121 = vunpack.c.l.b16 %v948
    %v1122 = vunpack.c.h.b16 %v948
    %v1123 = vunpack.c.l.b16 %v949
    %v1124 = vunpack.c.h.b16 %v949
    %v1125 = vunpack.c.l.b16 %v950
    %v1126 = vunpack.c.h.b16 %v950
    %v1127 = vunpack.c.l.b16 %v951
    %v1128 = vunpack.c.h.b16 %v951
    %v1129 = vunpack.c.l.b16 %v952
    %v1130 = vunpack.c.h.b16 %v952
    %v1131 = vunpack.c.l.b16 %v953
    %v1132 = vunpack.c.h.b16 %v953
    %v1133 = vunpack.c.l.b16 %v954
    %v1134 = vunpack.c.h.b16 %v954
    %v1135 = vunpack.c.l.b16 %v955
    %v1136 = vunpack.c.h.b16 %v955
    %v1137 = vunpack.c.l.b16 %v956
    %v1138 = vunpack.c.h.b16 %v956
    %v1139 = vunpack.c.l.b16 %v957
    %v1140 = vunpack.c.h.b16 %v957
    %v1141 = vunpack.c.l.b16 %v958
    %v1142 = vunpack.c.h.b16 %v958
    %v1143 = vunpack.c.l.b16 %v959
    %v1144 = vunpack.c.h.b16 %v959
    %v1145 = vunpack.c.l.b16 %v960
    %v1146 = vunpack.c.h.b16 %v960
    %v1147 = vunpack.c.l.b16 %v961
    %v1148 = vunpack.c.h.b16 %v961
    %v1149 = vunpack.c.l.b16 %v962
    %v1150 = vunpack.c.h.b16 %v962
    %v1151 = vunpack.c.l.b16 %v963
    %v1152 = vunpack.c.h.b16 %v963
    %v1153 = vunpack.c.l.b16 %v964
    %v1154 = vunpack.c.h.b16 %v964
    %v1155 = vunpack.c.l.b16 %v965
    %v1156 = vunpack.c.h.b16 %v965
    %v1157 = vunpack.c.l.b16 %v966
    %v1158 = vunpack.c.h.b16 %v966
    %v1159 = vunpack.c.l.b16 %v967
    %v1160 = vunpack.c.h.b16 %v967
    %v1161 = vunpack.c.l.b16 %v968
    %v1162 = vunpack.c.h.b16 %v968
    %v1163 = vunpack.c.l.b16 %v969
    %v1164 = vunpack.c.h.b16 %v969
    %v1165 = vunpack.c.l.b16 %v970
    %v1166 = vunpack.c.h.b16 %v970
    %v1167 = vunpack.c.l.b16 %v971
    %v1168 = vunpack.c.h.b16 %v971
    %v1169 = vunpack.c.l.b16 %v972
    %v1170 = vunpack.c.h.b16 %v972
    %v1171 = vunpack.c.l.b16 %v973
    %v1172 = vunpack.c.h.b16 %v973
    %v1173 = vunpack.c.l.b16 %v974
    %v1174 = vunpack.c.h.b16 %v974
    %v1175 = vunpack.c.l.b16 %v975
    %v1176 = vunpack.c.h.b16 %v975
    %v1177 = vunpack.c.l.b16 %v976
    %v1178 = vunpack.c.h.b16 %v976
    %v1179 = vunpack.c.l.b16 %v977
    %v1180 = vunpack.c.h.b16 %v977
    %v1181 = vunpack.c.l.b16 %v978
    %v1182 = vunpack.c.h.b16 %v978
    %v1183 = vunpack.c.l.b16 %v979
    %v1184 = vunpack.c.h.b16 %v979
    %v1185 = vunpack.c.l.b16 %v980
    %v1186 = vunpack.c.h.b16 %v980
    %v1187 = vunpack.c.l.b16 %v981
    %v1188 = vunpack.c.h.b16 %v981
    %v1189 = vunpack.c.l.b16 %v982
    %v1190 = vunpack.c.h.b16 %v982
    %v1191 = vunpack.c.l.b16 %v983
    %v1192 = vunpack.c.h.b16 %v983
    %v1193 = vunpack.c.l.b16 %v984
    %v1194 = vunpack.c.h.b16 %v984
    %v1195 = vunpack.c.l.b16 %v985
    %v1196 = vunpack.c.h.b16 %v985
    %v1197 = vunpack.c.l.b16 %v986
    %v1198 = vunpack.c.h.b16 %v986
    %v1199 = vunpack.c.l.b16 %v987
    %v1200 = vunpack.c.h.b16 %v987
    %v1201 = vunpack.c.l.b16 %v988
    %v1202 = vunpack.c.h.b16 %v988
    %v1203 = vpack.c.b16 %v1079, %v1075
    %v1204 = vpack.c.b16 %v1080, %v1076
    %v1205 = vpack.c.b16 %v1081, %v1077
    %v1206 = vpack.c.b16 %v1082, %v1078
    %v1207 = vpack.c.b16 %v1087, %v1083
    %v1208 = vpack.c.b16 %v1088, %v1084
    %v1209 = vpack.c.b16 %v1089, %v1085
    %v1210 = vpack.c.b16 %v1090, %v1086
    %v1211 = vpack.c.b16 %v1095, %v1091
    %v1212 = vpack.c.b16 %v1096, %v1092
    %v1213 = vpack.c.b16 %v1097, %v1093
    %v1214 = vpack.c.b16 %v1098, %v1094
    %v1215 = vpack.c.b16 %v1103, %v1099
    %v1216 = vpack.c.b16 %v1104, %v1100
    %v1217 = vpack.c.b16 %v1105, %v1101
    %v1218 = vpack.c.b16 %v1106, %v1102
    %v1219 = vpack.c.b16 %v1111, %v1107
    %v1220 = vpack.c.b16 %v1112, %v1108
    %v1221 = vpack.c.b16 %v1113, %v1109
    %v1222 = vpack.c.b16 %v1114, %v1110
    %v1223 = vpack.c.b16 %v1119, %v1115
    %v1224 = vpack.c.b16 %v1120, %v1116
    %v1225 = vpack.c.b16 %v1121, %v1117
    %v1226 = vpack.c.b16 %v1122, %v1118
    %v1227 = vpack.c.b16 %v1127, %v1123
    %v1228 = vpack.c.b16 %v1128, %v1124
    %v1229 = vpack.c.b16 %v1129, %v1125
    %v1230 = vpack.c.b16 %v1130, %v1126
    %v1231 = vpack.c.b16 %v1135, %v1131
    %v1232 = vpack.c.b16 %v1136, %v1132
    %v1233 = vpack.c.b16 %v1137, %v1133
    %v1234 = vpack.c.b16 %v1138, %v1134
    %v1235 = vpack.c.b16 %v1143, %v1139
    %v1236 = vpack.c.b16 %v1144, %v1140
    %v1237 = vpack.c.b16 %v1145, %v1141
    %v1238 = vpack.c.b16 %v1146, %v1142
    %v1239 = vpack.c.b16 %v1151, %v1147
    %v1240 = vpack.c.b16 %v1152, %v1148
    %v1241 = vpack.c.b16 %v1153, %v1149
    %v1242 = vpack.c.b16 %v1154, %v1150
    %v1243 = vpack.c.b16 %v1159, %v1155
    %v1244 = vpack.c.b16 %v1160, %v1156
    %v1245 = vpack.c.b16 %v1161, %v1157
    %v1246 = vpack.c.b16 %v1162, %v1158
    %v1247 = vpack.c.b16 %v1167, %v1163
    %v1248 = vpack.c.b16 %v1168, %v1164
    %v1249 = vpack.c.b16 %v1169, %v1165
    %v1250 = vpack.c.b16 %v1170, %v1166
    %v1251 = vpack.c.b16 %v1175, %v1171
    %v1252 = vpack.c.b16 %v1176, %v1172
    %v1253 = vpack.c.b16 %v1177, %v1173
    %v1254 = vpack.c.b16 %v1178, %v1174
    %v1255 = vpack.c.b16 %v1183, %v1179
    %v1256 = vpack.c.b16 %v1184, %v1180
    %v1257 = vpack.c.b16 %v1185, %v1181
    %v1258 = vpack.c.b16 %v1186, %v1182
    %v1259 = vpack.c.b16 %v1191, %v1187
    %v1260 = vpack.c.b16 %v1192, %v1188
    %v1261 = vpack.c.b16 %v1193, %v1189
    %v1262 = vpack.c.b16 %v1194, %v1190
    %v1263 = vpack.c.b16 %v1199, %v1195
    %v1264 = vpack.c.b16 %v1200, %v1196
    %v1265 = vpack.c.b16 %v1201, %v1197
    %v1266 = vpack.c.b16 %v1202, %v1198
    %1331 = vmatprep.subr.bf16.mxu0 %v1204
    %1332 = vmatpush1.bf16.msra.mxu0 %v1203
    %1333 = vmatprep.subr.bf16.mxu0 %v1208
    %1334 = vmatpush1.bf16.msra.mxu0 %v1207
    %1335 = vmatprep.subr.bf16.mxu0 %v1212
    %1336 = vmatpush1.bf16.msra.mxu0 %v1211
    %1337 = vmatprep.subr.bf16.mxu0 %v1216
    %1338 = vmatpush1.bf16.msra.mxu0 %v1215
    %1339 = vmatprep.subr.bf16.mxu0 %v1220
    %1340 = vmatpush1.bf16.msra.mxu0 %v1219
    %1341 = vmatprep.subr.bf16.mxu0 %v1224
    %1342 = vmatpush1.bf16.msra.mxu0 %v1223
    %1343 = vmatprep.subr.bf16.mxu0 %v1228
    %1344 = vmatpush1.bf16.msra.mxu0 %v1227
    %1345 = vmatprep.subr.bf16.mxu0 %v1232
    %1346 = vmatpush1.bf16.msra.mxu0 %v1231
    %1347 = vmatprep.subr.bf16.mxu0 %v1236
    %1348 = vmatpush1.bf16.msra.mxu0 %v1235
    %1349 = vmatprep.subr.bf16.mxu0 %v1240
    %1350 = vmatpush1.bf16.msra.mxu0 %v1239
    %1351 = vmatprep.subr.bf16.mxu0 %v1244
    %1352 = vmatpush1.bf16.msra.mxu0 %v1243
    %1353 = vmatprep.subr.bf16.mxu0 %v1248
    %1354 = vmatpush1.bf16.msra.mxu0 %v1247
    %1355 = vmatprep.subr.bf16.mxu0 %v1252
    %1356 = vmatpush1.bf16.msra.mxu0 %v1251
    %1357 = vmatprep.subr.bf16.mxu0 %v1256
    %1358 = vmatpush1.bf16.msra.mxu0 %v1255
    %1359 = vmatprep.subr.bf16.mxu0 %v1260
    %1360 = vmatpush1.bf16.msra.mxu0 %v1259
    %1361 = vmatprep.subr.bf16.mxu0 %v1264
    %1362 = vmatpush1.bf16.msra.mxu0 %v1263
    %1363 = vmatprep.mubr.bf16.mxu0 %v813
    %1364 = vmatmul.mubr.bf16.gmra.mrb[0].mxu0 0
    %v1365 = vpop.f32.mrb[0].mxu0
    %v1366 = vadd.f32 %v994, %v1365
    %v1367 = vpop.f32.mrb[0].mxu0
    %v1368 = vadd.f32 %v998, %v1367
    %v1369 = vpop.f32.mrb[0].mxu0
    %v1370 = vpop.f32.mrb[0].mxu0
    %1371 = vdwg.mxu0
    %1372 = vmatprep.subr.bf16.mxu0 %v1206
    %1373 = vmatpush1.bf16.msra.mxu0 %v1205
    %1374 = vmatprep.subr.bf16.mxu0 %v1210
    %1375 = vmatpush1.bf16.msra.mxu0 %v1209
    %1376 = vmatprep.subr.bf16.mxu0 %v1214
    %1377 = vmatpush1.bf16.msra.mxu0 %v1213
    %1378 = vmatprep.subr.bf16.mxu0 %v1218
    %1379 = vmatpush1.bf16.msra.mxu0 %v1217
    %1380 = vmatprep.subr.bf16.mxu0 %v1222
    %1381 = vmatpush1.bf16.msra.mxu0 %v1221
    %1382 = vmatprep.subr.bf16.mxu0 %v1226
    %1383 = vmatpush1.bf16.msra.mxu0 %v1225
    %1384 = vmatprep.subr.bf16.mxu0 %v1230
    %1385 = vmatpush1.bf16.msra.mxu0 %v1229
    %1386 = vmatprep.subr.bf16.mxu0 %v1234
    %1387 = vmatpush1.bf16.msra.mxu0 %v1233
    %1388 = vmatprep.subr.bf16.mxu0 %v1238
    %1389 = vmatpush1.bf16.msra.mxu0 %v1237
    %1390 = vmatprep.subr.bf16.mxu0 %v1242
    %1391 = vmatpush1.bf16.msra.mxu0 %v1241
    %1392 = vmatprep.subr.bf16.mxu0 %v1246
    %1393 = vmatpush1.bf16.msra.mxu0 %v1245
    %1394 = vmatprep.subr.bf16.mxu0 %v1250
    %1395 = vmatpush1.bf16.msra.mxu0 %v1249
    %1396 = vmatprep.subr.bf16.mxu0 %v1254
    %1397 = vmatpush1.bf16.msra.mxu0 %v1253
    %1398 = vmatprep.subr.bf16.mxu0 %v1258
    %1399 = vmatpush1.bf16.msra.mxu0 %v1257
    %1400 = vmatprep.subr.bf16.mxu0 %v1262
    %1401 = vmatpush1.bf16.msra.mxu0 %v1261
    %1402 = vmatprep.subr.bf16.mxu0 %v1266
    %1403 = vmatpush1.bf16.msra.mxu0 %v1265
    %1404 = vmatprep.mubr.bf16.mxu0 %v813
    %1405 = vmatmul.mubr.bf16.gmra.mrb[0].mxu0 0
    %v1406 = vpop.f32.mrb[0].mxu0
    %v1407 = vadd.f32 %v1002, %v1406
    %v1408 = vpop.f32.mrb[0].mxu0
    %v1409 = vadd.f32 %v1006, %v1408
    %v1410 = vpop.f32.mrb[0].mxu0
    %v1411 = vpop.f32.mrb[0].mxu0
    %1412 = vdwg.mxu0
    %v1413 = vxor.u32 %v1366, 2147483648
    %v1414 = vmul.f32 %v1413, 1.442695
    %v1415 = vpow.pop %v1414
    %v1416 = vadd.f32 %v1415, 1.0
    %v1417 = vrcp.pop %v1416
    %v1418 = vmul.f32 1.0, %v1417
    %v1419 = vxor.u32 %v1368, 2147483648
    %v1420 = vmul.f32 %v1419, 1.442695
    %v1421 = vpow.pop %v1420
    %v1422 = vadd.f32 %v1421, 1.0
    %v1423 = vrcp.pop %v1422
    %v1424 = vmul.f32 1.0, %v1423
    %v1425 = vtanh.pop %v1407
    %v1426 = vxor.u32 %v1409, 2147483648
    %v1427 = vmul.f32 %v1426, 1.442695
    %v1428 = vpow.pop %v1427
    %v1429 = vadd.f32 %v1428, 1.0
    %v1430 = vrcp.pop %v1429
    %v1431 = vmul.f32 1.0, %v1430
    %v1432 = vmul.f32 %v1424, 0.0
    %v1433 = vmul.f32 %v1418, %v1425
    %v1434 = vadd.f32 %v1432, %v1433
    %v1435 = vtanh.pop %v1434
    %v1436 = vmul.f32 %v1431, %v1435
    %v1437 = vpack.c.bf16 %v1436, %v1436
    %1438 = vmatprep.subr.bf16.mxu0 %v640
    %1439 = vmatpush1.bf16.msra.mxu0 %v639
    %1440 = vmatprep.subr.bf16.mxu0 %v644
    %1441 = vmatpush1.bf16.msra.mxu0 %v643
    %1442 = vmatprep.subr.bf16.mxu0 %v648
    %1443 = vmatpush1.bf16.msra.mxu0 %v647
    %1444 = vmatprep.subr.bf16.mxu0 %v652
    %1445 = vmatpush1.bf16.msra.mxu0 %v651
    %1446 = vmatprep.subr.bf16.mxu0 %v656
    %1447 = vmatpush1.bf16.msra.mxu0 %v655
    %1448 = vmatprep.subr.bf16.mxu0 %v660
    %1449 = vmatpush1.bf16.msra.mxu0 %v659
    %1450 = vmatprep.subr.bf16.mxu0 %v664
    %1451 = vmatpush1.bf16.msra.mxu0 %v663
    %1452 = vmatprep.subr.bf16.mxu0 %v668
    %1453 = vmatpush1.bf16.msra.mxu0 %v667
    %1454 = vmatprep.subr.bf16.mxu0 0
    %1455 = vmatpush1.bf16.msra.mxu0 0
    %1456 = vmatprep.subr.bf16.mxu0 0
    %1457 = vmatpush1.bf16.msra.mxu0 0
    %1458 = vmatprep.subr.bf16.mxu0 0
    %1459 = vmatpush1.bf16.msra.mxu0 0
    %1460 = vmatprep.subr.bf16.mxu0 0
    %1461 = vmatpush1.bf16.msra.mxu0 0
    %1462 = vmatprep.subr.bf16.mxu0 0
    %1463 = vmatpush1.bf16.msra.mxu0 0
    %1464 = vmatprep.subr.bf16.mxu0 0
    %1465 = vmatpush1.bf16.msra.mxu0 0
    %1466 = vmatprep.subr.bf16.mxu0 0
    %1467 = vmatpush1.bf16.msra.mxu0 0
    %1468 = vmatprep.subr.bf16.mxu0 0
    %1469 = vmatpush1.bf16.msra.mxu0 0
    %1470 = vmatprep.mubr.bf16.mxu0 0
    %1471 = vmatmul.mubr.bf16.gmra.mrb[0].mxu0 %v924
    %v1472 = vpop.f32.mrb[0].mxu0
    %v1473 = vadd.f32 0.0, %v1472
    %v1474 = vpop.f32.mrb[0].mxu0
    %v1475 = vadd.f32 0.0, %v1474
    %v1476 = vpop.f32.mrb[0].mxu0
    %v1477 = vpop.f32.mrb[0].mxu0
    %1478 = vdwg.mxu0
    %1479 = vmatprep.subr.bf16.mxu0 %v642
    %1480 = vmatpush1.bf16.msra.mxu0 %v641
    %1481 = vmatprep.subr.bf16.mxu0 %v646
    %1482 = vmatpush1.bf16.msra.mxu0 %v645
    %1483 = vmatprep.subr.bf16.mxu0 %v650
    %1484 = vmatpush1.bf16.msra.mxu0 %v649
    %1485 = vmatprep.subr.bf16.mxu0 %v654
    %1486 = vmatpush1.bf16.msra.mxu0 %v653
    %1487 = vmatprep.subr.bf16.mxu0 %v658
    %1488 = vmatpush1.bf16.msra.mxu0 %v657
    %1489 = vmatprep.subr.bf16.mxu0 %v662
    %1490 = vmatpush1.bf16.msra.mxu0 %v661
    %1491 = vmatprep.subr.bf16.mxu0 %v666
    %1492 = vmatpush1.bf16.msra.mxu0 %v665
    %1493 = vmatprep.subr.bf16.mxu0 %v670
    %1494 = vmatpush1.bf16.msra.mxu0 %v669
    %1495 = vmatprep.subr.bf16.mxu0 0
    %1496 = vmatpush1.bf16.msra.mxu0 0
    %1497 = vmatprep.subr.bf16.mxu0 0
    %1498 = vmatpush1.bf16.msra.mxu0 0
    %1499 = vmatprep.subr.bf16.mxu0 0
    %1500 = vmatpush1.bf16.msra.mxu0 0
    %1501 = vmatprep.subr.bf16.mxu0 0
    %1502 = vmatpush1.bf16.msra.mxu0 0
    %1503 = vmatprep.subr.bf16.mxu0 0
    %1504 = vmatpush1.bf16.msra.mxu0 0
    %1505 = vmatprep.subr.bf16.mxu0 0
    %1506 = vmatpush1.bf16.msra.mxu0 0
    %1507 = vmatprep.subr.bf16.mxu0 0
    %1508 = vmatpush1.bf16.msra.mxu0 0
    %1509 = vmatprep.subr.bf16.mxu0 0
    %1510 = vmatpush1.bf16.msra.mxu0 0
    %1511 = vmatprep.mubr.bf16.mxu0 0
    %1512 = vmatmul.mubr.bf16.gmra.mrb[0].mxu0 %v924
    %v1513 = vpop.f32.mrb[0].mxu0
    %v1514 = vadd.f32 0.0, %v1513
    %v1515 = vpop.f32.mrb[0].mxu0
    %v1516 = vadd.f32 0.0, %v1515
    %v1517 = vpop.f32.mrb[0].mxu0
    %v1518 = vpop.f32.mrb[0].mxu0
    %1519 = vdwg.mxu0
    %v1520 = vadd.f32 %v410, %v1473
    %v1521 = vadd.f32 %v412, %v1475
    %v1522 = vadd.f32 %v483, %v1514
    %v1523 = vadd.f32 %v485, %v1516
    %v1524 = vxor.u32 %v1520, 2147483648
    %v1525 = vmul.f32 %v1524, 1.442695
    %v1526 = vpow.pop %v1525
    %v1527 = vadd.f32 %v1526, 1.0
    %v1528 = vrcp.pop %v1527
    %v1529 = vmul.f32 1.0, %v1528
    %v1530 = vxor.u32 %v1521, 2147483648
    %v1531 = vmul.f32 %v1530, 1.442695
    %v1532 = vpow.pop %v1531
    %v1533 = vadd.f32 %v1532, 1.0
    %v1534 = vrcp.pop %v1533
    %v1535 = vmul.f32 1.0, %v1534
    %v1536 = vtanh.pop %v1522
    %v1537 = vxor.u32 %v1523, 2147483648
    %v1538 = vmul.f32 %v1537, 1.442695
    %v1539 = vpow.pop %v1538
    %v1540 = vadd.f32 %v1539, 1.0
    %v1541 = vrcp.pop %v1540
    %v1542 = vmul.f32 1.0, %v1541
    %v1543 = vmul.f32 %v1535, %v921
    %v1544 = vmul.f32 %v1529, %v1536
    %v1545 = vadd.f32 %v1543, %v1544
    %v1546 = vtanh.pop %v1545
    %v1547 = vmul.f32 %v1542, %v1546
    %v1548 = vpack.c.bf16 %v1547, %v1547
    %1549 = vmatprep.subr.bf16.mxu0 %v1204
    %1550 = vmatpush1.bf16.msra.mxu0 %v1203
    %1551 = vmatprep.subr.bf16.mxu0 %v1208
    %1552 = vmatpush1.bf16.msra.mxu0 %v1207
    %1553 = vmatprep.subr.bf16.mxu0 %v1212
    %1554 = vmatpush1.bf16.msra.mxu0 %v1211
    %1555 = vmatprep.subr.bf16.mxu0 %v1216
    %1556 = vmatpush1.bf16.msra.mxu0 %v1215
    %1557 = vmatprep.subr.bf16.mxu0 %v1220
    %1558 = vmatpush1.bf16.msra.mxu0 %v1219
    %1559 = vmatprep.subr.bf16.mxu0 %v1224
    %1560 = vmatpush1.bf16.msra.mxu0 %v1223
    %1561 = vmatprep.subr.bf16.mxu0 %v1228
    %1562 = vmatpush1.bf16.msra.mxu0 %v1227
    %1563 = vmatprep.subr.bf16.mxu0 %v1232
    %1564 = vmatpush1.bf16.msra.mxu0 %v1231
    %1565 = vmatprep.subr.bf16.mxu0 %v1236
    %1566 = vmatpush1.bf16.msra.mxu0 %v1235
    %1567 = vmatprep.subr.bf16.mxu0 %v1240
    %1568 = vmatpush1.bf16.msra.mxu0 %v1239
    %1569 = vmatprep.subr.bf16.mxu0 %v1244
    %1570 = vmatpush1.bf16.msra.mxu0 %v1243
    %1571 = vmatprep.subr.bf16.mxu0 %v1248
    %1572 = vmatpush1.bf16.msra.mxu0 %v1247
    %1573 = vmatprep.subr.bf16.mxu0 %v1252
    %1574 = vmatpush1.bf16.msra.mxu0 %v1251
    %1575 = vmatprep.subr.bf16.mxu0 %v1256
    %1576 = vmatpush1.bf16.msra.mxu0 %v1255
    %1577 = vmatprep.subr.bf16.mxu0 %v1260
    %1578 = vmatpush1.bf16.msra.mxu0 %v1259
    %1579 = vmatprep.subr.bf16.mxu0 %v1264
    %1580 = vmatpush1.bf16.msra.mxu0 %v1263
    %1581 = vmatprep.mubr.bf16.mxu0 %v924
    %1582 = vmatmul.mubr.bf16.gmra.mrb[0].mxu0 %v1437
    %v1583 = vpop.f32.mrb[0].mxu0
    %v1584 = vadd.f32 %v994, %v1583
    %v1585 = vpop.f32.mrb[0].mxu0
    %v1586 = vadd.f32 %v998, %v1585
    %v1587 = vpop.f32.mrb[0].mxu0
    %v1588 = vpop.f32.mrb[0].mxu0
    %1589 = vdwg.mxu0
    %1590 = vmatprep.subr.bf16.mxu0 %v1206
    %1591 = vmatpush1.bf16.msra.mxu0 %v1205
    %1592 = vmatprep.subr.bf16.mxu0 %v1210
    %1593 = vmatpush1.bf16.msra.mxu0 %v1209
    %1594 = vmatprep.subr.bf16.mxu0 %v1214
    %1595 = vmatpush1.bf16.msra.mxu0 %v1213
    %1596 = vmatprep.subr.bf16.mxu0 %v1218
    %1597 = vmatpush1.bf16.msra.mxu0 %v1217
    %1598 = vmatprep.subr.bf16.mxu0 %v1222
    %1599 = vmatpush1.bf16.msra.mxu0 %v1221
    %1600 = vmatprep.subr.bf16.mxu0 %v1226
    %1601 = vmatpush1.bf16.msra.mxu0 %v1225
    %1602 = vmatprep.subr.bf16.mxu0 %v1230
    %1603 = vmatpush1.bf16.msra.mxu0 %v1229
    %1604 = vmatprep.subr.bf16.mxu0 %v1234
    %1605 = vmatpush1.bf16.msra.mxu0 %v1233
    %1606 = vmatprep.subr.bf16.mxu0 %v1238
    %1607 = vmatpush1.bf16.msra.mxu0 %v1237
    %1608 = vmatprep.subr.bf16.mxu0 %v1242
    %1609 = vmatpush1.bf16.msra.mxu0 %v1241
    %1610 = vmatprep.subr.bf16.mxu0 %v1246
    %1611 = vmatpush1.bf16.msra.mxu0 %v1245
    %1612 = vmatprep.subr.bf16.mxu0 %v1250
    %1613 = vmatpush1.bf16.msra.mxu0 %v1249
    %1614 = vmatprep.subr.bf16.mxu0 %v1254
    %1615 = vmatpush1.bf16.msra.mxu0 %v1253
    %1616 = vmatprep.subr.bf16.mxu0 %v1258
    %1617 = vmatpush1.bf16.msra.mxu0 %v1257
    %1618 = vmatprep.subr.bf16.mxu0 %v1262
    %1619 = vmatpush1.bf16.msra.mxu0 %v1261
    %1620 = vmatprep.subr.bf16.mxu0 %v1266
    %1621 = vmatpush1.bf16.msra.mxu0 %v1265
    %1622 = vmatprep.mubr.bf16.mxu0 %v924
    %1623 = vmatmul.mubr.bf16.gmra.mrb[0].mxu0 %v1437
    %v1624 = vpop.f32.mrb[0].mxu0
    %v1625 = vadd.f32 %v1002, %v1624
    %v1626 = vpop.f32.mrb[0].mxu0
    %v1627 = vadd.f32 %v1006, %v1626
    %v1628 = vpop.f32.mrb[0].mxu0
    %v1629 = vpop.f32.mrb[0].mxu0
    %1630 = vdwg.mxu0
    %v1631 = vxor.u32 %v1584, 2147483648
    %v1632 = vmul.f32 %v1631, 1.442695
    %v1633 = vpow.pop %v1632
    %v1634 = vadd.f32 %v1633, 1.0
    %v1635 = vrcp.pop %v1634
    %v1636 = vmul.f32 1.0, %v1635
    %v1637 = vxor.u32 %v1586, 2147483648
    %v1638 = vmul.f32 %v1637, 1.442695
    %v1639 = vpow.pop %v1638
    %v1640 = vadd.f32 %v1639, 1.0
    %v1641 = vrcp.pop %v1640
    %v1642 = vmul.f32 1.0, %v1641
    %v1643 = vtanh.pop %v1625
    %v1644 = vxor.u32 %v1627, 2147483648
    %v1645 = vmul.f32 %v1644, 1.442695
    %v1646 = vpow.pop %v1645
    %v1647 = vadd.f32 %v1646, 1.0
    %v1648 = vrcp.pop %v1647
    %v1649 = vmul.f32 1.0, %v1648
    %v1650 = vmul.f32 %v1642, %v1434
    %v1651 = vmul.f32 %v1636, %v1643
    %v1652 = vadd.f32 %v1650, %v1651
    %v1653 = vtanh.pop %v1652
    %v1654 = vmul.f32 %v1649, %v1653
    %v1655 = vpack.c.bf16 %v1654, %v1654
    %v1656 = vld [vmem:[#allocation10] sm:$0xff]
    %v1657 = vld [vmem:[#allocation10 + $0x8] sm:$0xff]
    %v1658 = vld [vmem:[#allocation10 + $0x10] sm:$0xff]
    %v1659 = vld [vmem:[#allocation10 + $0x18] sm:$0xff]
    %v1660 = vld [vmem:[#allocation10 + $0x20] sm:$0xff]
    %v1661 = vld [vmem:[#allocation10 + $0x28] sm:$0xff]
    %v1662 = vld [vmem:[#allocation10 + $0x30] sm:$0xff]
    %v1663 = vld [vmem:[#allocation10 + $0x38] sm:$0xff]
    %v1664 = vld [vmem:[#allocation10 + $0x40] sm:$0xff]
    %v1665 = vld [vmem:[#allocation10 + $0x48] sm:$0xff]
    %v1666 = vld [vmem:[#allocation10 + $0x50] sm:$0xff]
    %v1667 = vld [vmem:[#allocation10 + $0x58] sm:$0xff]
    %v1668 = vld [vmem:[#allocation10 + $0x60] sm:$0xff]
    %v1669 = vld [vmem:[#allocation10 + $0x68] sm:$0xff]
    %v1670 = vld [vmem:[#allocation10 + $0x70] sm:$0xff]
    %v1671 = vld [vmem:[#allocation10 + $0x78] sm:$0xff]
    %v1672 = vld [vmem:[#allocation10 + $0x80] sm:$0xff]
    %v1673 = vld [vmem:[#allocation10 + $0x88] sm:$0xff]
    %v1674 = vld [vmem:[#allocation10 + $0x90] sm:$0xff]
    %v1675 = vld [vmem:[#allocation10 + $0x98] sm:$0xff]
    %v1676 = vld [vmem:[#allocation10 + $0xa0] sm:$0xff]
    %v1677 = vld [vmem:[#allocation10 + $0xa8] sm:$0xff]
    %v1678 = vld [vmem:[#allocation10 + $0xb0] sm:$0xff]
    %v1679 = vld [vmem:[#allocation10 + $0xb8] sm:$0xff]
    %v1680 = vld [vmem:[#allocation10 + $0xc0] sm:$0xff]
    %v1681 = vld [vmem:[#allocation10 + $0xc8] sm:$0xff]
    %v1682 = vld [vmem:[#allocation10 + $0xd0] sm:$0xff]
    %v1683 = vld [vmem:[#allocation10 + $0xd8] sm:$0xff]
    %v1684 = vld [vmem:[#allocation10 + $0xe0] sm:$0xff]
    %v1685 = vld [vmem:[#allocation10 + $0xe8] sm:$0xff]
    %v1686 = vld [vmem:[#allocation10 + $0xf0] sm:$0xff]
    %v1687 = vld [vmem:[#allocation10 + $0xf8] sm:$0xff]
    %v1688 = vld [vmem:[#allocation10 + $0x100] sm:$0xff]
    %v1689 = vld [vmem:[#allocation10 + $0x108] sm:$0xff]
    %v1690 = vld [vmem:[#allocation10 + $0x110] sm:$0xff]
    %v1691 = vld [vmem:[#allocation10 + $0x118] sm:$0xff]
    %v1692 = vld [vmem:[#allocation10 + $0x120] sm:$0xff]
    %v1693 = vld [vmem:[#allocation10 + $0x128] sm:$0xff]
    %v1694 = vld [vmem:[#allocation10 + $0x130] sm:$0xff]
    %v1695 = vld [vmem:[#allocation10 + $0x138] sm:$0xff]
    %v1696 = vld [vmem:[#allocation10 + $0x140] sm:$0xff]
    %v1697 = vld [vmem:[#allocation10 + $0x148] sm:$0xff]
    %v1698 = vld [vmem:[#allocation10 + $0x150] sm:$0xff]
    %v1699 = vld [vmem:[#allocation10 + $0x158] sm:$0xff]
    %v1700 = vld [vmem:[#allocation10 + $0x160] sm:$0xff]
    %v1701 = vld [vmem:[#allocation10 + $0x168] sm:$0xff]
    %v1702 = vld [vmem:[#allocation10 + $0x170] sm:$0xff]
    %v1703 = vld [vmem:[#allocation10 + $0x178] sm:$0xff]
    %v1704 = vld [vmem:[#allocation10 + $0x180] sm:$0xff]
    %v1705 = vld [vmem:[#allocation10 + $0x188] sm:$0xff]
    %v1706 = vld [vmem:[#allocation10 + $0x190] sm:$0xff]
    %v1707 = vld [vmem:[#allocation10 + $0x198] sm:$0xff]
    %v1708 = vld [vmem:[#allocation10 + $0x1a0] sm:$0xff]
    %v1709 = vld [vmem:[#allocation10 + $0x1a8] sm:$0xff]
    %v1710 = vld [vmem:[#allocation10 + $0x1b0] sm:$0xff]
    %v1711 = vld [vmem:[#allocation10 + $0x1b8] sm:$0xff]
    %v1712 = vld [vmem:[#allocation10 + $0x1c0] sm:$0xff]
    %v1713 = vld [vmem:[#allocation10 + $0x1c8] sm:$0xff]
    %v1714 = vld [vmem:[#allocation10 + $0x1d0] sm:$0xff]
    %v1715 = vld [vmem:[#allocation10 + $0x1d8] sm:$0xff]
    %v1716 = vld [vmem:[#allocation10 + $0x1e0] sm:$0xff]
    %v1717 = vld [vmem:[#allocation10 + $0x1e8] sm:$0xff]
    %v1718 = vld [vmem:[#allocation10 + $0x1f0] sm:$0xff]
    %v1719 = vld [vmem:[#allocation10 + $0x1f8] sm:$0xff]
    %v1720 = vld [vmem:[%s7] sm:$0xf]
    %v1722 = vlaneseq
    %v1723 = vshrl.u32 %v1722, 7
    %v1724 = vsub.s32 0, %v1723
    %v1725 = vrot.slane %v1720, %v1724
    %v1726 = vlaneseq
    %v1727 = vshrl.u32 %v1726, 7
    %v1728 = vsub.s32 1, %v1727
    %v1729 = vrot.slane %v1720, %v1728
    %v1730 = vlaneseq
    %v1731 = vshrl.u32 %v1730, 7
    %v1732 = vsub.s32 2, %v1731
    %v1733 = vrot.slane %v1720, %v1732
    %v1734 = vlaneseq
    %v1735 = vshrl.u32 %v1734, 7
    %v1736 = vsub.s32 3, %v1735
    %v1737 = vrot.slane %v1720, %v1736
    %v1806 = vunpack.c.l.b16 %v1656
    %v1807 = vunpack.c.h.b16 %v1656
    %v1808 = vunpack.c.l.b16 %v1657
    %v1809 = vunpack.c.h.b16 %v1657
    %v1810 = vunpack.c.l.b16 %v1658
    %v1811 = vunpack.c.h.b16 %v1658
    %v1812 = vunpack.c.l.b16 %v1659
    %v1813 = vunpack.c.h.b16 %v1659
    %v1814 = vunpack.c.l.b16 %v1660
    %v1815 = vunpack.c.h.b16 %v1660
    %v1816 = vunpack.c.l.b16 %v1661
    %v1817 = vunpack.c.h.b16 %v1661
    %v1818 = vunpack.c.l.b16 %v1662
    %v1819 = vunpack.c.h.b16 %v1662
    %v1820 = vunpack.c.l.b16 %v1663
    %v1821 = vunpack.c.h.b16 %v1663
    %v1822 = vunpack.c.l.b16 %v1664
    %v1823 = vunpack.c.h.b16 %v1664
    %v1824 = vunpack.c.l.b16 %v1665
    %v1825 = vunpack.c.h.b16 %v1665
    %v1826 = vunpack.c.l.b16 %v1666
    %v1827 = vunpack.c.h.b16 %v1666
    %v1828 = vunpack.c.l.b16 %v1667
    %v1829 = vunpack.c.h.b16 %v1667
    %v1830 = vunpack.c.l.b16 %v1668
    %v1831 = vunpack.c.h.b16 %v1668
    %v1832 = vunpack.c.l.b16 %v1669
    %v1833 = vunpack.c.h.b16 %v1669
    %v1834 = vunpack.c.l.b16 %v1670
    %v1835 = vunpack.c.h.b16 %v1670
    %v1836 = vunpack.c.l.b16 %v1671
    %v1837 = vunpack.c.h.b16 %v1671
    %v1838 = vunpack.c.l.b16 %v1672
    %v1839 = vunpack.c.h.b16 %v1672
    %v1840 = vunpack.c.l.b16 %v1673
    %v1841 = vunpack.c.h.b16 %v1673
    %v1842 = vunpack.c.l.b16 %v1674
    %v1843 = vunpack.c.h.b16 %v1674
    %v1844 = vunpack.c.l.b16 %v1675
    %v1845 = vunpack.c.h.b16 %v1675
    %v1846 = vunpack.c.l.b16 %v1676
    %v1847 = vunpack.c.h.b16 %v1676
    %v1848 = vunpack.c.l.b16 %v1677
    %v1849 = vunpack.c.h.b16 %v1677
    %v1850 = vunpack.c.l.b16 %v1678
    %v1851 = vunpack.c.h.b16 %v1678
    %v1852 = vunpack.c.l.b16 %v1679
    %v1853 = vunpack.c.h.b16 %v1679
    %v1854 = vunpack.c.l.b16 %v1680
    %v1855 = vunpack.c.h.b16 %v1680
    %v1856 = vunpack.c.l.b16 %v1681
    %v1857 = vunpack.c.h.b16 %v1681
    %v1858 = vunpack.c.l.b16 %v1682
    %v1859 = vunpack.c.h.b16 %v1682
    %v1860 = vunpack.c.l.b16 %v1683
    %v1861 = vunpack.c.h.b16 %v1683
    %v1862 = vunpack.c.l.b16 %v1684
    %v1863 = vunpack.c.h.b16 %v1684
    %v1864 = vunpack.c.l.b16 %v1685
    %v1865 = vunpack.c.h.b16 %v1685
    %v1866 = vunpack.c.l.b16 %v1686
    %v1867 = vunpack.c.h.b16 %v1686
    %v1868 = vunpack.c.l.b16 %v1687
    %v1869 = vunpack.c.h.b16 %v1687
    %v1870 = vunpack.c.l.b16 %v1688
    %v1871 = vunpack.c.h.b16 %v1688
    %v1872 = vunpack.c.l.b16 %v1689
    %v1873 = vunpack.c.h.b16 %v1689
    %v1874 = vunpack.c.l.b16 %v1690
    %v1875 = vunpack.c.h.b16 %v1690
    %v1876 = vunpack.c.l.b16 %v1691
    %v1877 = vunpack.c.h.b16 %v1691
    %v1878 = vunpack.c.l.b16 %v1692
    %v1879 = vunpack.c.h.b16 %v1692
    %v1880 = vunpack.c.l.b16 %v1693
    %v1881 = vunpack.c.h.b16 %v1693
    %v1882 = vunpack.c.l.b16 %v1694
    %v1883 = vunpack.c.h.b16 %v1694
    %v1884 = vunpack.c.l.b16 %v1695
    %v1885 = vunpack.c.h.b16 %v1695
    %v1886 = vunpack.c.l.b16 %v1696
    %v1887 = vunpack.c.h.b16 %v1696
    %v1888 = vunpack.c.l.b16 %v1697
    %v1889 = vunpack.c.h.b16 %v1697
    %v1890 = vunpack.c.l.b16 %v1698
    %v1891 = vunpack.c.h.b16 %v1698
    %v1892 = vunpack.c.l.b16 %v1699
    %v1893 = vunpack.c.h.b16 %v1699
    %v1894 = vunpack.c.l.b16 %v1700
    %v1895 = vunpack.c.h.b16 %v1700
    %v1896 = vunpack.c.l.b16 %v1701
    %v1897 = vunpack.c.h.b16 %v1701
    %v1898 = vunpack.c.l.b16 %v1702
    %v1899 = vunpack.c.h.b16 %v1702
    %v1900 = vunpack.c.l.b16 %v1703
    %v1901 = vunpack.c.h.b16 %v1703
    %v1902 = vunpack.c.l.b16 %v1704
    %v1903 = vunpack.c.h.b16 %v1704
    %v1904 = vunpack.c.l.b16 %v1705
    %v1905 = vunpack.c.h.b16 %v1705
    %v1906 = vunpack.c.l.b16 %v1706
    %v1907 = vunpack.c.h.b16 %v1706
    %v1908 = vunpack.c.l.b16 %v1707
    %v1909 = vunpack.c.h.b16 %v1707
    %v1910 = vunpack.c.l.b16 %v1708
    %v1911 = vunpack.c.h.b16 %v1708
    %v1912 = vunpack.c.l.b16 %v1709
    %v1913 = vunpack.c.h.b16 %v1709
    %v1914 = vunpack.c.l.b16 %v1710
    %v1915 = vunpack.c.h.b16 %v1710
    %v1916 = vunpack.c.l.b16 %v1711
    %v1917 = vunpack.c.h.b16 %v1711
    %v1918 = vunpack.c.l.b16 %v1712
    %v1919 = vunpack.c.h.b16 %v1712
    %v1920 = vunpack.c.l.b16 %v1713
    %v1921 = vunpack.c.h.b16 %v1713
    %v1922 = vunpack.c.l.b16 %v1714
    %v1923 = vunpack.c.h.b16 %v1714
    %v1924 = vunpack.c.l.b16 %v1715
    %v1925 = vunpack.c.h.b16 %v1715
    %v1926 = vunpack.c.l.b16 %v1716
    %v1927 = vunpack.c.h.b16 %v1716
    %v1928 = vunpack.c.l.b16 %v1717
    %v1929 = vunpack.c.h.b16 %v1717
    %v1930 = vunpack.c.l.b16 %v1718
    %v1931 = vunpack.c.h.b16 %v1718
    %v1932 = vunpack.c.l.b16 %v1719
    %v1933 = vunpack.c.h.b16 %v1719
    %v1934 = vpack.c.b16 %v1810, %v1806
    %v1935 = vpack.c.b16 %v1811, %v1807
    %v1936 = vpack.c.b16 %v1812, %v1808
    %v1937 = vpack.c.b16 %v1813, %v1809
    %v1938 = vpack.c.b16 %v1818, %v1814
    %v1939 = vpack.c.b16 %v1819, %v1815
    %v1940 = vpack.c.b16 %v1820, %v1816
    %v1941 = vpack.c.b16 %v1821, %v1817
    %v1942 = vpack.c.b16 %v1826, %v1822
    %v1943 = vpack.c.b16 %v1827, %v1823
    %v1944 = vpack.c.b16 %v1828, %v1824
    %v1945 = vpack.c.b16 %v1829, %v1825
    %v1946 = vpack.c.b16 %v1834, %v1830
    %v1947 = vpack.c.b16 %v1835, %v1831
    %v1948 = vpack.c.b16 %v1836, %v1832
    %v1949 = vpack.c.b16 %v1837, %v1833
    %v1950 = vpack.c.b16 %v1842, %v1838
    %v1951 = vpack.c.b16 %v1843, %v1839
    %v1952 = vpack.c.b16 %v1844, %v1840
    %v1953 = vpack.c.b16 %v1845, %v1841
    %v1954 = vpack.c.b16 %v1850, %v1846
    %v1955 = vpack.c.b16 %v1851, %v1847
    %v1956 = vpack.c.b16 %v1852, %v1848
    %v1957 = vpack.c.b16 %v1853, %v1849
    %v1958 = vpack.c.b16 %v1858, %v1854
    %v1959 = vpack.c.b16 %v1859, %v1855
    %v1960 = vpack.c.b16 %v1860, %v1856
    %v1961 = vpack.c.b16 %v1861, %v1857
    %v1962 = vpack.c.b16 %v1866, %v1862
    %v1963 = vpack.c.b16 %v1867, %v1863
    %v1964 = vpack.c.b16 %v1868, %v1864
    %v1965 = vpack.c.b16 %v1869, %v1865
    %v1966 = vpack.c.b16 %v1874, %v1870
    %v1967 = vpack.c.b16 %v1875, %v1871
    %v1968 = vpack.c.b16 %v1876, %v1872
    %v1969 = vpack.c.b16 %v1877, %v1873
    %v1970 = vpack.c.b16 %v1882, %v1878
    %v1971 = vpack.c.b16 %v1883, %v1879
    %v1972 = vpack.c.b16 %v1884, %v1880
    %v1973 = vpack.c.b16 %v1885, %v1881
    %v1974 = vpack.c.b16 %v1890, %v1886
    %v1975 = vpack.c.b16 %v1891, %v1887
    %v1976 = vpack.c.b16 %v1892, %v1888
    %v1977 = vpack.c.b16 %v1893, %v1889
    %v1978 = vpack.c.b16 %v1898, %v1894
    %v1979 = vpack.c.b16 %v1899, %v1895
    %v1980 = vpack.c.b16 %v1900, %v1896
    %v1981 = vpack.c.b16 %v1901, %v1897
    %v1982 = vpack.c.b16 %v1906, %v1902
    %v1983 = vpack.c.b16 %v1907, %v1903
    %v1984 = vpack.c.b16 %v1908, %v1904
    %v1985 = vpack.c.b16 %v1909, %v1905
    %v1986 = vpack.c.b16 %v1914, %v1910
    %v1987 = vpack.c.b16 %v1915, %v1911
    %v1988 = vpack.c.b16 %v1916, %v1912
    %v1989 = vpack.c.b16 %v1917, %v1913
    %v1990 = vpack.c.b16 %v1922, %v1918
    %v1991 = vpack.c.b16 %v1923, %v1919
    %v1992 = vpack.c.b16 %v1924, %v1920
    %v1993 = vpack.c.b16 %v1925, %v1921
    %v1994 = vpack.c.b16 %v1930, %v1926
    %v1995 = vpack.c.b16 %v1931, %v1927
    %v1996 = vpack.c.b16 %v1932, %v1928
    %v1997 = vpack.c.b16 %v1933, %v1929
    %2062 = vmatprep.subr.bf16.mxu0 %v1935
    %2063 = vmatpush1.bf16.msra.mxu0 %v1934
    %2064 = vmatprep.subr.bf16.mxu0 %v1939
    %2065 = vmatpush1.bf16.msra.mxu0 %v1938
    %2066 = vmatprep.subr.bf16.mxu0 %v1943
    %2067 = vmatpush1.bf16.msra.mxu0 %v1942
    %2068 = vmatprep.subr.bf16.mxu0 %v1947
    %2069 = vmatpush1.bf16.msra.mxu0 %v1946
    %2070 = vmatprep.subr.bf16.mxu0 %v1951
    %2071 = vmatpush1.bf16.msra.mxu0 %v1950
    %2072 = vmatprep.subr.bf16.mxu0 %v1955
    %2073 = vmatpush1.bf16.msra.mxu0 %v1954
    %2074 = vmatprep.subr.bf16.mxu0 %v1959
    %2075 = vmatpush1.bf16.msra.mxu0 %v1958
    %2076 = vmatprep.subr.bf16.mxu0 %v1963
    %2077 = vmatpush1.bf16.msra.mxu0 %v1962
    %2078 = vmatprep.subr.bf16.mxu0 %v1967
    %2079 = vmatpush1.bf16.msra.mxu0 %v1966
    %2080 = vmatprep.subr.bf16.mxu0 %v1971
    %2081 = vmatpush1.bf16.msra.mxu0 %v1970
    %2082 = vmatprep.subr.bf16.mxu0 %v1975
    %2083 = vmatpush1.bf16.msra.mxu0 %v1974
    %2084 = vmatprep.subr.bf16.mxu0 %v1979
    %2085 = vmatpush1.bf16.msra.mxu0 %v1978
    %2086 = vmatprep.subr.bf16.mxu0 %v1983
    %2087 = vmatpush1.bf16.msra.mxu0 %v1982
    %2088 = vmatprep.subr.bf16.mxu0 %v1987
    %2089 = vmatpush1.bf16.msra.mxu0 %v1986
    %2090 = vmatprep.subr.bf16.mxu0 %v1991
    %2091 = vmatpush1.bf16.msra.mxu0 %v1990
    %2092 = vmatprep.subr.bf16.mxu0 %v1995
    %2093 = vmatpush1.bf16.msra.mxu0 %v1994
    %2094 = vmatprep.mubr.bf16.mxu0 %v1437
    %2095 = vmatmul.mubr.bf16.gmra.mrb[0].mxu0 0
    %v2096 = vpop.f32.mrb[0].mxu0
    %v2097 = vadd.f32 %v1725, %v2096
    %v2098 = vpop.f32.mrb[0].mxu0
    %v2099 = vadd.f32 %v1729, %v2098
    %v2100 = vpop.f32.mrb[0].mxu0
    %v2101 = vpop.f32.mrb[0].mxu0
    %2102 = vdwg.mxu0
    %2103 = vmatprep.subr.bf16.mxu0 %v1937
    %2104 = vmatpush1.bf16.msra.mxu0 %v1936
    %2105 = vmatprep.subr.bf16.mxu0 %v1941
    %2106 = vmatpush1.bf16.msra.mxu0 %v1940
    %2107 = vmatprep.subr.bf16.mxu0 %v1945
    %2108 = vmatpush1.bf16.msra.mxu0 %v1944
    %2109 = vmatprep.subr.bf16.mxu0 %v1949
    %2110 = vmatpush1.bf16.msra.mxu0 %v1948
    %2111 = vmatprep.subr.bf16.mxu0 %v1953
    %2112 = vmatpush1.bf16.msra.mxu0 %v1952
    %2113 = vmatprep.subr.bf16.mxu0 %v1957
    %2114 = vmatpush1.bf16.msra.mxu0 %v1956
    %2115 = vmatprep.subr.bf16.mxu0 %v1961
    %2116 = vmatpush1.bf16.msra.mxu0 %v1960
    %2117 = vmatprep.subr.bf16.mxu0 %v1965
    %2118 = vmatpush1.bf16.msra.mxu0 %v1964
    %2119 = vmatprep.subr.bf16.mxu0 %v1969
    %2120 = vmatpush1.bf16.msra.mxu0 %v1968
    %2121 = vmatprep.subr.bf16.mxu0 %v1973
    %2122 = vmatpush1.bf16.msra.mxu0 %v1972
    %2123 = vmatprep.subr.bf16.mxu0 %v1977
    %2124 = vmatpush1.bf16.msra.mxu0 %v1976
    %2125 = vmatprep.subr.bf16.mxu0 %v1981
    %2126 = vmatpush1.bf16.msra.mxu0 %v1980
    %2127 = vmatprep.subr.bf16.mxu0 %v1985
    %2128 = vmatpush1.bf16.msra.mxu0 %v1984
    %2129 = vmatprep.subr.bf16.mxu0 %v1989
    %2130 = vmatpush1.bf16.msra.mxu0 %v1988
    %2131 = vmatprep.subr.bf16.mxu0 %v1993
    %2132 = vmatpush1.bf16.msra.mxu0 %v1992
    %2133 = vmatprep.subr.bf16.mxu0 %v1997
    %2134 = vmatpush1.bf16.msra.mxu0 %v1996
    %2135 = vmatprep.mubr.bf16.mxu0 %v1437
    %2136 = vmatmul.mubr.bf16.gmra.mrb[0].mxu0 0
    %v2137 = vpop.f32.mrb[0].mxu0
    %v2138 = vadd.f32 %v1733, %v2137
    %v2139 = vpop.f32.mrb[0].mxu0
    %v2140 = vadd.f32 %v1737, %v2139
    %v2141 = vpop.f32.mrb[0].mxu0
    %v2142 = vpop.f32.mrb[0].mxu0
    %2143 = vdwg.mxu0
    %v2144 = vxor.u32 %v2097, 2147483648
    %v2145 = vmul.f32 %v2144, 1.442695
    %v2146 = vpow.pop %v2145
    %v2147 = vadd.f32 %v2146, 1.0
    %v2148 = vrcp.pop %v2147
    %v2149 = vmul.f32 1.0, %v2148
    %v2150 = vxor.u32 %v2099, 2147483648
    %v2151 = vmul.f32 %v2150, 1.442695
    %v2152 = vpow.pop %v2151
    %v2153 = vadd.f32 %v2152, 1.0
    %v2154 = vrcp.pop %v2153
    %v2155 = vmul.f32 1.0, %v2154
    %v2156 = vtanh.pop %v2138
    %v2157 = vxor.u32 %v2140, 2147483648
    %v2158 = vmul.f32 %v2157, 1.442695
    %v2159 = vpow.pop %v2158
    %v2160 = vadd.f32 %v2159, 1.0
    %v2161 = vrcp.pop %v2160
    %v2162 = vmul.f32 1.0, %v2161
    %v2163 = vmul.f32 %v2155, 0.0
    %v2164 = vmul.f32 %v2149, %v2156
    %v2165 = vadd.f32 %v2163, %v2164
    %v2166 = vtanh.pop %v2165
    %v2167 = vmul.f32 %v2162, %v2166
    %2168 = vmatprep.subr.bf16.mxu0 %v640
    %2169 = vmatpush1.bf16.msra.mxu0 %v639
    %2170 = vmatprep.subr.bf16.mxu0 %v644
    %2171 = vmatpush1.bf16.msra.mxu0 %v643
    %2172 = vmatprep.subr.bf16.mxu0 %v648
    %2173 = vmatpush1.bf16.msra.mxu0 %v647
    %2174 = vmatprep.subr.bf16.mxu0 %v652
    %2175 = vmatpush1.bf16.msra.mxu0 %v651
    %2176 = vmatprep.subr.bf16.mxu0 %v656
    %2177 = vmatpush1.bf16.msra.mxu0 %v655
    %2178 = vmatprep.subr.bf16.mxu0 %v660
    %2179 = vmatpush1.bf16.msra.mxu0 %v659
    %2180 = vmatprep.subr.bf16.mxu0 %v664
    %2181 = vmatpush1.bf16.msra.mxu0 %v663
    %2182 = vmatprep.subr.bf16.mxu0 %v668
    %2183 = vmatpush1.bf16.msra.mxu0 %v667
    %2184 = vmatprep.subr.bf16.mxu0 0
    %2185 = vmatpush1.bf16.msra.mxu0 0
    %2186 = vmatprep.subr.bf16.mxu0 0
    %2187 = vmatpush1.bf16.msra.mxu0 0
    %2188 = vmatprep.subr.bf16.mxu0 0
    %2189 = vmatpush1.bf16.msra.mxu0 0
    %2190 = vmatprep.subr.bf16.mxu0 0
    %2191 = vmatpush1.bf16.msra.mxu0 0
    %2192 = vmatprep.subr.bf16.mxu0 0
    %2193 = vmatpush1.bf16.msra.mxu0 0
    %2194 = vmatprep.subr.bf16.mxu0 0
    %2195 = vmatpush1.bf16.msra.mxu0 0
    %2196 = vmatprep.subr.bf16.mxu0 0
    %2197 = vmatpush1.bf16.msra.mxu0 0
    %2198 = vmatprep.subr.bf16.mxu0 0
    %2199 = vmatpush1.bf16.msra.mxu0 0
    %2200 = vmatprep.mubr.bf16.mxu0 0
    %2201 = vmatmul.mubr.bf16.gmra.mrb[0].mxu0 %v1548
    %v2202 = vpop.f32.mrb[0].mxu0
    %v2203 = vadd.f32 0.0, %v2202
    %v2204 = vpop.f32.mrb[0].mxu0
    %v2205 = vadd.f32 0.0, %v2204
    %v2206 = vpop.f32.mrb[0].mxu0
    %v2207 = vpop.f32.mrb[0].mxu0
    %2208 = vdwg.mxu0
    %2209 = vmatprep.subr.bf16.mxu0 %v642
    %2210 = vmatpush1.bf16.msra.mxu0 %v641
    %2211 = vmatprep.subr.bf16.mxu0 %v646
    %2212 = vmatpush1.bf16.msra.mxu0 %v645
    %2213 = vmatprep.subr.bf16.mxu0 %v650
    %2214 = vmatpush1.bf16.msra.mxu0 %v649
    %2215 = vmatprep.subr.bf16.mxu0 %v654
    %2216 = vmatpush1.bf16.msra.mxu0 %v653
    %2217 = vmatprep.subr.bf16.mxu0 %v658
    %2218 = vmatpush1.bf16.msra.mxu0 %v657
    %2219 = vmatprep.subr.bf16.mxu0 %v662
    %2220 = vmatpush1.bf16.msra.mxu0 %v661
    %2221 = vmatprep.subr.bf16.mxu0 %v666
    %2222 = vmatpush1.bf16.msra.mxu0 %v665
    %2223 = vmatprep.subr.bf16.mxu0 %v670
    %2224 = vmatpush1.bf16.msra.mxu0 %v669
    %2225 = vmatprep.subr.bf16.mxu0 0
    %2226 = vmatpush1.bf16.msra.mxu0 0
    %2227 = vmatprep.subr.bf16.mxu0 0
    %2228 = vmatpush1.bf16.msra.mxu0 0
    %2229 = vmatprep.subr.bf16.mxu0 0
    %2230 = vmatpush1.bf16.msra.mxu0 0
    %2231 = vmatprep.subr.bf16.mxu0 0
    %2232 = vmatpush1.bf16.msra.mxu0 0
    %2233 = vmatprep.subr.bf16.mxu0 0
    %2234 = vmatpush1.bf16.msra.mxu0 0
    %2235 = vmatprep.subr.bf16.mxu0 0
    %2236 = vmatpush1.bf16.msra.mxu0 0
    %2237 = vmatprep.subr.bf16.mxu0 0
    %2238 = vmatpush1.bf16.msra.mxu0 0
    %2239 = vmatprep.subr.bf16.mxu0 0
    %2240 = vmatpush1.bf16.msra.mxu0 0
    %2241 = vmatprep.mubr.bf16.mxu0 0
    %2242 = vmatmul.mubr.bf16.gmra.mrb[0].mxu0 %v1548
    %v2243 = vpop.f32.mrb[0].mxu0
    %v2244 = vadd.f32 0.0, %v2243
    %v2245 = vpop.f32.mrb[0].mxu0
    %v2246 = vadd.f32 0.0, %v2245
    %v2247 = vpop.f32.mrb[0].mxu0
    %v2248 = vpop.f32.mrb[0].mxu0
    %2249 = vdwg.mxu0
    %v2250 = vadd.f32 %v414, %v2203
    %v2251 = vadd.f32 %v416, %v2205
    %v2252 = vadd.f32 %v487, %v2244
    %v2253 = vadd.f32 %v489, %v2246
    %v2254 = vxor.u32 %v2250, 2147483648
    %v2255 = vmul.f32 %v2254, 1.442695
    %v2256 = vpow.pop %v2255
    %v2257 = vadd.f32 %v2256, 1.0
    %v2258 = vrcp.pop %v2257
    %v2259 = vmul.f32 1.0, %v2258
    %v2260 = vxor.u32 %v2251, 2147483648
    %v2261 = vmul.f32 %v2260, 1.442695
    %v2262 = vpow.pop %v2261
    %v2263 = vadd.f32 %v2262, 1.0
    %v2264 = vrcp.pop %v2263
    %v2265 = vmul.f32 1.0, %v2264
    %v2266 = vtanh.pop %v2252
    %v2267 = vxor.u32 %v2253, 2147483648
    %v2268 = vmul.f32 %v2267, 1.442695
    %v2269 = vpow.pop %v2268
    %v2270 = vadd.f32 %v2269, 1.0
    %v2271 = vrcp.pop %v2270
    %v2272 = vmul.f32 1.0, %v2271
    %v2273 = vmul.f32 %v2265, %v1545
    %v2274 = vmul.f32 %v2259, %v2266
    %v2275 = vadd.f32 %v2273, %v2274
    %v2276 = vtanh.pop %v2275
    %v2277 = vmul.f32 %v2272, %v2276
    %v2278 = vpack.c.bf16 %v2277, %v2277
    %2279 = vmatprep.subr.bf16.mxu0 %v1204
    %2280 = vmatpush1.bf16.msra.mxu0 %v1203
    %2281 = vmatprep.subr.bf16.mxu0 %v1208
    %2282 = vmatpush1.bf16.msra.mxu0 %v1207
    %2283 = vmatprep.subr.bf16.mxu0 %v1212
    %2284 = vmatpush1.bf16.msra.mxu0 %v1211
    %2285 = vmatprep.subr.bf16.mxu0 %v1216
    %2286 = vmatpush1.bf16.msra.mxu0 %v1215
    %2287 = vmatprep.subr.bf16.mxu0 %v1220
    %2288 = vmatpush1.bf16.msra.mxu0 %v1219
    %2289 = vmatprep.subr.bf16.mxu0 %v1224
    %2290 = vmatpush1.bf16.msra.mxu0 %v1223
    %2291 = vmatprep.subr.bf16.mxu0 %v1228
    %2292 = vmatpush1.bf16.msra.mxu0 %v1227
    %2293 = vmatprep.subr.bf16.mxu0 %v1232
    %2294 = vmatpush1.bf16.msra.mxu0 %v1231
    %2295 = vmatprep.subr.bf16.mxu0 %v1236
    %2296 = vmatpush1.bf16.msra.mxu0 %v1235
    %2297 = vmatprep.subr.bf16.mxu0 %v1240
    %2298 = vmatpush1.bf16.msra.mxu0 %v1239
    %2299 = vmatprep.subr.bf16.mxu0 %v1244
    %2300 = vmatpush1.bf16.msra.mxu0 %v1243
    %2301 = vmatprep.subr.bf16.mxu0 %v1248
    %2302 = vmatpush1.bf16.msra.mxu0 %v1247
    %2303 = vmatprep.subr.bf16.mxu0 %v1252
    %2304 = vmatpush1.bf16.msra.mxu0 %v1251
    %2305 = vmatprep.subr.bf16.mxu0 %v1256
    %2306 = vmatpush1.bf16.msra.mxu0 %v1255
    %2307 = vmatprep.subr.bf16.mxu0 %v1260
    %2308 = vmatpush1.bf16.msra.mxu0 %v1259
    %2309 = vmatprep.subr.bf16.mxu0 %v1264
    %2310 = vmatpush1.bf16.msra.mxu0 %v1263
    %2311 = vmatprep.mubr.bf16.mxu0 %v1548
    %2312 = vmatmul.mubr.bf16.gmra.mrb[0].mxu0 %v1655
    %v2313 = vpop.f32.mrb[0].mxu0
    %v2314 = vadd.f32 %v994, %v2313
    %v2315 = vpop.f32.mrb[0].mxu0
    %v2316 = vadd.f32 %v998, %v2315
    %v2317 = vpop.f32.mrb[0].mxu0
    %v2318 = vpop.f32.mrb[0].mxu0
    %2319 = vdwg.mxu0
    %2320 = vmatprep.subr.bf16.mxu0 %v1206
    %2321 = vmatpush1.bf16.msra.mxu0 %v1205
    %2322 = vmatprep.subr.bf16.mxu0 %v1210
    %2323 = vmatpush1.bf16.msra.mxu0 %v1209
    %2324 = vmatprep.subr.bf16.mxu0 %v1214
    %2325 = vmatpush1.bf16.msra.mxu0 %v1213
    %2326 = vmatprep.subr.bf16.mxu0 %v1218
    %2327 = vmatpush1.bf16.msra.mxu0 %v1217
    %2328 = vmatprep.subr.bf16.mxu0 %v1222
    %2329 = vmatpush1.bf16.msra.mxu0 %v1221
    %2330 = vmatprep.subr.bf16.mxu0 %v1226
    %2331 = vmatpush1.bf16.msra.mxu0 %v1225
    %2332 = vmatprep.subr.bf16.mxu0 %v1230
    %2333 = vmatpush1.bf16.msra.mxu0 %v1229
    %2334 = vmatprep.subr.bf16.mxu0 %v1234
    %2335 = vmatpush1.bf16.msra.mxu0 %v1233
    %2336 = vmatprep.subr.bf16.mxu0 %v1238
    %2337 = vmatpush1.bf16.msra.mxu0 %v1237
    %2338 = vmatprep.subr.bf16.mxu0 %v1242
    %2339 = vmatpush1.bf16.msra.mxu0 %v1241
    %2340 = vmatprep.subr.bf16.mxu0 %v1246
    %2341 = vmatpush1.bf16.msra.mxu0 %v1245
    %2342 = vmatprep.subr.bf16.mxu0 %v1250
    %2343 = vmatpush1.bf16.msra.mxu0 %v1249
    %2344 = vmatprep.subr.bf16.mxu0 %v1254
    %2345 = vmatpush1.bf16.msra.mxu0 %v1253
    %2346 = vmatprep.subr.bf16.mxu0 %v1258
    %2347 = vmatpush1.bf16.msra.mxu0 %v1257
    %2348 = vmatprep.subr.bf16.mxu0 %v1262
    %2349 = vmatpush1.bf16.msra.mxu0 %v1261
    %2350 = vmatprep.subr.bf16.mxu0 %v1266
    %2351 = vmatpush1.bf16.msra.mxu0 %v1265
    %2352 = vmatprep.mubr.bf16.mxu0 %v1548
    %2353 = vmatmul.mubr.bf16.gmra.mrb[0].mxu0 %v1655
    %v2354 = vpop.f32.mrb[0].mxu0
    %v2355 = vadd.f32 %v1002, %v2354
    %v2356 = vpop.f32.mrb[0].mxu0
    %v2357 = vadd.f32 %v1006, %v2356
    %v2358 = vpop.f32.mrb[0].mxu0
    %v2359 = vpop.f32.mrb[0].mxu0
    %2360 = vdwg.mxu0
    %v2361 = vxor.u32 %v2314, 2147483648
    %v2362 = vmul.f32 %v2361, 1.442695
    %v2363 = vpow.pop %v2362
    %v2364 = vadd.f32 %v2363, 1.0
    %v2365 = vrcp.pop %v2364
    %v2366 = vmul.f32 1.0, %v2365
    %v2367 = vxor.u32 %v2316, 2147483648
    %v2368 = vmul.f32 %v2367, 1.442695
    %v2369 = vpow.pop %v2368
    %v2370 = vadd.f32 %v2369, 1.0
    %v2371 = vrcp.pop %v2370
    %v2372 = vmul.f32 1.0, %v2371
    %v2373 = vtanh.pop %v2355
    %v2374 = vxor.u32 %v2357, 2147483648
    %v2375 = vmul.f32 %v2374, 1.442695
    %v2376 = vpow.pop %v2375
    %v2377 = vadd.f32 %v2376, 1.0
    %v2378 = vrcp.pop %v2377
    %v2379 = vmul.f32 1.0, %v2378
    %v2380 = vmul.f32 %v2372, %v1652
    %v2381 = vmul.f32 %v2366, %v2373
    %v2382 = vadd.f32 %v2380, %v2381
    %v2383 = vtanh.pop %v2382
    %v2384 = vmul.f32 %v2379, %v2383
    %v2385 = vpack.c.bf16 %v2384, %v2384
    %v2386 = vpack.c.bf16 %v2167, %v2167
    %2387 = vmatprep.subr.bf16.mxu0 %v1935
    %2388 = vmatpush1.bf16.msra.mxu0 %v1934
    %2389 = vmatprep.subr.bf16.mxu0 %v1939
    %2390 = vmatpush1.bf16.msra.mxu0 %v1938
    %2391 = vmatprep.subr.bf16.mxu0 %v1943
    %2392 = vmatpush1.bf16.msra.mxu0 %v1942
    %2393 = vmatprep.subr.bf16.mxu0 %v1947
    %2394 = vmatpush1.bf16.msra.mxu0 %v1946
    %2395 = vmatprep.subr.bf16.mxu0 %v1951
    %2396 = vmatpush1.bf16.msra.mxu0 %v1950
    %2397 = vmatprep.subr.bf16.mxu0 %v1955
    %2398 = vmatpush1.bf16.msra.mxu0 %v1954
    %2399 = vmatprep.subr.bf16.mxu0 %v1959
    %2400 = vmatpush1.bf16.msra.mxu0 %v1958
    %2401 = vmatprep.subr.bf16.mxu0 %v1963
    %2402 = vmatpush1.bf16.msra.mxu0 %v1962
    %2403 = vmatprep.subr.bf16.mxu0 %v1967
    %2404 = vmatpush1.bf16.msra.mxu0 %v1966
    %2405 = vmatprep.subr.bf16.mxu0 %v1971
    %2406 = vmatpush1.bf16.msra.mxu0 %v1970
    %2407 = vmatprep.subr.bf16.mxu0 %v1975
    %2408 = vmatpush1.bf16.msra.mxu0 %v1974
    %2409 = vmatprep.subr.bf16.mxu0 %v1979
    %2410 = vmatpush1.bf16.msra.mxu0 %v1978
    %2411 = vmatprep.subr.bf16.mxu0 %v1983
    %2412 = vmatpush1.bf16.msra.mxu0 %v1982
    %2413 = vmatprep.subr.bf16.mxu0 %v1987
    %2414 = vmatpush1.bf16.msra.mxu0 %v1986
    %2415 = vmatprep.subr.bf16.mxu0 %v1991
    %2416 = vmatpush1.bf16.msra.mxu0 %v1990
    %2417 = vmatprep.subr.bf16.mxu0 %v1995
    %2418 = vmatpush1.bf16.msra.mxu0 %v1994
    %2419 = vmatprep.mubr.bf16.mxu0 %v1655
    %2420 = vmatmul.mubr.bf16.gmra.mrb[0].mxu0 %v2386
    %v2421 = vpop.f32.mrb[0].mxu0
    %v2422 = vadd.f32 %v1725, %v2421
    %v2423 = vpop.f32.mrb[0].mxu0
    %v2424 = vadd.f32 %v1729, %v2423
    %v2425 = vpop.f32.mrb[0].mxu0
    %v2426 = vpop.f32.mrb[0].mxu0
    %2427 = vdwg.mxu0
    %2428 = vmatprep.subr.bf16.mxu0 %v1937
    %2429 = vmatpush1.bf16.msra.mxu0 %v1936
    %2430 = vmatprep.subr.bf16.mxu0 %v1941
    %2431 = vmatpush1.bf16.msra.mxu0 %v1940
    %2432 = vmatprep.subr.bf16.mxu0 %v1945
    %2433 = vmatpush1.bf16.msra.mxu0 %v1944
    %2434 = vmatprep.subr.bf16.mxu0 %v1949
    %2435 = vmatpush1.bf16.msra.mxu0 %v1948
    %2436 = vmatprep.subr.bf16.mxu0 %v1953
    %2437 = vmatpush1.bf16.msra.mxu0 %v1952
    %2438 = vmatprep.subr.bf16.mxu0 %v1957
    %2439 = vmatpush1.bf16.msra.mxu0 %v1956
    %2440 = vmatprep.subr.bf16.mxu0 %v1961
    %2441 = vmatpush1.bf16.msra.mxu0 %v1960
    %2442 = vmatprep.subr.bf16.mxu0 %v1965
    %2443 = vmatpush1.bf16.msra.mxu0 %v1964
    %2444 = vmatprep.subr.bf16.mxu0 %v1969
    %2445 = vmatpush1.bf16.msra.mxu0 %v1968
    %2446 = vmatprep.subr.bf16.mxu0 %v1973
    %2447 = vmatpush1.bf16.msra.mxu0 %v1972
    %2448 = vmatprep.subr.bf16.mxu0 %v1977
    %2449 = vmatpush1.bf16.msra.mxu0 %v1976
    %2450 = vmatprep.subr.bf16.mxu0 %v1981
    %2451 = vmatpush1.bf16.msra.mxu0 %v1980
    %2452 = vmatprep.subr.bf16.mxu0 %v1985
    %2453 = vmatpush1.bf16.msra.mxu0 %v1984
    %2454 = vmatprep.subr.bf16.mxu0 %v1989
    %2455 = vmatpush1.bf16.msra.mxu0 %v1988
    %2456 = vmatprep.subr.bf16.mxu0 %v1993
    %2457 = vmatpush1.bf16.msra.mxu0 %v1992
    %2458 = vmatprep.subr.bf16.mxu0 %v1997
    %2459 = vmatpush1.bf16.msra.mxu0 %v1996
    %2460 = vmatprep.mubr.bf16.mxu0 %v1655
    %2461 = vmatmul.mubr.bf16.gmra.mrb[0].mxu0 %v2386
    %v2462 = vpop.f32.mrb[0].mxu0
    %v2463 = vadd.f32 %v1733, %v2462
    %v2464 = vpop.f32.mrb[0].mxu0
    %v2465 = vadd.f32 %v1737, %v2464
    %v2466 = vpop.f32.mrb[0].mxu0
    %v2467 = vpop.f32.mrb[0].mxu0
    %2468 = vdwg.mxu0
    %v2469 = vxor.u32 %v2422, 2147483648
    %v2470 = vmul.f32 %v2469, 1.442695
    %v2471 = vpow.pop %v2470
    %v2472 = vadd.f32 %v2471, 1.0
    %v2473 = vrcp.pop %v2472
    %v2474 = vmul.f32 1.0, %v2473
    %v2475 = vxor.u32 %v2424, 2147483648
    %v2476 = vmul.f32 %v2475, 1.442695
    %v2477 = vpow.pop %v2476
    %v2478 = vadd.f32 %v2477, 1.0
    %v2479 = vrcp.pop %v2478
    %v2480 = vmul.f32 1.0, %v2479
    %v2481 = vtanh.pop %v2463
    %v2482 = vxor.u32 %v2465, 2147483648
    %v2483 = vmul.f32 %v2482, 1.442695
    %v2484 = vpow.pop %v2483
    %v2485 = vadd.f32 %v2484, 1.0
    %v2486 = vrcp.pop %v2485
    %v2487 = vmul.f32 1.0, %v2486
    %v2488 = vmul.f32 %v2480, %v2165
    %v2489 = vmul.f32 %v2474, %v2481
    %v2490 = vadd.f32 %v2488, %v2489
    %v2491 = vtanh.pop %v2490
    %v2492 = vmul.f32 %v2487, %v2491
    %2493 = vmatprep.subr.bf16.mxu0 %v640
    %2494 = vmatpush1.bf16.msra.mxu0 %v639
    %2495 = vmatprep.subr.bf16.mxu0 %v644
    %2496 = vmatpush1.bf16.msra.mxu0 %v643
    %2497 = vmatprep.subr.bf16.mxu0 %v648
    %2498 = vmatpush1.bf16.msra.mxu0 %v647
    %2499 = vmatprep.subr.bf16.mxu0 %v652
    %2500 = vmatpush1.bf16.msra.mxu0 %v651
    %2501 = vmatprep.subr.bf16.mxu0 %v656
    %2502 = vmatpush1.bf16.msra.mxu0 %v655
    %2503 = vmatprep.subr.bf16.mxu0 %v660
    %2504 = vmatpush1.bf16.msra.mxu0 %v659
    %2505 = vmatprep.subr.bf16.mxu0 %v664
    %2506 = vmatpush1.bf16.msra.mxu0 %v663
    %2507 = vmatprep.subr.bf16.mxu0 %v668
    %2508 = vmatpush1.bf16.msra.mxu0 %v667
    %2509 = vmatprep.subr.bf16.mxu0 0
    %2510 = vmatpush1.bf16.msra.mxu0 0
    %2511 = vmatprep.subr.bf16.mxu0 0
    %2512 = vmatpush1.bf16.msra.mxu0 0
    %2513 = vmatprep.subr.bf16.mxu0 0
    %2514 = vmatpush1.bf16.msra.mxu0 0
    %2515 = vmatprep.subr.bf16.mxu0 0
    %2516 = vmatpush1.bf16.msra.mxu0 0
    %2517 = vmatprep.subr.bf16.mxu0 0
    %2518 = vmatpush1.bf16.msra.mxu0 0
    %2519 = vmatprep.subr.bf16.mxu0 0
    %2520 = vmatpush1.bf16.msra.mxu0 0
    %2521 = vmatprep.subr.bf16.mxu0 0
    %2522 = vmatpush1.bf16.msra.mxu0 0
    %2523 = vmatprep.subr.bf16.mxu0 0
    %2524 = vmatpush1.bf16.msra.mxu0 0
    %2525 = vmatprep.mubr.bf16.mxu0 0
    %2526 = vmatmul.mubr.bf16.gmra.mrb[0].mxu0 %v2278
    %v2527 = vpop.f32.mrb[0].mxu0
    %v2528 = vadd.f32 0.0, %v2527
    %v2529 = vpop.f32.mrb[0].mxu0
    %v2530 = vadd.f32 0.0, %v2529
    %v2531 = vpop.f32.mrb[0].mxu0
    %v2532 = vpop.f32.mrb[0].mxu0
    %2533 = vdwg.mxu0
    %2534 = vmatprep.subr.bf16.mxu0 %v642
    %2535 = vmatpush1.bf16.msra.mxu0 %v641
    %2536 = vmatprep.subr.bf16.mxu0 %v646
    %2537 = vmatpush1.bf16.msra.mxu0 %v645
    %2538 = vmatprep.subr.bf16.mxu0 %v650
    %2539 = vmatpush1.bf16.msra.mxu0 %v649
    %2540 = vmatprep.subr.bf16.mxu0 %v654
    %2541 = vmatpush1.bf16.msra.mxu0 %v653
    %2542 = vmatprep.subr.bf16.mxu0 %v658
    %2543 = vmatpush1.bf16.msra.mxu0 %v657
    %2544 = vmatprep.subr.bf16.mxu0 %v662
    %2545 = vmatpush1.bf16.msra.mxu0 %v661
    %2546 = vmatprep.subr.bf16.mxu0 %v666
    %2547 = vmatpush1.bf16.msra.mxu0 %v665
    %2548 = vmatprep.subr.bf16.mxu0 %v670
    %2549 = vmatpush1.bf16.msra.mxu0 %v669
    %2550 = vmatprep.subr.bf16.mxu0 0
    %2551 = vmatpush1.bf16.msra.mxu0 0
    %2552 = vmatprep.subr.bf16.mxu0 0
    %2553 = vmatpush1.bf16.msra.mxu0 0
    %2554 = vmatprep.subr.bf16.mxu0 0
    %2555 = vmatpush1.bf16.msra.mxu0 0
    %2556 = vmatprep.subr.bf16.mxu0 0
    %2557 = vmatpush1.bf16.msra.mxu0 0
    %2558 = vmatprep.subr.bf16.mxu0 0
    %2559 = vmatpush1.bf16.msra.mxu0 0
    %2560 = vmatprep.subr.bf16.mxu0 0
    %2561 = vmatpush1.bf16.msra.mxu0 0
    %2562 = vmatprep.subr.bf16.mxu0 0
    %2563 = vmatpush1.bf16.msra.mxu0 0
    %2564 = vmatprep.subr.bf16.mxu0 0
    %2565 = vmatpush1.bf16.msra.mxu0 0
    %2566 = vmatprep.mubr.bf16.mxu0 0
    %2567 = vmatmul.mubr.bf16.gmra.mrb[0].mxu0 %v2278
    %v2568 = vpop.f32.mrb[0].mxu0
    %v2569 = vadd.f32 0.0, %v2568
    %v2570 = vpop.f32.mrb[0].mxu0
    %v2571 = vadd.f32 0.0, %v2570
    %v2572 = vpop.f32.mrb[0].mxu0
    %v2573 = vpop.f32.mrb[0].mxu0
    %2574 = vdwg.mxu0
    %v2575 = vadd.f32 %v420, %v2528
    %v2576 = vadd.f32 %v422, %v2530
    %v2577 = vadd.f32 %v493, %v2569
    %v2578 = vadd.f32 %v495, %v2571
    %v2579 = vxor.u32 %v2575, 2147483648
    %v2580 = vmul.f32 %v2579, 1.442695
    %v2581 = vpow.pop %v2580
    %v2582 = vadd.f32 %v2581, 1.0
    %v2583 = vrcp.pop %v2582
    %v2584 = vmul.f32 1.0, %v2583
    %v2585 = vxor.u32 %v2576, 2147483648
    %v2586 = vmul.f32 %v2585, 1.442695
    %v2587 = vpow.pop %v2586
    %v2588 = vadd.f32 %v2587, 1.0
    %v2589 = vrcp.pop %v2588
    %v2590 = vmul.f32 1.0, %v2589
    %v2591 = vtanh.pop %v2577
    %v2592 = vxor.u32 %v2578, 2147483648
    %v2593 = vmul.f32 %v2592, 1.442695
    %v2594 = vpow.pop %v2593
    %v2595 = vadd.f32 %v2594, 1.0
    %v2596 = vrcp.pop %v2595
    %v2597 = vmul.f32 1.0, %v2596
    %v2598 = vmul.f32 %v2590, %v2275
    %v2599 = vmul.f32 %v2584, %v2591
    %v2600 = vadd.f32 %v2598, %v2599
    %v2601 = vtanh.pop %v2600
    %v2602 = vmul.f32 %v2597, %v2601
    %v2603 = vpack.c.bf16 %v2602, %v2602
    %2604 = vmatprep.subr.bf16.mxu0 %v1204
    %2605 = vmatpush1.bf16.msra.mxu0 %v1203
    %2606 = vmatprep.subr.bf16.mxu0 %v1208
    %2607 = vmatpush1.bf16.msra.mxu0 %v1207
    %2608 = vmatprep.subr.bf16.mxu0 %v1212
    %2609 = vmatpush1.bf16.msra.mxu0 %v1211
    %2610 = vmatprep.subr.bf16.mxu0 %v1216
    %2611 = vmatpush1.bf16.msra.mxu0 %v1215
    %2612 = vmatprep.subr.bf16.mxu0 %v1220
    %2613 = vmatpush1.bf16.msra.mxu0 %v1219
    %2614 = vmatprep.subr.bf16.mxu0 %v1224
    %2615 = vmatpush1.bf16.msra.mxu0 %v1223
    %2616 = vmatprep.subr.bf16.mxu0 %v1228
    %2617 = vmatpush1.bf16.msra.mxu0 %v1227
    %2618 = vmatprep.subr.bf16.mxu0 %v1232
    %2619 = vmatpush1.bf16.msra.mxu0 %v1231
    %2620 = vmatprep.subr.bf16.mxu0 %v1236
    %2621 = vmatpush1.bf16.msra.mxu0 %v1235
    %2622 = vmatprep.subr.bf16.mxu0 %v1240
    %2623 = vmatpush1.bf16.msra.mxu0 %v1239
    %2624 = vmatprep.subr.bf16.mxu0 %v1244
    %2625 = vmatpush1.bf16.msra.mxu0 %v1243
    %2626 = vmatprep.subr.bf16.mxu0 %v1248
    %2627 = vmatpush1.bf16.msra.mxu0 %v1247
    %2628 = vmatprep.subr.bf16.mxu0 %v1252
    %2629 = vmatpush1.bf16.msra.mxu0 %v1251
    %2630 = vmatprep.subr.bf16.mxu0 %v1256
    %2631 = vmatpush1.bf16.msra.mxu0 %v1255
    %2632 = vmatprep.subr.bf16.mxu0 %v1260
    %2633 = vmatpush1.bf16.msra.mxu0 %v1259
    %2634 = vmatprep.subr.bf16.mxu0 %v1264
    %2635 = vmatpush1.bf16.msra.mxu0 %v1263
    %2636 = vmatprep.mubr.bf16.mxu0 %v2278
    %2637 = vmatmul.mubr.bf16.gmra.mrb[0].mxu0 %v2385
    %v2638 = vpop.f32.mrb[0].mxu0
    %v2639 = vadd.f32 %v994, %v2638
    %v2640 = vpop.f32.mrb[0].mxu0
    %v2641 = vadd.f32 %v998, %v2640
    %v2642 = vpop.f32.mrb[0].mxu0
    %v2643 = vpop.f32.mrb[0].mxu0
    %2644 = vdwg.mxu0
    %2645 = vmatprep.subr.bf16.mxu0 %v1206
    %2646 = vmatpush1.bf16.msra.mxu0 %v1205
    %2647 = vmatprep.subr.bf16.mxu0 %v1210
    %2648 = vmatpush1.bf16.msra.mxu0 %v1209
    %2649 = vmatprep.subr.bf16.mxu0 %v1214
    %2650 = vmatpush1.bf16.msra.mxu0 %v1213
    %2651 = vmatprep.subr.bf16.mxu0 %v1218
    %2652 = vmatpush1.bf16.msra.mxu0 %v1217
    %2653 = vmatprep.subr.bf16.mxu0 %v1222
    %2654 = vmatpush1.bf16.msra.mxu0 %v1221
    %2655 = vmatprep.subr.bf16.mxu0 %v1226
    %2656 = vmatpush1.bf16.msra.mxu0 %v1225
    %2657 = vmatprep.subr.bf16.mxu0 %v1230
    %2658 = vmatpush1.bf16.msra.mxu0 %v1229
    %2659 = vmatprep.subr.bf16.mxu0 %v1234
    %2660 = vmatpush1.bf16.msra.mxu0 %v1233
    %2661 = vmatprep.subr.bf16.mxu0 %v1238
    %2662 = vmatpush1.bf16.msra.mxu0 %v1237
    %2663 = vmatprep.subr.bf16.mxu0 %v1242
    %2664 = vmatpush1.bf16.msra.mxu0 %v1241
    %2665 = vmatprep.subr.bf16.mxu0 %v1246
    %2666 = vmatpush1.bf16.msra.mxu0 %v1245
    %2667 = vmatprep.subr.bf16.mxu0 %v1250
    %2668 = vmatpush1.bf16.msra.mxu0 %v1249
    %2669 = vmatprep.subr.bf16.mxu0 %v1254
    %2670 = vmatpush1.bf16.msra.mxu0 %v1253
    %2671 = vmatprep.subr.bf16.mxu0 %v1258
    %2672 = vmatpush1.bf16.msra.mxu0 %v1257
    %2673 = vmatprep.subr.bf16.mxu0 %v1262
    %2674 = vmatpush1.bf16.msra.mxu0 %v1261
    %2675 = vmatprep.subr.bf16.mxu0 %v1266
    %2676 = vmatpush1.bf16.msra.mxu0 %v1265
    %2677 = vmatprep.mubr.bf16.mxu0 %v2278
    %2678 = vmatmul.mubr.bf16.gmra.mrb[0].mxu0 %v2385
    %v2679 = vpop.f32.mrb[0].mxu0
    %v2680 = vadd.f32 %v1002, %v2679
    %v2681 = vpop.f32.mrb[0].mxu0
    %v2682 = vadd.f32 %v1006, %v2681
    %v2683 = vpop.f32.mrb[0].mxu0
    %v2684 = vpop.f32.mrb[0].mxu0
    %2685 = vdwg.mxu0
    %v2686 = vxor.u32 %v2639, 2147483648
    %v2687 = vmul.f32 %v2686, 1.442695
    %v2688 = vpow.pop %v2687
    %v2689 = vadd.f32 %v2688, 1.0
    %v2690 = vrcp.pop %v2689
    %v2691 = vmul.f32 1.0, %v2690
    %v2692 = vxor.u32 %v2641, 2147483648
    %v2693 = vmul.f32 %v2692, 1.442695
    %v2694 = vpow.pop %v2693
    %v2695 = vadd.f32 %v2694, 1.0
    %v2696 = vrcp.pop %v2695
    %v2697 = vmul.f32 1.0, %v2696
    %v2698 = vtanh.pop %v2680
    %v2699 = vxor.u32 %v2682, 2147483648
    %v2700 = vmul.f32 %v2699, 1.442695
    %v2701 = vpow.pop %v2700
    %v2702 = vadd.f32 %v2701, 1.0
    %v2703 = vrcp.pop %v2702
    %v2704 = vmul.f32 1.0, %v2703
    %v2705 = vmul.f32 %v2697, %v2382
    %v2706 = vmul.f32 %v2691, %v2698
    %v2707 = vadd.f32 %v2705, %v2706
    %v2708 = vtanh.pop %v2707
    %v2709 = vmul.f32 %v2704, %v2708
    %v2710 = vpack.c.bf16 %v2709, %v2709
    %v2711 = vpack.c.bf16 %v2492, %v2492
    %2712 = vmatprep.subr.bf16.mxu0 %v1935
    %2713 = vmatpush1.bf16.msra.mxu0 %v1934
    %2714 = vmatprep.subr.bf16.mxu0 %v1939
    %2715 = vmatpush1.bf16.msra.mxu0 %v1938
    %2716 = vmatprep.subr.bf16.mxu0 %v1943
    %2717 = vmatpush1.bf16.msra.mxu0 %v1942
    %2718 = vmatprep.subr.bf16.mxu0 %v1947
    %2719 = vmatpush1.bf16.msra.mxu0 %v1946
    %2720 = vmatprep.subr.bf16.mxu0 %v1951
    %2721 = vmatpush1.bf16.msra.mxu0 %v1950
    %2722 = vmatprep.subr.bf16.mxu0 %v1955
    %2723 = vmatpush1.bf16.msra.mxu0 %v1954
    %2724 = vmatprep.subr.bf16.mxu0 %v1959
    %2725 = vmatpush1.bf16.msra.mxu0 %v1958
    %2726 = vmatprep.subr.bf16.mxu0 %v1963
    %2727 = vmatpush1.bf16.msra.mxu0 %v1962
    %2728 = vmatprep.subr.bf16.mxu0 %v1967
    %2729 = vmatpush1.bf16.msra.mxu0 %v1966
    %2730 = vmatprep.subr.bf16.mxu0 %v1971
    %2731 = vmatpush1.bf16.msra.mxu0 %v1970
    %2732 = vmatprep.subr.bf16.mxu0 %v1975
    %2733 = vmatpush1.bf16.msra.mxu0 %v1974
    %2734 = vmatprep.subr.bf16.mxu0 %v1979
    %2735 = vmatpush1.bf16.msra.mxu0 %v1978
    %2736 = vmatprep.subr.bf16.mxu0 %v1983
    %2737 = vmatpush1.bf16.msra.mxu0 %v1982
    %2738 = vmatprep.subr.bf16.mxu0 %v1987
    %2739 = vmatpush1.bf16.msra.mxu0 %v1986
    %2740 = vmatprep.subr.bf16.mxu0 %v1991
    %2741 = vmatpush1.bf16.msra.mxu0 %v1990
    %2742 = vmatprep.subr.bf16.mxu0 %v1995
    %2743 = vmatpush1.bf16.msra.mxu0 %v1994
    %2744 = vmatprep.mubr.bf16.mxu0 %v2385
    %2745 = vmatmul.mubr.bf16.gmra.mrb[0].mxu0 %v2711
    %v2746 = vpop.f32.mrb[0].mxu0
    %v2747 = vadd.f32 %v1725, %v2746
    %v2748 = vpop.f32.mrb[0].mxu0
    %v2749 = vadd.f32 %v1729, %v2748
    %v2750 = vpop.f32.mrb[0].mxu0
    %v2751 = vpop.f32.mrb[0].mxu0
    %2752 = vdwg.mxu0
    %2753 = vmatprep.subr.bf16.mxu0 %v1937
    %2754 = vmatpush1.bf16.msra.mxu0 %v1936
    %2755 = vmatprep.subr.bf16.mxu0 %v1941
    %2756 = vmatpush1.bf16.msra.mxu0 %v1940
    %2757 = vmatprep.subr.bf16.mxu0 %v1945
    %2758 = vmatpush1.bf16.msra.mxu0 %v1944
    %2759 = vmatprep.subr.bf16.mxu0 %v1949
    %2760 = vmatpush1.bf16.msra.mxu0 %v1948
    %2761 = vmatprep.subr.bf16.mxu0 %v1953
    %2762 = vmatpush1.bf16.msra.mxu0 %v1952
    %2763 = vmatprep.subr.bf16.mxu0 %v1957
    %2764 = vmatpush1.bf16.msra.mxu0 %v1956
    %2765 = vmatprep.subr.bf16.mxu0 %v1961
    %2766 = vmatpush1.bf16.msra.mxu0 %v1960
    %2767 = vmatprep.subr.bf16.mxu0 %v1965
    %2768 = vmatpush1.bf16.msra.mxu0 %v1964
    %2769 = vmatprep.subr.bf16.mxu0 %v1969
    %2770 = vmatpush1.bf16.msra.mxu0 %v1968
    %2771 = vmatprep.subr.bf16.mxu0 %v1973
    %2772 = vmatpush1.bf16.msra.mxu0 %v1972
    %2773 = vmatprep.subr.bf16.mxu0 %v1977
    %2774 = vmatpush1.bf16.msra.mxu0 %v1976
    %2775 = vmatprep.subr.bf16.mxu0 %v1981
    %2776 = vmatpush1.bf16.msra.mxu0 %v1980
    %2777 = vmatprep.subr.bf16.mxu0 %v1985
    %2778 = vmatpush1.bf16.msra.mxu0 %v1984
    %2779 = vmatprep.subr.bf16.mxu0 %v1989
    %2780 = vmatpush1.bf16.msra.mxu0 %v1988
    %2781 = vmatprep.subr.bf16.mxu0 %v1993
    %2782 = vmatpush1.bf16.msra.mxu0 %v1992
    %2783 = vmatprep.subr.bf16.mxu0 %v1997
    %2784 = vmatpush1.bf16.msra.mxu0 %v1996
    %2785 = vmatprep.mubr.bf16.mxu0 %v2385
    %2786 = vmatmul.mubr.bf16.gmra.mrb[0].mxu0 %v2711
    %v2787 = vpop.f32.mrb[0].mxu0
    %v2788 = vadd.f32 %v1733, %v2787
    %v2789 = vpop.f32.mrb[0].mxu0
    %v2790 = vadd.f32 %v1737, %v2789
    %v2791 = vpop.f32.mrb[0].mxu0
    %v2792 = vpop.f32.mrb[0].mxu0
    %2793 = vdwg.mxu0
    %v2794 = vxor.u32 %v2747, 2147483648
    %v2795 = vmul.f32 %v2794, 1.442695
    %v2796 = vpow.pop %v2795
    %v2797 = vadd.f32 %v2796, 1.0
    %v2798 = vrcp.pop %v2797
    %v2799 = vmul.f32 1.0, %v2798
    %v2800 = vxor.u32 %v2749, 2147483648
    %v2801 = vmul.f32 %v2800, 1.442695
    %v2802 = vpow.pop %v2801
    %v2803 = vadd.f32 %v2802, 1.0
    %v2804 = vrcp.pop %v2803
    %v2805 = vmul.f32 1.0, %v2804
    %v2806 = vtanh.pop %v2788
    %v2807 = vxor.u32 %v2790, 2147483648
    %v2808 = vmul.f32 %v2807, 1.442695
    %v2809 = vpow.pop %v2808
    %v2810 = vadd.f32 %v2809, 1.0
    %v2811 = vrcp.pop %v2810
    %v2812 = vmul.f32 1.0, %v2811
    %v2813 = vmul.f32 %v2805, %v2490
    %v2814 = vmul.f32 %v2799, %v2806
    %v2815 = vadd.f32 %v2813, %v2814
    %v2816 = vtanh.pop %v2815
    %v2817 = vmul.f32 %v2812, %v2816
    %2818 = vmatprep.subr.bf16.mxu0 %v640
    %2819 = vmatpush1.bf16.msra.mxu0 %v639
    %2820 = vmatprep.subr.bf16.mxu0 %v644
    %2821 = vmatpush1.bf16.msra.mxu0 %v643
    %2822 = vmatprep.subr.bf16.mxu0 %v648
    %2823 = vmatpush1.bf16.msra.mxu0 %v647
    %2824 = vmatprep.subr.bf16.mxu0 %v652
    %2825 = vmatpush1.bf16.msra.mxu0 %v651
    %2826 = vmatprep.subr.bf16.mxu0 %v656
    %2827 = vmatpush1.bf16.msra.mxu0 %v655
    %2828 = vmatprep.subr.bf16.mxu0 %v660
    %2829 = vmatpush1.bf16.msra.mxu0 %v659
    %2830 = vmatprep.subr.bf16.mxu0 %v664
    %2831 = vmatpush1.bf16.msra.mxu0 %v663
    %2832 = vmatprep.subr.bf16.mxu0 %v668
    %2833 = vmatpush1.bf16.msra.mxu0 %v667
    %2834 = vmatprep.subr.bf16.mxu0 0
    %2835 = vmatpush1.bf16.msra.mxu0 0
    %2836 = vmatprep.subr.bf16.mxu0 0
    %2837 = vmatpush1.bf16.msra.mxu0 0
    %2838 = vmatprep.subr.bf16.mxu0 0
    %2839 = vmatpush1.bf16.msra.mxu0 0
    %2840 = vmatprep.subr.bf16.mxu0 0
    %2841 = vmatpush1.bf16.msra.mxu0 0
    %2842 = vmatprep.subr.bf16.mxu0 0
    %2843 = vmatpush1.bf16.msra.mxu0 0
    %2844 = vmatprep.subr.bf16.mxu0 0
    %2845 = vmatpush1.bf16.msra.mxu0 0
    %2846 = vmatprep.subr.bf16.mxu0 0
    %2847 = vmatpush1.bf16.msra.mxu0 0
    %2848 = vmatprep.subr.bf16.mxu0 0
    %2849 = vmatpush1.bf16.msra.mxu0 0
    %2850 = vmatprep.mubr.bf16.mxu0 0
    %2851 = vmatmul.mubr.bf16.gmra.mrb[0].mxu0 %v2603
    %v2852 = vpop.f32.mrb[0].mxu0
    %v2853 = vadd.f32 0.0, %v2852
    %v2854 = vpop.f32.mrb[0].mxu0
    %v2855 = vadd.f32 0.0, %v2854
    %v2856 = vpop.f32.mrb[0].mxu0
    %v2857 = vpop.f32.mrb[0].mxu0
    %2858 = vdwg.mxu0
    %2859 = vmatprep.subr.bf16.mxu0 %v642
    %2860 = vmatpush1.bf16.msra.mxu0 %v641
    %2861 = vmatprep.subr.bf16.mxu0 %v646
    %2862 = vmatpush1.bf16.msra.mxu0 %v645
    %2863 = vmatprep.subr.bf16.mxu0 %v650
    %2864 = vmatpush1.bf16.msra.mxu0 %v649
    %2865 = vmatprep.subr.bf16.mxu0 %v654
    %2866 = vmatpush1.bf16.msra.mxu0 %v653
    %2867 = vmatprep.subr.bf16.mxu0 %v658
    %2868 = vmatpush1.bf16.msra.mxu0 %v657
    %2869 = vmatprep.subr.bf16.mxu0 %v662
    %2870 = vmatpush1.bf16.msra.mxu0 %v661
    %2871 = vmatprep.subr.bf16.mxu0 %v666
    %2872 = vmatpush1.bf16.msra.mxu0 %v665
    %2873 = vmatprep.subr.bf16.mxu0 %v670
    %2874 = vmatpush1.bf16.msra.mxu0 %v669
    %2875 = vmatprep.subr.bf16.mxu0 0
    %2876 = vmatpush1.bf16.msra.mxu0 0
    %2877 = vmatprep.subr.bf16.mxu0 0
    %2878 = vmatpush1.bf16.msra.mxu0 0
    %2879 = vmatprep.subr.bf16.mxu0 0
    %2880 = vmatpush1.bf16.msra.mxu0 0
    %2881 = vmatprep.subr.bf16.mxu0 0
    %2882 = vmatpush1.bf16.msra.mxu0 0
    %2883 = vmatprep.subr.bf16.mxu0 0
    %2884 = vmatpush1.bf16.msra.mxu0 0
    %2885 = vmatprep.subr.bf16.mxu0 0
    %2886 = vmatpush1.bf16.msra.mxu0 0
    %2887 = vmatprep.subr.bf16.mxu0 0
    %2888 = vmatpush1.bf16.msra.mxu0 0
    %2889 = vmatprep.subr.bf16.mxu0 0
    %2890 = vmatpush1.bf16.msra.mxu0 0
    %2891 = vmatprep.mubr.bf16.mxu0 0
    %2892 = vmatmul.mubr.bf16.gmra.mrb[0].mxu0 %v2603
    %v2893 = vpop.f32.mrb[0].mxu0
    %v2894 = vadd.f32 0.0, %v2893
    %v2895 = vpop.f32.mrb[0].mxu0
    %v2896 = vadd.f32 0.0, %v2895
    %v2897 = vpop.f32.mrb[0].mxu0
    %v2898 = vpop.f32.mrb[0].mxu0
    %2899 = vdwg.mxu0
    %v2900 = vadd.f32 %v424, %v2853
    %v2901 = vadd.f32 %v426, %v2855
    %v2902 = vadd.f32 %v497, %v2894
    %v2903 = vadd.f32 %v499, %v2896
    %v2904 = vxor.u32 %v2900, 2147483648
    %v2905 = vmul.f32 %v2904, 1.442695
    %v2906 = vpow.pop %v2905
    %v2907 = vadd.f32 %v2906, 1.0
    %v2908 = vrcp.pop %v2907
    %v2909 = vmul.f32 1.0, %v2908
    %v2910 = vxor.u32 %v2901, 2147483648
    %v2911 = vmul.f32 %v2910, 1.442695
    %v2912 = vpow.pop %v2911
    %v2913 = vadd.f32 %v2912, 1.0
    %v2914 = vrcp.pop %v2913
    %v2915 = vmul.f32 1.0, %v2914
    %v2916 = vtanh.pop %v2902
    %v2917 = vxor.u32 %v2903, 2147483648
    %v2918 = vmul.f32 %v2917, 1.442695
    %v2919 = vpow.pop %v2918
    %v2920 = vadd.f32 %v2919, 1.0
    %v2921 = vrcp.pop %v2920
    %v2922 = vmul.f32 1.0, %v2921
    %v2923 = vmul.f32 %v2915, %v2600
    %v2924 = vmul.f32 %v2909, %v2916
    %v2925 = vadd.f32 %v2923, %v2924
    %v2926 = vtanh.pop %v2925
    %v2927 = vmul.f32 %v2922, %v2926
    %v2928 = vpack.c.bf16 %v2927, %v2927
    %2929 = vmatprep.subr.bf16.mxu0 %v1204
    %2930 = vmatpush1.bf16.msra.mxu0 %v1203
    %2931 = vmatprep.subr.bf16.mxu0 %v1208
    %2932 = vmatpush1.bf16.msra.mxu0 %v1207
    %2933 = vmatprep.subr.bf16.mxu0 %v1212
    %2934 = vmatpush1.bf16.msra.mxu0 %v1211
    %2935 = vmatprep.subr.bf16.mxu0 %v1216
    %2936 = vmatpush1.bf16.msra.mxu0 %v1215
    %2937 = vmatprep.subr.bf16.mxu0 %v1220
    %2938 = vmatpush1.bf16.msra.mxu0 %v1219
    %2939 = vmatprep.subr.bf16.mxu0 %v1224
    %2940 = vmatpush1.bf16.msra.mxu0 %v1223
    %2941 = vmatprep.subr.bf16.mxu0 %v1228
    %2942 = vmatpush1.bf16.msra.mxu0 %v1227
    %2943 = vmatprep.subr.bf16.mxu0 %v1232
    %2944 = vmatpush1.bf16.msra.mxu0 %v1231
    %2945 = vmatprep.subr.bf16.mxu0 %v1236
    %2946 = vmatpush1.bf16.msra.mxu0 %v1235
    %2947 = vmatprep.subr.bf16.mxu0 %v1240
    %2948 = vmatpush1.bf16.msra.mxu0 %v1239
    %2949 = vmatprep.subr.bf16.mxu0 %v1244
    %2950 = vmatpush1.bf16.msra.mxu0 %v1243
    %2951 = vmatprep.subr.bf16.mxu0 %v1248
    %2952 = vmatpush1.bf16.msra.mxu0 %v1247
    %2953 = vmatprep.subr.bf16.mxu0 %v1252
    %2954 = vmatpush1.bf16.msra.mxu0 %v1251
    %2955 = vmatprep.subr.bf16.mxu0 %v1256
    %2956 = vmatpush1.bf16.msra.mxu0 %v1255
    %2957 = vmatprep.subr.bf16.mxu0 %v1260
    %2958 = vmatpush1.bf16.msra.mxu0 %v1259
    %2959 = vmatprep.subr.bf16.mxu0 %v1264
    %2960 = vmatpush1.bf16.msra.mxu0 %v1263
    %2961 = vmatprep.mubr.bf16.mxu0 %v2603
    %2962 = vmatmul.mubr.bf16.gmra.mrb[0].mxu0 %v2710
    %v2963 = vpop.f32.mrb[0].mxu0
    %v2964 = vadd.f32 %v994, %v2963
    %v2965 = vpop.f32.mrb[0].mxu0
    %v2966 = vadd.f32 %v998, %v2965
    %v2967 = vpop.f32.mrb[0].mxu0
    %v2968 = vpop.f32.mrb[0].mxu0
    %2969 = vdwg.mxu0
    %2970 = vmatprep.subr.bf16.mxu0 %v1206
    %2971 = vmatpush1.bf16.msra.mxu0 %v1205
    %2972 = vmatprep.subr.bf16.mxu0 %v1210
    %2973 = vmatpush1.bf16.msra.mxu0 %v1209
    %2974 = vmatprep.subr.bf16.mxu0 %v1214
    %2975 = vmatpush1.bf16.msra.mxu0 %v1213
    %2976 = vmatprep.subr.bf16.mxu0 %v1218
    %2977 = vmatpush1.bf16.msra.mxu0 %v1217
    %2978 = vmatprep.subr.bf16.mxu0 %v1222
    %2979 = vmatpush1.bf16.msra.mxu0 %v1221
    %2980 = vmatprep.subr.bf16.mxu0 %v1226
    %2981 = vmatpush1.bf16.msra.mxu0 %v1225
    %2982 = vmatprep.subr.bf16.mxu0 %v1230
    %2983 = vmatpush1.bf16.msra.mxu0 %v1229
    %2984 = vmatprep.subr.bf16.mxu0 %v1234
    %2985 = vmatpush1.bf16.msra.mxu0 %v1233
    %2986 = vmatprep.subr.bf16.mxu0 %v1238
    %2987 = vmatpush1.bf16.msra.mxu0 %v1237
    %2988 = vmatprep.subr.bf16.mxu0 %v1242
    %2989 = vmatpush1.bf16.msra.mxu0 %v1241
    %2990 = vmatprep.subr.bf16.mxu0 %v1246
    %2991 = vmatpush1.bf16.msra.mxu0 %v1245
    %2992 = vmatprep.subr.bf16.mxu0 %v1250
    %2993 = vmatpush1.bf16.msra.mxu0 %v1249
    %2994 = vmatprep.subr.bf16.mxu0 %v1254
    %2995 = vmatpush1.bf16.msra.mxu0 %v1253
    %2996 = vmatprep.subr.bf16.mxu0 %v1258
    %2997 = vmatpush1.bf16.msra.mxu0 %v1257
    %2998 = vmatprep.subr.bf16.mxu0 %v1262
    %2999 = vmatpush1.bf16.msra.mxu0 %v1261
    %3000 = vmatprep.subr.bf16.mxu0 %v1266
    %3001 = vmatpush1.bf16.msra.mxu0 %v1265
    %3002 = vmatprep.mubr.bf16.mxu0 %v2603
    %3003 = vmatmul.mubr.bf16.gmra.mrb[0].mxu0 %v2710
    %v3004 = vpop.f32.mrb[0].mxu0
    %v3005 = vadd.f32 %v1002, %v3004
    %v3006 = vpop.f32.mrb[0].mxu0
    %v3007 = vadd.f32 %v1006, %v3006
    %v3008 = vpop.f32.mrb[0].mxu0
    %v3009 = vpop.f32.mrb[0].mxu0
    %3010 = vdwg.mxu0
    %v3011 = vxor.u32 %v2964, 2147483648
    %v3012 = vmul.f32 %v3011, 1.442695
    %v3013 = vpow.pop %v3012
    %v3014 = vadd.f32 %v3013, 1.0
    %v3015 = vrcp.pop %v3014
    %v3016 = vmul.f32 1.0, %v3015
    %v3017 = vxor.u32 %v2966, 2147483648
    %v3018 = vmul.f32 %v3017, 1.442695
    %v3019 = vpow.pop %v3018
    %v3020 = vadd.f32 %v3019, 1.0
    %v3021 = vrcp.pop %v3020
    %v3022 = vmul.f32 1.0, %v3021
    %v3023 = vtanh.pop %v3005
    %v3024 = vxor.u32 %v3007, 2147483648
    %v3025 = vmul.f32 %v3024, 1.442695
    %v3026 = vpow.pop %v3025
    %v3027 = vadd.f32 %v3026, 1.0
    %v3028 = vrcp.pop %v3027
    %v3029 = vmul.f32 1.0, %v3028
    %v3030 = vmul.f32 %v3022, %v2707
    %v3031 = vmul.f32 %v3016, %v3023
    %v3032 = vadd.f32 %v3030, %v3031
    %v3033 = vtanh.pop %v3032
    %v3034 = vmul.f32 %v3029, %v3033
    %v3035 = vpack.c.bf16 %v3034, %v3034
    %v3036 = vpack.c.bf16 %v2817, %v2817
    %3037 = vmatprep.subr.bf16.mxu0 %v1935
    %3038 = vmatpush1.bf16.msra.mxu0 %v1934
    %3039 = vmatprep.subr.bf16.mxu0 %v1939
    %3040 = vmatpush1.bf16.msra.mxu0 %v1938
    %3041 = vmatprep.subr.bf16.mxu0 %v1943
    %3042 = vmatpush1.bf16.msra.mxu0 %v1942
    %3043 = vmatprep.subr.bf16.mxu0 %v1947
    %3044 = vmatpush1.bf16.msra.mxu0 %v1946
    %3045 = vmatprep.subr.bf16.mxu0 %v1951
    %3046 = vmatpush1.bf16.msra.mxu0 %v1950
    %3047 = vmatprep.subr.bf16.mxu0 %v1955
    %3048 = vmatpush1.bf16.msra.mxu0 %v1954
    %3049 = vmatprep.subr.bf16.mxu0 %v1959
    %3050 = vmatpush1.bf16.msra.mxu0 %v1958
    %3051 = vmatprep.subr.bf16.mxu0 %v1963
    %3052 = vmatpush1.bf16.msra.mxu0 %v1962
    %3053 = vmatprep.subr.bf16.mxu0 %v1967
    %3054 = vmatpush1.bf16.msra.mxu0 %v1966
    %3055 = vmatprep.subr.bf16.mxu0 %v1971
    %3056 = vmatpush1.bf16.msra.mxu0 %v1970
    %3057 = vmatprep.subr.bf16.mxu0 %v1975
    %3058 = vmatpush1.bf16.msra.mxu0 %v1974
    %3059 = vmatprep.subr.bf16.mxu0 %v1979
    %3060 = vmatpush1.bf16.msra.mxu0 %v1978
    %3061 = vmatprep.subr.bf16.mxu0 %v1983
    %3062 = vmatpush1.bf16.msra.mxu0 %v1982
    %3063 = vmatprep.subr.bf16.mxu0 %v1987
    %3064 = vmatpush1.bf16.msra.mxu0 %v1986
    %3065 = vmatprep.subr.bf16.mxu0 %v1991
    %3066 = vmatpush1.bf16.msra.mxu0 %v1990
    %3067 = vmatprep.subr.bf16.mxu0 %v1995
    %3068 = vmatpush1.bf16.msra.mxu0 %v1994
    %3069 = vmatprep.mubr.bf16.mxu0 %v2710
    %3070 = vmatmul.mubr.bf16.gmra.mrb[0].mxu0 %v3036
    %v3071 = vpop.f32.mrb[0].mxu0
    %v3072 = vadd.f32 %v1725, %v3071
    %v3073 = vpop.f32.mrb[0].mxu0
    %v3074 = vadd.f32 %v1729, %v3073
    %v3075 = vpop.f32.mrb[0].mxu0
    %v3076 = vpop.f32.mrb[0].mxu0
    %3077 = vdwg.mxu0
    %3078 = vmatprep.subr.bf16.mxu0 %v1937
    %3079 = vmatpush1.bf16.msra.mxu0 %v1936
    %3080 = vmatprep.subr.bf16.mxu0 %v1941
    %3081 = vmatpush1.bf16.msra.mxu0 %v1940
    %3082 = vmatprep.subr.bf16.mxu0 %v1945
    %3083 = vmatpush1.bf16.msra.mxu0 %v1944
    %3084 = vmatprep.subr.bf16.mxu0 %v1949
    %3085 = vmatpush1.bf16.msra.mxu0 %v1948
    %3086 = vmatprep.subr.bf16.mxu0 %v1953
    %3087 = vmatpush1.bf16.msra.mxu0 %v1952
    %3088 = vmatprep.subr.bf16.mxu0 %v1957
    %3089 = vmatpush1.bf16.msra.mxu0 %v1956
    %3090 = vmatprep.subr.bf16.mxu0 %v1961
    %3091 = vmatpush1.bf16.msra.mxu0 %v1960
    %3092 = vmatprep.subr.bf16.mxu0 %v1965
    %3093 = vmatpush1.bf16.msra.mxu0 %v1964
    %3094 = vmatprep.subr.bf16.mxu0 %v1969
    %3095 = vmatpush1.bf16.msra.mxu0 %v1968
    %3096 = vmatprep.subr.bf16.mxu0 %v1973
    %3097 = vmatpush1.bf16.msra.mxu0 %v1972
    %3098 = vmatprep.subr.bf16.mxu0 %v1977
    %3099 = vmatpush1.bf16.msra.mxu0 %v1976
    %3100 = vmatprep.subr.bf16.mxu0 %v1981
    %3101 = vmatpush1.bf16.msra.mxu0 %v1980
    %3102 = vmatprep.subr.bf16.mxu0 %v1985
    %3103 = vmatpush1.bf16.msra.mxu0 %v1984
    %3104 = vmatprep.subr.bf16.mxu0 %v1989
    %3105 = vmatpush1.bf16.msra.mxu0 %v1988
    %3106 = vmatprep.subr.bf16.mxu0 %v1993
    %3107 = vmatpush1.bf16.msra.mxu0 %v1992
    %3108 = vmatprep.subr.bf16.mxu0 %v1997
    %3109 = vmatpush1.bf16.msra.mxu0 %v1996
    %3110 = vmatprep.mubr.bf16.mxu0 %v2710
    %3111 = vmatmul.mubr.bf16.gmra.mrb[0].mxu0 %v3036
    %v3112 = vpop.f32.mrb[0].mxu0
    %v3113 = vadd.f32 %v1733, %v3112
    %v3114 = vpop.f32.mrb[0].mxu0
    %v3115 = vadd.f32 %v1737, %v3114
    %v3116 = vpop.f32.mrb[0].mxu0
    %v3117 = vpop.f32.mrb[0].mxu0
    %3118 = vdwg.mxu0
    %v3119 = vxor.u32 %v3072, 2147483648
    %v3120 = vmul.f32 %v3119, 1.442695
    %v3121 = vpow.pop %v3120
    %v3122 = vadd.f32 %v3121, 1.0
    %v3123 = vrcp.pop %v3122
    %v3124 = vmul.f32 1.0, %v3123
    %v3125 = vxor.u32 %v3074, 2147483648
    %v3126 = vmul.f32 %v3125, 1.442695
    %v3127 = vpow.pop %v3126
    %v3128 = vadd.f32 %v3127, 1.0
    %v3129 = vrcp.pop %v3128
    %v3130 = vmul.f32 1.0, %v3129
    %v3131 = vtanh.pop %v3113
    %v3132 = vxor.u32 %v3115, 2147483648
    %v3133 = vmul.f32 %v3132, 1.442695
    %v3134 = vpow.pop %v3133
    %v3135 = vadd.f32 %v3134, 1.0
    %v3136 = vrcp.pop %v3135
    %v3137 = vmul.f32 1.0, %v3136
    %v3138 = vmul.f32 %v3130, %v2815
    %v3139 = vmul.f32 %v3124, %v3131
    %v3140 = vadd.f32 %v3138, %v3139
    %v3141 = vtanh.pop %v3140
    %v3142 = vmul.f32 %v3137, %v3141
    %3143 = vmatprep.subr.bf16.mxu0 %v640
    %3144 = vmatpush1.bf16.msra.mxu0 %v639
    %3145 = vmatprep.subr.bf16.mxu0 %v644
    %3146 = vmatpush1.bf16.msra.mxu0 %v643
    %3147 = vmatprep.subr.bf16.mxu0 %v648
    %3148 = vmatpush1.bf16.msra.mxu0 %v647
    %3149 = vmatprep.subr.bf16.mxu0 %v652
    %3150 = vmatpush1.bf16.msra.mxu0 %v651
    %3151 = vmatprep.subr.bf16.mxu0 %v656
    %3152 = vmatpush1.bf16.msra.mxu0 %v655
    %3153 = vmatprep.subr.bf16.mxu0 %v660
    %3154 = vmatpush1.bf16.msra.mxu0 %v659
    %3155 = vmatprep.subr.bf16.mxu0 %v664
    %3156 = vmatpush1.bf16.msra.mxu0 %v663
    %3157 = vmatprep.subr.bf16.mxu0 %v668
    %3158 = vmatpush1.bf16.msra.mxu0 %v667
    %3159 = vmatprep.subr.bf16.mxu0 0
    %3160 = vmatpush1.bf16.msra.mxu0 0
    %3161 = vmatprep.subr.bf16.mxu0 0
    %3162 = vmatpush1.bf16.msra.mxu0 0
    %3163 = vmatprep.subr.bf16.mxu0 0
    %3164 = vmatpush1.bf16.msra.mxu0 0
    %3165 = vmatprep.subr.bf16.mxu0 0
    %3166 = vmatpush1.bf16.msra.mxu0 0
    %3167 = vmatprep.subr.bf16.mxu0 0
    %3168 = vmatpush1.bf16.msra.mxu0 0
    %3169 = vmatprep.subr.bf16.mxu0 0
    %3170 = vmatpush1.bf16.msra.mxu0 0
    %3171 = vmatprep.subr.bf16.mxu0 0
    %3172 = vmatpush1.bf16.msra.mxu0 0
    %3173 = vmatprep.subr.bf16.mxu0 0
    %3174 = vmatpush1.bf16.msra.mxu0 0
    %3175 = vmatprep.mubr.bf16.mxu0 0
    %3176 = vmatmul.mubr.bf16.gmra.mrb[0].mxu0 %v2928
    %v3177 = vpop.f32.mrb[0].mxu0
    %v3178 = vadd.f32 0.0, %v3177
    %v3179 = vpop.f32.mrb[0].mxu0
    %v3180 = vadd.f32 0.0, %v3179
    %v3181 = vpop.f32.mrb[0].mxu0
    %v3182 = vpop.f32.mrb[0].mxu0
    %3183 = vdwg.mxu0
    %3184 = vmatprep.subr.bf16.mxu0 %v642
    %3185 = vmatpush1.bf16.msra.mxu0 %v641
    %3186 = vmatprep.subr.bf16.mxu0 %v646
    %3187 = vmatpush1.bf16.msra.mxu0 %v645
    %3188 = vmatprep.subr.bf16.mxu0 %v650
    %3189 = vmatpush1.bf16.msra.mxu0 %v649
    %3190 = vmatprep.subr.bf16.mxu0 %v654
    %3191 = vmatpush1.bf16.msra.mxu0 %v653
    %3192 = vmatprep.subr.bf16.mxu0 %v658
    %3193 = vmatpush1.bf16.msra.mxu0 %v657
    %3194 = vmatprep.subr.bf16.mxu0 %v662
    %3195 = vmatpush1.bf16.msra.mxu0 %v661
    %3196 = vmatprep.subr.bf16.mxu0 %v666
    %3197 = vmatpush1.bf16.msra.mxu0 %v665
    %3198 = vmatprep.subr.bf16.mxu0 %v670
    %3199 = vmatpush1.bf16.msra.mxu0 %v669
    %3200 = vmatprep.subr.bf16.mxu0 0
    %3201 = vmatpush1.bf16.msra.mxu0 0
    %3202 = vmatprep.subr.bf16.mxu0 0
    %3203 = vmatpush1.bf16.msra.mxu0 0
    %3204 = vmatprep.subr.bf16.mxu0 0
    %3205 = vmatpush1.bf16.msra.mxu0 0
    %3206 = vmatprep.subr.bf16.mxu0 0
    %3207 = vmatpush1.bf16.msra.mxu0 0
    %3208 = vmatprep.subr.bf16.mxu0 0
    %3209 = vmatpush1.bf16.msra.mxu0 0
    %3210 = vmatprep.subr.bf16.mxu0 0
    %3211 = vmatpush1.bf16.msra.mxu0 0
    %3212 = vmatprep.subr.bf16.mxu0 0
    %3213 = vmatpush1.bf16.msra.mxu0 0
    %3214 = vmatprep.subr.bf16.mxu0 0
    %3215 = vmatpush1.bf16.msra.mxu0 0
    %3216 = vmatprep.mubr.bf16.mxu0 0
    %3217 = vmatmul.mubr.bf16.gmra.mrb[0].mxu0 %v2928
    %v3218 = vpop.f32.mrb[0].mxu0
    %v3219 = vadd.f32 0.0, %v3218
    %v3220 = vpop.f32.mrb[0].mxu0
    %v3221 = vadd.f32 0.0, %v3220
    %v3222 = vpop.f32.mrb[0].mxu0
    %v3223 = vpop.f32.mrb[0].mxu0
    %3224 = vdwg.mxu0
    %v3225 = vadd.f32 %v430, %v3178
    %v3226 = vadd.f32 %v432, %v3180
    %v3227 = vadd.f32 %v503, %v3219
    %v3228 = vadd.f32 %v505, %v3221
    %v3229 = vxor.u32 %v3225, 2147483648
    %v3230 = vmul.f32 %v3229, 1.442695
    %v3231 = vpow.pop %v3230
    %v3232 = vadd.f32 %v3231, 1.0
    %v3233 = vrcp.pop %v3232
    %v3234 = vmul.f32 1.0, %v3233
    %v3235 = vxor.u32 %v3226, 2147483648
    %v3236 = vmul.f32 %v3235, 1.442695
    %v3237 = vpow.pop %v3236
    %v3238 = vadd.f32 %v3237, 1.0
    %v3239 = vrcp.pop %v3238
    %v3240 = vmul.f32 1.0, %v3239
    %v3241 = vtanh.pop %v3227
    %v3242 = vxor.u32 %v3228, 2147483648
    %v3243 = vmul.f32 %v3242, 1.442695
    %v3244 = vpow.pop %v3243
    %v3245 = vadd.f32 %v3244, 1.0
    %v3246 = vrcp.pop %v3245
    %v3247 = vmul.f32 1.0, %v3246
    %v3248 = vmul.f32 %v3240, %v2925
    %v3249 = vmul.f32 %v3234, %v3241
    %v3250 = vadd.f32 %v3248, %v3249
    %v3251 = vtanh.pop %v3250
    %v3252 = vmul.f32 %v3247, %v3251
    %v3253 = vpack.c.bf16 %v3252, %v3252
    %3254 = vmatprep.subr.bf16.mxu0 %v1204
    %3255 = vmatpush1.bf16.msra.mxu0 %v1203
    %3256 = vmatprep.subr.bf16.mxu0 %v1208
    %3257 = vmatpush1.bf16.msra.mxu0 %v1207
    %3258 = vmatprep.subr.bf16.mxu0 %v1212
    %3259 = vmatpush1.bf16.msra.mxu0 %v1211
    %3260 = vmatprep.subr.bf16.mxu0 %v1216
    %3261 = vmatpush1.bf16.msra.mxu0 %v1215
    %3262 = vmatprep.subr.bf16.mxu0 %v1220
    %3263 = vmatpush1.bf16.msra.mxu0 %v1219
    %3264 = vmatprep.subr.bf16.mxu0 %v1224
    %3265 = vmatpush1.bf16.msra.mxu0 %v1223
    %3266 = vmatprep.subr.bf16.mxu0 %v1228
    %3267 = vmatpush1.bf16.msra.mxu0 %v1227
    %3268 = vmatprep.subr.bf16.mxu0 %v1232
    %3269 = vmatpush1.bf16.msra.mxu0 %v1231
    %3270 = vmatprep.subr.bf16.mxu0 %v1236
    %3271 = vmatpush1.bf16.msra.mxu0 %v1235
    %3272 = vmatprep.subr.bf16.mxu0 %v1240
    %3273 = vmatpush1.bf16.msra.mxu0 %v1239
    %3274 = vmatprep.subr.bf16.mxu0 %v1244
    %3275 = vmatpush1.bf16.msra.mxu0 %v1243
    %3276 = vmatprep.subr.bf16.mxu0 %v1248
    %3277 = vmatpush1.bf16.msra.mxu0 %v1247
    %3278 = vmatprep.subr.bf16.mxu0 %v1252
    %3279 = vmatpush1.bf16.msra.mxu0 %v1251
    %3280 = vmatprep.subr.bf16.mxu0 %v1256
    %3281 = vmatpush1.bf16.msra.mxu0 %v1255
    %3282 = vmatprep.subr.bf16.mxu0 %v1260
    %3283 = vmatpush1.bf16.msra.mxu0 %v1259
    %3284 = vmatprep.subr.bf16.mxu0 %v1264
    %3285 = vmatpush1.bf16.msra.mxu0 %v1263
    %3286 = vmatprep.mubr.bf16.mxu0 %v2928
    %3287 = vmatmul.mubr.bf16.gmra.mrb[0].mxu0 %v3035
    %v3288 = vpop.f32.mrb[0].mxu0
    %v3289 = vadd.f32 %v994, %v3288
    %v3290 = vpop.f32.mrb[0].mxu0
    %v3291 = vadd.f32 %v998, %v3290
    %v3292 = vpop.f32.mrb[0].mxu0
    %v3293 = vpop.f32.mrb[0].mxu0
    %3294 = vdwg.mxu0
    %3295 = vmatprep.subr.bf16.mxu0 %v1206
    %3296 = vmatpush1.bf16.msra.mxu0 %v1205
    %3297 = vmatprep.subr.bf16.mxu0 %v1210
    %3298 = vmatpush1.bf16.msra.mxu0 %v1209
    %3299 = vmatprep.subr.bf16.mxu0 %v1214
    %3300 = vmatpush1.bf16.msra.mxu0 %v1213
    %3301 = vmatprep.subr.bf16.mxu0 %v1218
    %3302 = vmatpush1.bf16.msra.mxu0 %v1217
    %3303 = vmatprep.subr.bf16.mxu0 %v1222
    %3304 = vmatpush1.bf16.msra.mxu0 %v1221
    %3305 = vmatprep.subr.bf16.mxu0 %v1226
    %3306 = vmatpush1.bf16.msra.mxu0 %v1225
    %3307 = vmatprep.subr.bf16.mxu0 %v1230
    %3308 = vmatpush1.bf16.msra.mxu0 %v1229
    %3309 = vmatprep.subr.bf16.mxu0 %v1234
    %3310 = vmatpush1.bf16.msra.mxu0 %v1233
    %3311 = vmatprep.subr.bf16.mxu0 %v1238
    %3312 = vmatpush1.bf16.msra.mxu0 %v1237
    %3313 = vmatprep.subr.bf16.mxu0 %v1242
    %3314 = vmatpush1.bf16.msra.mxu0 %v1241
    %3315 = vmatprep.subr.bf16.mxu0 %v1246
    %3316 = vmatpush1.bf16.msra.mxu0 %v1245
    %3317 = vmatprep.subr.bf16.mxu0 %v1250
    %3318 = vmatpush1.bf16.msra.mxu0 %v1249
    %3319 = vmatprep.subr.bf16.mxu0 %v1254
    %3320 = vmatpush1.bf16.msra.mxu0 %v1253
    %3321 = vmatprep.subr.bf16.mxu0 %v1258
    %3322 = vmatpush1.bf16.msra.mxu0 %v1257
    %3323 = vmatprep.subr.bf16.mxu0 %v1262
    %3324 = vmatpush1.bf16.msra.mxu0 %v1261
    %3325 = vmatprep.subr.bf16.mxu0 %v1266
    %3326 = vmatpush1.bf16.msra.mxu0 %v1265
    %3327 = vmatprep.mubr.bf16.mxu0 %v2928
    %3328 = vmatmul.mubr.bf16.gmra.mrb[0].mxu0 %v3035
    %v3329 = vpop.f32.mrb[0].mxu0
    %v3330 = vadd.f32 %v1002, %v3329
    %v3331 = vpop.f32.mrb[0].mxu0
    %v3332 = vadd.f32 %v1006, %v3331
    %v3333 = vpop.f32.mrb[0].mxu0
    %v3334 = vpop.f32.mrb[0].mxu0
    %3335 = vdwg.mxu0
    %v3336 = vxor.u32 %v3289, 2147483648
    %v3337 = vmul.f32 %v3336, 1.442695
    %v3338 = vpow.pop %v3337
    %v3339 = vadd.f32 %v3338, 1.0
    %v3340 = vrcp.pop %v3339
    %v3341 = vmul.f32 1.0, %v3340
    %v3342 = vxor.u32 %v3291, 2147483648
    %v3343 = vmul.f32 %v3342, 1.442695
    %v3344 = vpow.pop %v3343
    %v3345 = vadd.f32 %v3344, 1.0
    %v3346 = vrcp.pop %v3345
    %v3347 = vmul.f32 1.0, %v3346
    %v3348 = vtanh.pop %v3330
    %v3349 = vxor.u32 %v3332, 2147483648
    %v3350 = vmul.f32 %v3349, 1.442695
    %v3351 = vpow.pop %v3350
    %v3352 = vadd.f32 %v3351, 1.0
    %v3353 = vrcp.pop %v3352
    %v3354 = vmul.f32 1.0, %v3353
    %v3355 = vmul.f32 %v3347, %v3032
    %v3356 = vmul.f32 %v3341, %v3348
    %v3357 = vadd.f32 %v3355, %v3356
    %v3358 = vtanh.pop %v3357
    %v3359 = vmul.f32 %v3354, %v3358
    %v3360 = vpack.c.bf16 %v3359, %v3359
    %v3361 = vpack.c.bf16 %v3142, %v3142
    %3362 = vmatprep.subr.bf16.mxu0 %v1935
    %3363 = vmatpush1.bf16.msra.mxu0 %v1934
    %3364 = vmatprep.subr.bf16.mxu0 %v1939
    %3365 = vmatpush1.bf16.msra.mxu0 %v1938
    %3366 = vmatprep.subr.bf16.mxu0 %v1943
    %3367 = vmatpush1.bf16.msra.mxu0 %v1942
    %3368 = vmatprep.subr.bf16.mxu0 %v1947
    %3369 = vmatpush1.bf16.msra.mxu0 %v1946
    %3370 = vmatprep.subr.bf16.mxu0 %v1951
    %3371 = vmatpush1.bf16.msra.mxu0 %v1950
    %3372 = vmatprep.subr.bf16.mxu0 %v1955
    %3373 = vmatpush1.bf16.msra.mxu0 %v1954
    %3374 = vmatprep.subr.bf16.mxu0 %v1959
    %3375 = vmatpush1.bf16.msra.mxu0 %v1958
    %3376 = vmatprep.subr.bf16.mxu0 %v1963
    %3377 = vmatpush1.bf16.msra.mxu0 %v1962
    %3378 = vmatprep.subr.bf16.mxu0 %v1967
    %3379 = vmatpush1.bf16.msra.mxu0 %v1966
    %3380 = vmatprep.subr.bf16.mxu0 %v1971
    %3381 = vmatpush1.bf16.msra.mxu0 %v1970
    %3382 = vmatprep.subr.bf16.mxu0 %v1975
    %3383 = vmatpush1.bf16.msra.mxu0 %v1974
    %3384 = vmatprep.subr.bf16.mxu0 %v1979
    %3385 = vmatpush1.bf16.msra.mxu0 %v1978
    %3386 = vmatprep.subr.bf16.mxu0 %v1983
    %3387 = vmatpush1.bf16.msra.mxu0 %v1982
    %3388 = vmatprep.subr.bf16.mxu0 %v1987
    %3389 = vmatpush1.bf16.msra.mxu0 %v1986
    %3390 = vmatprep.subr.bf16.mxu0 %v1991
    %3391 = vmatpush1.bf16.msra.mxu0 %v1990
    %3392 = vmatprep.subr.bf16.mxu0 %v1995
    %3393 = vmatpush1.bf16.msra.mxu0 %v1994
    %3394 = vmatprep.mubr.bf16.mxu0 %v3035
    %3395 = vmatmul.mubr.bf16.gmra.mrb[0].mxu0 %v3361
    %v3396 = vpop.f32.mrb[0].mxu0
    %v3397 = vadd.f32 %v1725, %v3396
    %v3398 = vpop.f32.mrb[0].mxu0
    %v3399 = vadd.f32 %v1729, %v3398
    %v3400 = vpop.f32.mrb[0].mxu0
    %v3401 = vpop.f32.mrb[0].mxu0
    %3402 = vdwg.mxu0
    %3403 = vmatprep.subr.bf16.mxu0 %v1937
    %3404 = vmatpush1.bf16.msra.mxu0 %v1936
    %3405 = vmatprep.subr.bf16.mxu0 %v1941
    %3406 = vmatpush1.bf16.msra.mxu0 %v1940
    %3407 = vmatprep.subr.bf16.mxu0 %v1945
    %3408 = vmatpush1.bf16.msra.mxu0 %v1944
    %3409 = vmatprep.subr.bf16.mxu0 %v1949
    %3410 = vmatpush1.bf16.msra.mxu0 %v1948
    %3411 = vmatprep.subr.bf16.mxu0 %v1953
    %3412 = vmatpush1.bf16.msra.mxu0 %v1952
    %3413 = vmatprep.subr.bf16.mxu0 %v1957
    %3414 = vmatpush1.bf16.msra.mxu0 %v1956
    %3415 = vmatprep.subr.bf16.mxu0 %v1961
    %3416 = vmatpush1.bf16.msra.mxu0 %v1960
    %3417 = vmatprep.subr.bf16.mxu0 %v1965
    %3418 = vmatpush1.bf16.msra.mxu0 %v1964
    %3419 = vmatprep.subr.bf16.mxu0 %v1969
    %3420 = vmatpush1.bf16.msra.mxu0 %v1968
    %3421 = vmatprep.subr.bf16.mxu0 %v1973
    %3422 = vmatpush1.bf16.msra.mxu0 %v1972
    %3423 = vmatprep.subr.bf16.mxu0 %v1977
    %3424 = vmatpush1.bf16.msra.mxu0 %v1976
    %3425 = vmatprep.subr.bf16.mxu0 %v1981
    %3426 = vmatpush1.bf16.msra.mxu0 %v1980
    %3427 = vmatprep.subr.bf16.mxu0 %v1985
    %3428 = vmatpush1.bf16.msra.mxu0 %v1984
    %3429 = vmatprep.subr.bf16.mxu0 %v1989
    %3430 = vmatpush1.bf16.msra.mxu0 %v1988
    %3431 = vmatprep.subr.bf16.mxu0 %v1993
    %3432 = vmatpush1.bf16.msra.mxu0 %v1992
    %3433 = vmatprep.subr.bf16.mxu0 %v1997
    %3434 = vmatpush1.bf16.msra.mxu0 %v1996
    %3435 = vmatprep.mubr.bf16.mxu0 %v3035
    %3436 = vmatmul.mubr.bf16.gmra.mrb[0].mxu0 %v3361
    %v3437 = vpop.f32.mrb[0].mxu0
    %v3438 = vadd.f32 %v1733, %v3437
    %v3439 = vpop.f32.mrb[0].mxu0
    %v3440 = vadd.f32 %v1737, %v3439
    %v3441 = vpop.f32.mrb[0].mxu0
    %v3442 = vpop.f32.mrb[0].mxu0
    %3443 = vdwg.mxu0
    %v3444 = vxor.u32 %v3397, 2147483648
    %v3445 = vmul.f32 %v3444, 1.442695
    %v3446 = vpow.pop %v3445
    %v3447 = vadd.f32 %v3446, 1.0
    %v3448 = vrcp.pop %v3447
    %v3449 = vmul.f32 1.0, %v3448
    %v3450 = vxor.u32 %v3399, 2147483648
    %v3451 = vmul.f32 %v3450, 1.442695
    %v3452 = vpow.pop %v3451
    %v3453 = vadd.f32 %v3452, 1.0
    %v3454 = vrcp.pop %v3453
    %v3455 = vmul.f32 1.0, %v3454
    %v3456 = vtanh.pop %v3438
    %v3457 = vxor.u32 %v3440, 2147483648
    %v3458 = vmul.f32 %v3457, 1.442695
    %v3459 = vpow.pop %v3458
    %v3460 = vadd.f32 %v3459, 1.0
    %v3461 = vrcp.pop %v3460
    %v3462 = vmul.f32 1.0, %v3461
    %v3463 = vmul.f32 %v3455, %v3140
    %v3464 = vmul.f32 %v3449, %v3456
    %v3465 = vadd.f32 %v3463, %v3464
    %v3466 = vtanh.pop %v3465
    %v3467 = vmul.f32 %v3462, %v3466
    %3468 = vmatprep.subr.bf16.mxu0 %v640
    %3469 = vmatpush1.bf16.msra.mxu0 %v639
    %3470 = vmatprep.subr.bf16.mxu0 %v644
    %3471 = vmatpush1.bf16.msra.mxu0 %v643
    %3472 = vmatprep.subr.bf16.mxu0 %v648
    %3473 = vmatpush1.bf16.msra.mxu0 %v647
    %3474 = vmatprep.subr.bf16.mxu0 %v652
    %3475 = vmatpush1.bf16.msra.mxu0 %v651
    %3476 = vmatprep.subr.bf16.mxu0 %v656
    %3477 = vmatpush1.bf16.msra.mxu0 %v655
    %3478 = vmatprep.subr.bf16.mxu0 %v660
    %3479 = vmatpush1.bf16.msra.mxu0 %v659
    %3480 = vmatprep.subr.bf16.mxu0 %v664
    %3481 = vmatpush1.bf16.msra.mxu0 %v663
    %3482 = vmatprep.subr.bf16.mxu0 %v668
    %3483 = vmatpush1.bf16.msra.mxu0 %v667
    %3484 = vmatprep.subr.bf16.mxu0 0
    %3485 = vmatpush1.bf16.msra.mxu0 0
    %3486 = vmatprep.subr.bf16.mxu0 0
    %3487 = vmatpush1.bf16.msra.mxu0 0
    %3488 = vmatprep.subr.bf16.mxu0 0
    %3489 = vmatpush1.bf16.msra.mxu0 0
    %3490 = vmatprep.subr.bf16.mxu0 0
    %3491 = vmatpush1.bf16.msra.mxu0 0
    %3492 = vmatprep.subr.bf16.mxu0 0
    %3493 = vmatpush1.bf16.msra.mxu0 0
    %3494 = vmatprep.subr.bf16.mxu0 0
    %3495 = vmatpush1.bf16.msra.mxu0 0
    %3496 = vmatprep.subr.bf16.mxu0 0
    %3497 = vmatpush1.bf16.msra.mxu0 0
    %3498 = vmatprep.subr.bf16.mxu0 0
    %3499 = vmatpush1.bf16.msra.mxu0 0
    %3500 = vmatprep.mubr.bf16.mxu0 0
    %3501 = vmatmul.mubr.bf16.gmra.mrb[0].mxu0 %v3253
    %v3502 = vpop.f32.mrb[0].mxu0
    %v3503 = vadd.f32 0.0, %v3502
    %v3504 = vpop.f32.mrb[0].mxu0
    %v3505 = vadd.f32 0.0, %v3504
    %v3506 = vpop.f32.mrb[0].mxu0
    %v3507 = vpop.f32.mrb[0].mxu0
    %3508 = vdwg.mxu0
    %3509 = vmatprep.subr.bf16.mxu0 %v642
    %3510 = vmatpush1.bf16.msra.mxu0 %v641
    %3511 = vmatprep.subr.bf16.mxu0 %v646
    %3512 = vmatpush1.bf16.msra.mxu0 %v645
    %3513 = vmatprep.subr.bf16.mxu0 %v650
    %3514 = vmatpush1.bf16.msra.mxu0 %v649
    %3515 = vmatprep.subr.bf16.mxu0 %v654
    %3516 = vmatpush1.bf16.msra.mxu0 %v653
    %3517 = vmatprep.subr.bf16.mxu0 %v658
    %3518 = vmatpush1.bf16.msra.mxu0 %v657
    %3519 = vmatprep.subr.bf16.mxu0 %v662
    %3520 = vmatpush1.bf16.msra.mxu0 %v661
    %3521 = vmatprep.subr.bf16.mxu0 %v666
    %3522 = vmatpush1.bf16.msra.mxu0 %v665
    %3523 = vmatprep.subr.bf16.mxu0 %v670
    %3524 = vmatpush1.bf16.msra.mxu0 %v669
    %3525 = vmatprep.subr.bf16.mxu0 0
    %3526 = vmatpush1.bf16.msra.mxu0 0
    %3527 = vmatprep.subr.bf16.mxu0 0
    %3528 = vmatpush1.bf16.msra.mxu0 0
    %3529 = vmatprep.subr.bf16.mxu0 0
    %3530 = vmatpush1.bf16.msra.mxu0 0
    %3531 = vmatprep.subr.bf16.mxu0 0
    %3532 = vmatpush1.bf16.msra.mxu0 0
    %3533 = vmatprep.subr.bf16.mxu0 0
    %3534 = vmatpush1.bf16.msra.mxu0 0
    %3535 = vmatprep.subr.bf16.mxu0 0
    %3536 = vmatpush1.bf16.msra.mxu0 0
    %3537 = vmatprep.subr.bf16.mxu0 0
    %3538 = vmatpush1.bf16.msra.mxu0 0
    %3539 = vmatprep.subr.bf16.mxu0 0
    %3540 = vmatpush1.bf16.msra.mxu0 0
    %3541 = vmatprep.mubr.bf16.mxu0 0
    %3542 = vmatmul.mubr.bf16.gmra.mrb[0].mxu0 %v3253
    %v3543 = vpop.f32.mrb[0].mxu0
    %v3544 = vadd.f32 0.0, %v3543
    %v3545 = vpop.f32.mrb[0].mxu0
    %v3546 = vadd.f32 0.0, %v3545
    %v3547 = vpop.f32.mrb[0].mxu0
    %v3548 = vpop.f32.mrb[0].mxu0
    %3549 = vdwg.mxu0
    %v3550 = vadd.f32 %v434, %v3503
    %v3551 = vadd.f32 %v436, %v3505
    %v3552 = vadd.f32 %v507, %v3544
    %v3553 = vadd.f32 %v509, %v3546
    %v3554 = vxor.u32 %v3550, 2147483648
    %v3555 = vmul.f32 %v3554, 1.442695
    %v3556 = vpow.pop %v3555
    %v3557 = vadd.f32 %v3556, 1.0
    %v3558 = vrcp.pop %v3557
    %v3559 = vmul.f32 1.0, %v3558
    %v3560 = vxor.u32 %v3551, 2147483648
    %v3561 = vmul.f32 %v3560, 1.442695
    %v3562 = vpow.pop %v3561
    %v3563 = vadd.f32 %v3562, 1.0
    %v3564 = vrcp.pop %v3563
    %v3565 = vmul.f32 1.0, %v3564
    %v3566 = vtanh.pop %v3552
    %v3567 = vxor.u32 %v3553, 2147483648
    %v3568 = vmul.f32 %v3567, 1.442695
    %v3569 = vpow.pop %v3568
    %v3570 = vadd.f32 %v3569, 1.0
    %v3571 = vrcp.pop %v3570
    %v3572 = vmul.f32 1.0, %v3571
    %v3573 = vmul.f32 %v3565, %v3250
    %v3574 = vmul.f32 %v3559, %v3566
    %v3575 = vadd.f32 %v3573, %v3574
    %v3576 = vtanh.pop %v3575
    %v3577 = vmul.f32 %v3572, %v3576
    %v3578 = vpack.c.bf16 %v3577, %v3577
    %3579 = vmatprep.subr.bf16.mxu0 %v1204
    %3580 = vmatpush1.bf16.msra.mxu0 %v1203
    %3581 = vmatprep.subr.bf16.mxu0 %v1208
    %3582 = vmatpush1.bf16.msra.mxu0 %v1207
    %3583 = vmatprep.subr.bf16.mxu0 %v1212
    %3584 = vmatpush1.bf16.msra.mxu0 %v1211
    %3585 = vmatprep.subr.bf16.mxu0 %v1216
    %3586 = vmatpush1.bf16.msra.mxu0 %v1215
    %3587 = vmatprep.subr.bf16.mxu0 %v1220
    %3588 = vmatpush1.bf16.msra.mxu0 %v1219
    %3589 = vmatprep.subr.bf16.mxu0 %v1224
    %3590 = vmatpush1.bf16.msra.mxu0 %v1223
    %3591 = vmatprep.subr.bf16.mxu0 %v1228
    %3592 = vmatpush1.bf16.msra.mxu0 %v1227
    %3593 = vmatprep.subr.bf16.mxu0 %v1232
    %3594 = vmatpush1.bf16.msra.mxu0 %v1231
    %3595 = vmatprep.subr.bf16.mxu0 %v1236
    %3596 = vmatpush1.bf16.msra.mxu0 %v1235
    %3597 = vmatprep.subr.bf16.mxu0 %v1240
    %3598 = vmatpush1.bf16.msra.mxu0 %v1239
    %3599 = vmatprep.subr.bf16.mxu0 %v1244
    %3600 = vmatpush1.bf16.msra.mxu0 %v1243
    %3601 = vmatprep.subr.bf16.mxu0 %v1248
    %3602 = vmatpush1.bf16.msra.mxu0 %v1247
    %3603 = vmatprep.subr.bf16.mxu0 %v1252
    %3604 = vmatpush1.bf16.msra.mxu0 %v1251
    %3605 = vmatprep.subr.bf16.mxu0 %v1256
    %3606 = vmatpush1.bf16.msra.mxu0 %v1255
    %3607 = vmatprep.subr.bf16.mxu0 %v1260
    %3608 = vmatpush1.bf16.msra.mxu0 %v1259
    %3609 = vmatprep.subr.bf16.mxu0 %v1264
    %3610 = vmatpush1.bf16.msra.mxu0 %v1263
    %3611 = vmatprep.mubr.bf16.mxu0 %v3253
    %3612 = vmatmul.mubr.bf16.gmra.mrb[0].mxu0 %v3360
    %v3613 = vpop.f32.mrb[0].mxu0
    %v3614 = vadd.f32 %v994, %v3613
    %v3615 = vpop.f32.mrb[0].mxu0
    %v3616 = vadd.f32 %v998, %v3615
    %v3617 = vpop.f32.mrb[0].mxu0
    %v3618 = vpop.f32.mrb[0].mxu0
    %3619 = vdwg.mxu0
    %3620 = vmatprep.subr.bf16.mxu0 %v1206
    %3621 = vmatpush1.bf16.msra.mxu0 %v1205
    %3622 = vmatprep.subr.bf16.mxu0 %v1210
    %3623 = vmatpush1.bf16.msra.mxu0 %v1209
    %3624 = vmatprep.subr.bf16.mxu0 %v1214
    %3625 = vmatpush1.bf16.msra.mxu0 %v1213
    %3626 = vmatprep.subr.bf16.mxu0 %v1218
    %3627 = vmatpush1.bf16.msra.mxu0 %v1217
    %3628 = vmatprep.subr.bf16.mxu0 %v1222
    %3629 = vmatpush1.bf16.msra.mxu0 %v1221
    %3630 = vmatprep.subr.bf16.mxu0 %v1226
    %3631 = vmatpush1.bf16.msra.mxu0 %v1225
    %3632 = vmatprep.subr.bf16.mxu0 %v1230
    %3633 = vmatpush1.bf16.msra.mxu0 %v1229
    %3634 = vmatprep.subr.bf16.mxu0 %v1234
    %3635 = vmatpush1.bf16.msra.mxu0 %v1233
    %3636 = vmatprep.subr.bf16.mxu0 %v1238
    %3637 = vmatpush1.bf16.msra.mxu0 %v1237
    %3638 = vmatprep.subr.bf16.mxu0 %v1242
    %3639 = vmatpush1.bf16.msra.mxu0 %v1241
    %3640 = vmatprep.subr.bf16.mxu0 %v1246
    %3641 = vmatpush1.bf16.msra.mxu0 %v1245
    %3642 = vmatprep.subr.bf16.mxu0 %v1250
    %3643 = vmatpush1.bf16.msra.mxu0 %v1249
    %3644 = vmatprep.subr.bf16.mxu0 %v1254
    %3645 = vmatpush1.bf16.msra.mxu0 %v1253
    %3646 = vmatprep.subr.bf16.mxu0 %v1258
    %3647 = vmatpush1.bf16.msra.mxu0 %v1257
    %3648 = vmatprep.subr.bf16.mxu0 %v1262
    %3649 = vmatpush1.bf16.msra.mxu0 %v1261
    %3650 = vmatprep.subr.bf16.mxu0 %v1266
    %3651 = vmatpush1.bf16.msra.mxu0 %v1265
    %3652 = vmatprep.mubr.bf16.mxu0 %v3253
    %3653 = vmatmul.mubr.bf16.gmra.mrb[0].mxu0 %v3360
    %v3654 = vpop.f32.mrb[0].mxu0
    %v3655 = vadd.f32 %v1002, %v3654
    %v3656 = vpop.f32.mrb[0].mxu0
    %v3657 = vadd.f32 %v1006, %v3656
    %v3658 = vpop.f32.mrb[0].mxu0
    %v3659 = vpop.f32.mrb[0].mxu0
    %3660 = vdwg.mxu0
    %v3661 = vxor.u32 %v3614, 2147483648
    %v3662 = vmul.f32 %v3661, 1.442695
    %v3663 = vpow.pop %v3662
    %v3664 = vadd.f32 %v3663, 1.0
    %v3665 = vrcp.pop %v3664
    %v3666 = vmul.f32 1.0, %v3665
    %v3667 = vxor.u32 %v3616, 2147483648
    %v3668 = vmul.f32 %v3667, 1.442695
    %v3669 = vpow.pop %v3668
    %v3670 = vadd.f32 %v3669, 1.0
    %v3671 = vrcp.pop %v3670
    %v3672 = vmul.f32 1.0, %v3671
    %v3673 = vtanh.pop %v3655
    %v3674 = vxor.u32 %v3657, 2147483648
    %v3675 = vmul.f32 %v3674, 1.442695
    %v3676 = vpow.pop %v3675
    %v3677 = vadd.f32 %v3676, 1.0
    %v3678 = vrcp.pop %v3677
    %v3679 = vmul.f32 1.0, %v3678
    %v3680 = vmul.f32 %v3672, %v3357
    %v3681 = vmul.f32 %v3666, %v3673
    %v3682 = vadd.f32 %v3680, %v3681
    %v3683 = vtanh.pop %v3682
    %v3684 = vmul.f32 %v3679, %v3683
    %v3685 = vpack.c.bf16 %v3684, %v3684
    %v3686 = vpack.c.bf16 %v3467, %v3467
    %3687 = vmatprep.subr.bf16.mxu0 %v1935
    %3688 = vmatpush1.bf16.msra.mxu0 %v1934
    %3689 = vmatprep.subr.bf16.mxu0 %v1939
    %3690 = vmatpush1.bf16.msra.mxu0 %v1938
    %3691 = vmatprep.subr.bf16.mxu0 %v1943
    %3692 = vmatpush1.bf16.msra.mxu0 %v1942
    %3693 = vmatprep.subr.bf16.mxu0 %v1947
    %3694 = vmatpush1.bf16.msra.mxu0 %v1946
    %3695 = vmatprep.subr.bf16.mxu0 %v1951
    %3696 = vmatpush1.bf16.msra.mxu0 %v1950
    %3697 = vmatprep.subr.bf16.mxu0 %v1955
    %3698 = vmatpush1.bf16.msra.mxu0 %v1954
    %3699 = vmatprep.subr.bf16.mxu0 %v1959
    %3700 = vmatpush1.bf16.msra.mxu0 %v1958
    %3701 = vmatprep.subr.bf16.mxu0 %v1963
    %3702 = vmatpush1.bf16.msra.mxu0 %v1962
    %3703 = vmatprep.subr.bf16.mxu0 %v1967
    %3704 = vmatpush1.bf16.msra.mxu0 %v1966
    %3705 = vmatprep.subr.bf16.mxu0 %v1971
    %3706 = vmatpush1.bf16.msra.mxu0 %v1970
    %3707 = vmatprep.subr.bf16.mxu0 %v1975
    %3708 = vmatpush1.bf16.msra.mxu0 %v1974
    %3709 = vmatprep.subr.bf16.mxu0 %v1979
    %3710 = vmatpush1.bf16.msra.mxu0 %v1978
    %3711 = vmatprep.subr.bf16.mxu0 %v1983
    %3712 = vmatpush1.bf16.msra.mxu0 %v1982
    %3713 = vmatprep.subr.bf16.mxu0 %v1987
    %3714 = vmatpush1.bf16.msra.mxu0 %v1986
    %3715 = vmatprep.subr.bf16.mxu0 %v1991
    %3716 = vmatpush1.bf16.msra.mxu0 %v1990
    %3717 = vmatprep.subr.bf16.mxu0 %v1995
    %3718 = vmatpush1.bf16.msra.mxu0 %v1994
    %3719 = vmatprep.mubr.bf16.mxu0 %v3360
    %3720 = vmatmul.mubr.bf16.gmra.mrb[0].mxu0 %v3686
    %v3721 = vpop.f32.mrb[0].mxu0
    %v3722 = vadd.f32 %v1725, %v3721
    %v3723 = vpop.f32.mrb[0].mxu0
    %v3724 = vadd.f32 %v1729, %v3723
    %v3725 = vpop.f32.mrb[0].mxu0
    %v3726 = vpop.f32.mrb[0].mxu0
    %3727 = vdwg.mxu0
    %3728 = vmatprep.subr.bf16.mxu0 %v1937
    %3729 = vmatpush1.bf16.msra.mxu0 %v1936
    %3730 = vmatprep.subr.bf16.mxu0 %v1941
    %3731 = vmatpush1.bf16.msra.mxu0 %v1940
    %3732 = vmatprep.subr.bf16.mxu0 %v1945
    %3733 = vmatpush1.bf16.msra.mxu0 %v1944
    %3734 = vmatprep.subr.bf16.mxu0 %v1949
    %3735 = vmatpush1.bf16.msra.mxu0 %v1948
    %3736 = vmatprep.subr.bf16.mxu0 %v1953
    %3737 = vmatpush1.bf16.msra.mxu0 %v1952
    %3738 = vmatprep.subr.bf16.mxu0 %v1957
    %3739 = vmatpush1.bf16.msra.mxu0 %v1956
    %3740 = vmatprep.subr.bf16.mxu0 %v1961
    %3741 = vmatpush1.bf16.msra.mxu0 %v1960
    %3742 = vmatprep.subr.bf16.mxu0 %v1965
    %3743 = vmatpush1.bf16.msra.mxu0 %v1964
    %3744 = vmatprep.subr.bf16.mxu0 %v1969
    %3745 = vmatpush1.bf16.msra.mxu0 %v1968
    %3746 = vmatprep.subr.bf16.mxu0 %v1973
    %3747 = vmatpush1.bf16.msra.mxu0 %v1972
    %3748 = vmatprep.subr.bf16.mxu0 %v1977
    %3749 = vmatpush1.bf16.msra.mxu0 %v1976
    %3750 = vmatprep.subr.bf16.mxu0 %v1981
    %3751 = vmatpush1.bf16.msra.mxu0 %v1980
    %3752 = vmatprep.subr.bf16.mxu0 %v1985
    %3753 = vmatpush1.bf16.msra.mxu0 %v1984
    %3754 = vmatprep.subr.bf16.mxu0 %v1989
    %3755 = vmatpush1.bf16.msra.mxu0 %v1988
    %3756 = vmatprep.subr.bf16.mxu0 %v1993
    %3757 = vmatpush1.bf16.msra.mxu0 %v1992
    %3758 = vmatprep.subr.bf16.mxu0 %v1997
    %3759 = vmatpush1.bf16.msra.mxu0 %v1996
    %3760 = vmatprep.mubr.bf16.mxu0 %v3360
    %3761 = vmatmul.mubr.bf16.gmra.mrb[0].mxu0 %v3686
    %v3762 = vpop.f32.mrb[0].mxu0
    %v3763 = vadd.f32 %v1733, %v3762
    %v3764 = vpop.f32.mrb[0].mxu0
    %v3765 = vadd.f32 %v1737, %v3764
    %v3766 = vpop.f32.mrb[0].mxu0
    %v3767 = vpop.f32.mrb[0].mxu0
    %3768 = vdwg.mxu0
    %v3769 = vxor.u32 %v3722, 2147483648
    %v3770 = vmul.f32 %v3769, 1.442695
    %v3771 = vpow.pop %v3770
    %v3772 = vadd.f32 %v3771, 1.0
    %v3773 = vrcp.pop %v3772
    %v3774 = vmul.f32 1.0, %v3773
    %v3775 = vxor.u32 %v3724, 2147483648
    %v3776 = vmul.f32 %v3775, 1.442695
    %v3777 = vpow.pop %v3776
    %v3778 = vadd.f32 %v3777, 1.0
    %v3779 = vrcp.pop %v3778
    %v3780 = vmul.f32 1.0, %v3779
    %v3781 = vtanh.pop %v3763
    %v3782 = vxor.u32 %v3765, 2147483648
    %v3783 = vmul.f32 %v3782, 1.442695
    %v3784 = vpow.pop %v3783
    %v3785 = vadd.f32 %v3784, 1.0
    %v3786 = vrcp.pop %v3785
    %v3787 = vmul.f32 1.0, %v3786
    %v3788 = vmul.f32 %v3780, %v3465
    %v3789 = vmul.f32 %v3774, %v3781
    %v3790 = vadd.f32 %v3788, %v3789
    %v3791 = vtanh.pop %v3790
    %v3792 = vmul.f32 %v3787, %v3791
    %3793 = vmatprep.subr.bf16.mxu0 %v1204
    %3794 = vmatpush1.bf16.msra.mxu0 %v1203
    %3795 = vmatprep.subr.bf16.mxu0 %v1208
    %3796 = vmatpush1.bf16.msra.mxu0 %v1207
    %3797 = vmatprep.subr.bf16.mxu0 %v1212
    %3798 = vmatpush1.bf16.msra.mxu0 %v1211
    %3799 = vmatprep.subr.bf16.mxu0 %v1216
    %3800 = vmatpush1.bf16.msra.mxu0 %v1215
    %3801 = vmatprep.subr.bf16.mxu0 %v1220
    %3802 = vmatpush1.bf16.msra.mxu0 %v1219
    %3803 = vmatprep.subr.bf16.mxu0 %v1224
    %3804 = vmatpush1.bf16.msra.mxu0 %v1223
    %3805 = vmatprep.subr.bf16.mxu0 %v1228
    %3806 = vmatpush1.bf16.msra.mxu0 %v1227
    %3807 = vmatprep.subr.bf16.mxu0 %v1232
    %3808 = vmatpush1.bf16.msra.mxu0 %v1231
    %3809 = vmatprep.subr.bf16.mxu0 %v1236
    %3810 = vmatpush1.bf16.msra.mxu0 %v1235
    %3811 = vmatprep.subr.bf16.mxu0 %v1240
    %3812 = vmatpush1.bf16.msra.mxu0 %v1239
    %3813 = vmatprep.subr.bf16.mxu0 %v1244
    %3814 = vmatpush1.bf16.msra.mxu0 %v1243
    %3815 = vmatprep.subr.bf16.mxu0 %v1248
    %3816 = vmatpush1.bf16.msra.mxu0 %v1247
    %3817 = vmatprep.subr.bf16.mxu0 %v1252
    %3818 = vmatpush1.bf16.msra.mxu0 %v1251
    %3819 = vmatprep.subr.bf16.mxu0 %v1256
    %3820 = vmatpush1.bf16.msra.mxu0 %v1255
    %3821 = vmatprep.subr.bf16.mxu0 %v1260
    %3822 = vmatpush1.bf16.msra.mxu0 %v1259
    %3823 = vmatprep.subr.bf16.mxu0 %v1264
    %3824 = vmatpush1.bf16.msra.mxu0 %v1263
    %3825 = vmatprep.mubr.bf16.mxu0 %v3578
    %3826 = vmatmul.mubr.bf16.gmra.mrb[0].mxu0 %v3685
    %v3827 = vpop.f32.mrb[0].mxu0
    %v3828 = vadd.f32 %v994, %v3827
    %v3829 = vpop.f32.mrb[0].mxu0
    %v3830 = vadd.f32 %v998, %v3829
    %v3831 = vpop.f32.mrb[0].mxu0
    %v3832 = vpop.f32.mrb[0].mxu0
    %3833 = vdwg.mxu0
    %3834 = vmatprep.subr.bf16.mxu0 %v1206
    %3835 = vmatpush1.bf16.msra.mxu0 %v1205
    %3836 = vmatprep.subr.bf16.mxu0 %v1210
    %3837 = vmatpush1.bf16.msra.mxu0 %v1209
    %3838 = vmatprep.subr.bf16.mxu0 %v1214
    %3839 = vmatpush1.bf16.msra.mxu0 %v1213
    %3840 = vmatprep.subr.bf16.mxu0 %v1218
    %3841 = vmatpush1.bf16.msra.mxu0 %v1217
    %3842 = vmatprep.subr.bf16.mxu0 %v1222
    %3843 = vmatpush1.bf16.msra.mxu0 %v1221
    %3844 = vmatprep.subr.bf16.mxu0 %v1226
    %3845 = vmatpush1.bf16.msra.mxu0 %v1225
    %3846 = vmatprep.subr.bf16.mxu0 %v1230
    %3847 = vmatpush1.bf16.msra.mxu0 %v1229
    %3848 = vmatprep.subr.bf16.mxu0 %v1234
    %3849 = vmatpush1.bf16.msra.mxu0 %v1233
    %3850 = vmatprep.subr.bf16.mxu0 %v1238
    %3851 = vmatpush1.bf16.msra.mxu0 %v1237
    %3852 = vmatprep.subr.bf16.mxu0 %v1242
    %3853 = vmatpush1.bf16.msra.mxu0 %v1241
    %3854 = vmatprep.subr.bf16.mxu0 %v1246
    %3855 = vmatpush1.bf16.msra.mxu0 %v1245
    %3856 = vmatprep.subr.bf16.mxu0 %v1250
    %3857 = vmatpush1.bf16.msra.mxu0 %v1249
    %3858 = vmatprep.subr.bf16.mxu0 %v1254
    %3859 = vmatpush1.bf16.msra.mxu0 %v1253
    %3860 = vmatprep.subr.bf16.mxu0 %v1258
    %3861 = vmatpush1.bf16.msra.mxu0 %v1257
    %3862 = vmatprep.subr.bf16.mxu0 %v1262
    %3863 = vmatpush1.bf16.msra.mxu0 %v1261
    %3864 = vmatprep.subr.bf16.mxu0 %v1266
    %3865 = vmatpush1.bf16.msra.mxu0 %v1265
    %3866 = vmatprep.mubr.bf16.mxu0 %v3578
    %3867 = vmatmul.mubr.bf16.gmra.mrb[0].mxu0 %v3685
    %v3868 = vpop.f32.mrb[0].mxu0
    %v3869 = vadd.f32 %v1002, %v3868
    %v3870 = vpop.f32.mrb[0].mxu0
    %v3871 = vadd.f32 %v1006, %v3870
    %v3872 = vpop.f32.mrb[0].mxu0
    %v3873 = vpop.f32.mrb[0].mxu0
    %3874 = vdwg.mxu0
    %v3875 = vxor.u32 %v3828, 2147483648
    %v3876 = vmul.f32 %v3875, 1.442695
    %v3877 = vpow.pop %v3876
    %v3878 = vadd.f32 %v3877, 1.0
    %v3879 = vrcp.pop %v3878
    %v3880 = vmul.f32 1.0, %v3879
    %v3881 = vxor.u32 %v3830, 2147483648
    %v3882 = vmul.f32 %v3881, 1.442695
    %v3883 = vpow.pop %v3882
    %v3884 = vadd.f32 %v3883, 1.0
    %v3885 = vrcp.pop %v3884
    %v3886 = vmul.f32 1.0, %v3885
    %v3887 = vtanh.pop %v3869
    %v3888 = vxor.u32 %v3871, 2147483648
    %v3889 = vmul.f32 %v3888, 1.442695
    %v3890 = vpow.pop %v3889
    %v3891 = vadd.f32 %v3890, 1.0
    %v3892 = vrcp.pop %v3891
    %v3893 = vmul.f32 1.0, %v3892
    %v3894 = vmul.f32 %v3886, %v3682
    %v3895 = vmul.f32 %v3880, %v3887
    %v3896 = vadd.f32 %v3894, %v3895
    %v3897 = vtanh.pop %v3896
    %v3898 = vmul.f32 %v3893, %v3897
    %v3899 = vpack.c.bf16 %v3898, %v3898
    %v3900 = vpack.c.bf16 %v3792, %v3792
    %3901 = vmatprep.subr.bf16.mxu0 %v1935
    %3902 = vmatpush1.bf16.msra.mxu0 %v1934
    %3903 = vmatprep.subr.bf16.mxu0 %v1939
    %3904 = vmatpush1.bf16.msra.mxu0 %v1938
    %3905 = vmatprep.subr.bf16.mxu0 %v1943
    %3906 = vmatpush1.bf16.msra.mxu0 %v1942
    %3907 = vmatprep.subr.bf16.mxu0 %v1947
    %3908 = vmatpush1.bf16.msra.mxu0 %v1946
    %3909 = vmatprep.subr.bf16.mxu0 %v1951
    %3910 = vmatpush1.bf16.msra.mxu0 %v1950
    %3911 = vmatprep.subr.bf16.mxu0 %v1955
    %3912 = vmatpush1.bf16.msra.mxu0 %v1954
    %3913 = vmatprep.subr.bf16.mxu0 %v1959
    %3914 = vmatpush1.bf16.msra.mxu0 %v1958
    %3915 = vmatprep.subr.bf16.mxu0 %v1963
    %3916 = vmatpush1.bf16.msra.mxu0 %v1962
    %3917 = vmatprep.subr.bf16.mxu0 %v1967
    %3918 = vmatpush1.bf16.msra.mxu0 %v1966
    %3919 = vmatprep.subr.bf16.mxu0 %v1971
    %3920 = vmatpush1.bf16.msra.mxu0 %v1970
    %3921 = vmatprep.subr.bf16.mxu0 %v1975
    %3922 = vmatpush1.bf16.msra.mxu0 %v1974
    %3923 = vmatprep.subr.bf16.mxu0 %v1979
    %3924 = vmatpush1.bf16.msra.mxu0 %v1978
    %3925 = vmatprep.subr.bf16.mxu0 %v1983
    %3926 = vmatpush1.bf16.msra.mxu0 %v1982
    %3927 = vmatprep.subr.bf16.mxu0 %v1987
    %3928 = vmatpush1.bf16.msra.mxu0 %v1986
    %3929 = vmatprep.subr.bf16.mxu0 %v1991
    %3930 = vmatpush1.bf16.msra.mxu0 %v1990
    %3931 = vmatprep.subr.bf16.mxu0 %v1995
    %3932 = vmatpush1.bf16.msra.mxu0 %v1994
    %3933 = vmatprep.mubr.bf16.mxu0 %v3685
    %3934 = vmatmul.mubr.bf16.gmra.mrb[0].mxu0 %v3900
    %v3935 = vpop.f32.mrb[0].mxu0
    %v3936 = vadd.f32 %v1725, %v3935
    %v3937 = vpop.f32.mrb[0].mxu0
    %v3938 = vadd.f32 %v1729, %v3937
    %v3939 = vpop.f32.mrb[0].mxu0
    %v3940 = vpop.f32.mrb[0].mxu0
    %3941 = vdwg.mxu0
    %3942 = vmatprep.subr.bf16.mxu0 %v1937
    %3943 = vmatpush1.bf16.msra.mxu0 %v1936
    %3944 = vmatprep.subr.bf16.mxu0 %v1941
    %3945 = vmatpush1.bf16.msra.mxu0 %v1940
    %3946 = vmatprep.subr.bf16.mxu0 %v1945
    %3947 = vmatpush1.bf16.msra.mxu0 %v1944
    %3948 = vmatprep.subr.bf16.mxu0 %v1949
    %3949 = vmatpush1.bf16.msra.mxu0 %v1948
    %3950 = vmatprep.subr.bf16.mxu0 %v1953
    %3951 = vmatpush1.bf16.msra.mxu0 %v1952
    %3952 = vmatprep.subr.bf16.mxu0 %v1957
    %3953 = vmatpush1.bf16.msra.mxu0 %v1956
    %3954 = vmatprep.subr.bf16.mxu0 %v1961
    %3955 = vmatpush1.bf16.msra.mxu0 %v1960
    %3956 = vmatprep.subr.bf16.mxu0 %v1965
    %3957 = vmatpush1.bf16.msra.mxu0 %v1964
    %3958 = vmatprep.subr.bf16.mxu0 %v1969
    %3959 = vmatpush1.bf16.msra.mxu0 %v1968
    %3960 = vmatprep.subr.bf16.mxu0 %v1973
    %3961 = vmatpush1.bf16.msra.mxu0 %v1972
    %3962 = vmatprep.subr.bf16.mxu0 %v1977
    %3963 = vmatpush1.bf16.msra.mxu0 %v1976
    %3964 = vmatprep.subr.bf16.mxu0 %v1981
    %3965 = vmatpush1.bf16.msra.mxu0 %v1980
    %3966 = vmatprep.subr.bf16.mxu0 %v1985
    %3967 = vmatpush1.bf16.msra.mxu0 %v1984
    %3968 = vmatprep.subr.bf16.mxu0 %v1989
    %3969 = vmatpush1.bf16.msra.mxu0 %v1988
    %3970 = vmatprep.subr.bf16.mxu0 %v1993
    %3971 = vmatpush1.bf16.msra.mxu0 %v1992
    %3972 = vmatprep.subr.bf16.mxu0 %v1997
    %3973 = vmatpush1.bf16.msra.mxu0 %v1996
    %3974 = vmatprep.mubr.bf16.mxu0 %v3685
    %3975 = vmatmul.mubr.bf16.gmra.mrb[0].mxu0 %v3900
    %v3976 = vpop.f32.mrb[0].mxu0
    %v3977 = vadd.f32 %v1733, %v3976
    %v3978 = vpop.f32.mrb[0].mxu0
    %v3979 = vadd.f32 %v1737, %v3978
    %v3980 = vpop.f32.mrb[0].mxu0
    %v3981 = vpop.f32.mrb[0].mxu0
    %3982 = vdwg.mxu0
    %v3983 = vxor.u32 %v3936, 2147483648
    %v3984 = vmul.f32 %v3983, 1.442695
    %v3985 = vpow.pop %v3984
    %v3986 = vadd.f32 %v3985, 1.0
    %v3987 = vrcp.pop %v3986
    %v3988 = vmul.f32 1.0, %v3987
    %v3989 = vxor.u32 %v3938, 2147483648
    %v3990 = vmul.f32 %v3989, 1.442695
    %v3991 = vpow.pop %v3990
    %v3992 = vadd.f32 %v3991, 1.0
    %v3993 = vrcp.pop %v3992
    %v3994 = vmul.f32 1.0, %v3993
    %v3995 = vtanh.pop %v3977
    %v3996 = vxor.u32 %v3979, 2147483648
    %v3997 = vmul.f32 %v3996, 1.442695
    %v3998 = vpow.pop %v3997
    %v3999 = vadd.f32 %v3998, 1.0
    %v4000 = vrcp.pop %v3999
    %v4001 = vmul.f32 1.0, %v4000
    %v4002 = vmul.f32 %v3994, %v3790
    %v4003 = vmul.f32 %v3988, %v3995
    %v4004 = vadd.f32 %v4002, %v4003
    %v4005 = vtanh.pop %v4004
    %v4006 = vmul.f32 %v4001, %v4005
    %v4007 = vpack.c.bf16 %v4006, %v4006
    %4008 = vmatprep.subr.bf16.mxu0 %v1935
    %4009 = vmatpush1.bf16.msra.mxu0 %v1934
    %4010 = vmatprep.subr.bf16.mxu0 %v1939
    %4011 = vmatpush1.bf16.msra.mxu0 %v1938
    %4012 = vmatprep.subr.bf16.mxu0 %v1943
    %4013 = vmatpush1.bf16.msra.mxu0 %v1942
    %4014 = vmatprep.subr.bf16.mxu0 %v1947
    %4015 = vmatpush1.bf16.msra.mxu0 %v1946
    %4016 = vmatprep.subr.bf16.mxu0 %v1951
    %4017 = vmatpush1.bf16.msra.mxu0 %v1950
    %4018 = vmatprep.subr.bf16.mxu0 %v1955
    %4019 = vmatpush1.bf16.msra.mxu0 %v1954
    %4020 = vmatprep.subr.bf16.mxu0 %v1959
    %4021 = vmatpush1.bf16.msra.mxu0 %v1958
    %4022 = vmatprep.subr.bf16.mxu0 %v1963
    %4023 = vmatpush1.bf16.msra.mxu0 %v1962
    %4024 = vmatprep.subr.bf16.mxu0 %v1967
    %4025 = vmatpush1.bf16.msra.mxu0 %v1966
    %4026 = vmatprep.subr.bf16.mxu0 %v1971
    %4027 = vmatpush1.bf16.msra.mxu0 %v1970
    %4028 = vmatprep.subr.bf16.mxu0 %v1975
    %4029 = vmatpush1.bf16.msra.mxu0 %v1974
    %4030 = vmatprep.subr.bf16.mxu0 %v1979
    %4031 = vmatpush1.bf16.msra.mxu0 %v1978
    %4032 = vmatprep.subr.bf16.mxu0 %v1983
    %4033 = vmatpush1.bf16.msra.mxu0 %v1982
    %4034 = vmatprep.subr.bf16.mxu0 %v1987
    %4035 = vmatpush1.bf16.msra.mxu0 %v1986
    %4036 = vmatprep.subr.bf16.mxu0 %v1991
    %4037 = vmatpush1.bf16.msra.mxu0 %v1990
    %4038 = vmatprep.subr.bf16.mxu0 %v1995
    %4039 = vmatpush1.bf16.msra.mxu0 %v1994
    %4040 = vmatprep.mubr.bf16.mxu0 %v3899
    %4041 = vmatmul.mubr.bf16.gmra.mrb[0].mxu0 %v4007
    %v4042 = vpop.f32.mrb[0].mxu0
    %v4043 = vadd.f32 %v1725, %v4042
    %v4044 = vpop.f32.mrb[0].mxu0
    %v4045 = vadd.f32 %v1729, %v4044
    %v4046 = vpop.f32.mrb[0].mxu0
    %v4047 = vpop.f32.mrb[0].mxu0
    %4048 = vdwg.mxu0
    %4049 = vmatprep.subr.bf16.mxu0 %v1937
    %4050 = vmatpush1.bf16.msra.mxu0 %v1936
    %4051 = vmatprep.subr.bf16.mxu0 %v1941
    %4052 = vmatpush1.bf16.msra.mxu0 %v1940
    %4053 = vmatprep.subr.bf16.mxu0 %v1945
    %4054 = vmatpush1.bf16.msra.mxu0 %v1944
    %4055 = vmatprep.subr.bf16.mxu0 %v1949
    %4056 = vmatpush1.bf16.msra.mxu0 %v1948
    %4057 = vmatprep.subr.bf16.mxu0 %v1953
    %4058 = vmatpush1.bf16.msra.mxu0 %v1952
    %4059 = vmatprep.subr.bf16.mxu0 %v1957
    %4060 = vmatpush1.bf16.msra.mxu0 %v1956
    %4061 = vmatprep.subr.bf16.mxu0 %v1961
    %4062 = vmatpush1.bf16.msra.mxu0 %v1960
    %4063 = vmatprep.subr.bf16.mxu0 %v1965
    %4064 = vmatpush1.bf16.msra.mxu0 %v1964
    %4065 = vmatprep.subr.bf16.mxu0 %v1969
    %4066 = vmatpush1.bf16.msra.mxu0 %v1968
    %4067 = vmatprep.subr.bf16.mxu0 %v1973
    %4068 = vmatpush1.bf16.msra.mxu0 %v1972
    %4069 = vmatprep.subr.bf16.mxu0 %v1977
    %4070 = vmatpush1.bf16.msra.mxu0 %v1976
    %4071 = vmatprep.subr.bf16.mxu0 %v1981
    %4072 = vmatpush1.bf16.msra.mxu0 %v1980
    %4073 = vmatprep.subr.bf16.mxu0 %v1985
    %4074 = vmatpush1.bf16.msra.mxu0 %v1984
    %4075 = vmatprep.subr.bf16.mxu0 %v1989
    %4076 = vmatpush1.bf16.msra.mxu0 %v1988
    %4077 = vmatprep.subr.bf16.mxu0 %v1993
    %4078 = vmatpush1.bf16.msra.mxu0 %v1992
    %4079 = vmatprep.subr.bf16.mxu0 %v1997
    %4080 = vmatpush1.bf16.msra.mxu0 %v1996
    %4081 = vmatprep.mubr.bf16.mxu0 %v3899
    %4082 = vmatmul.mubr.bf16.gmra.mrb[0].mxu0 %v4007
    %v4083 = vpop.f32.mrb[0].mxu0
    %v4084 = vadd.f32 %v1733, %v4083
    %v4085 = vpop.f32.mrb[0].mxu0
    %v4086 = vadd.f32 %v1737, %v4085
    %v4087 = vpop.f32.mrb[0].mxu0
    %v4088 = vpop.f32.mrb[0].mxu0
    %4089 = vdwg.mxu0
    %v4090 = vxor.u32 %v4043, 2147483648
    %v4091 = vmul.f32 %v4090, 1.442695
    %v4092 = vpow.pop %v4091
    %v4093 = vadd.f32 %v4092, 1.0
    %v4094 = vrcp.pop %v4093
    %v4095 = vmul.f32 1.0, %v4094
    %v4096 = vxor.u32 %v4045, 2147483648
    %v4097 = vmul.f32 %v4096, 1.442695
    %v4098 = vpow.pop %v4097
    %v4099 = vadd.f32 %v4098, 1.0
    %v4100 = vrcp.pop %v4099
    %v4101 = vmul.f32 1.0, %v4100
    %v4102 = vtanh.pop %v4084
    %v4103 = vxor.u32 %v4086, 2147483648
    %v4104 = vmul.f32 %v4103, 1.442695
    %v4105 = vpow.pop %v4104
    %v4106 = vadd.f32 %v4105, 1.0
    %v4107 = vrcp.pop %v4106
    %v4108 = vmul.f32 1.0, %v4107
    %v4109 = vmul.f32 %v4101, %v4004
    %v4110 = vmul.f32 %v4095, %v4102
    %v4111 = vadd.f32 %v4109, %v4110
    %v4112 = vtanh.pop %v4111
    %v4113 = vmul.f32 %v4108, %v4112
    %v4114 = vpack.c.bf16 %v4113, %v4113
    %v4115 = vld [vmem:[#allocation11] sm:$0xff]
    %v4116 = vld [vmem:[#allocation11 + $0x8] sm:$0xff]
    %v4117 = vld [vmem:[#allocation11 + $0x10] sm:$0xff]
    %v4118 = vld [vmem:[#allocation11 + $0x18] sm:$0xff]
    %v4119 = vld [vmem:[#allocation11 + $0x20] sm:$0xff]
    %v4120 = vld [vmem:[#allocation11 + $0x28] sm:$0xff]
    %v4121 = vld [vmem:[#allocation11 + $0x30] sm:$0xff]
    %v4122 = vld [vmem:[#allocation11 + $0x38] sm:$0xff]
    %v4123 = vld [vmem:[#allocation11 + $0x40] sm:$0xff]
    %v4124 = vld [vmem:[#allocation11 + $0x48] sm:$0xff]
    %v4125 = vld [vmem:[#allocation11 + $0x50] sm:$0xff]
    %v4126 = vld [vmem:[#allocation11 + $0x58] sm:$0xff]
    %v4127 = vld [vmem:[#allocation11 + $0x60] sm:$0xff]
    %v4128 = vld [vmem:[#allocation11 + $0x68] sm:$0xff]
    %v4129 = vld [vmem:[#allocation11 + $0x70] sm:$0xff]
    %v4130 = vld [vmem:[#allocation11 + $0x78] sm:$0xff]
    %v4131 = vld [vmem:[%s9] sm:$0x3]
    %v4133 = vlaneseq
    %v4134 = vshrl.u32 %v4133, 7
    %v4135 = vsub.s32 0, %v4134
    %v4136 = vrot.slane %v4131, %v4135
    %v4137 = vlaneseq
    %v4138 = vshrl.u32 %v4137, 7
    %v4139 = vsub.s32 1, %v4138
    %v4140 = vrot.slane %v4131, %v4139
    %v4159 = vunpack.c.l.b16 %v4115
    %v4160 = vunpack.c.h.b16 %v4115
    %v4161 = vunpack.c.l.b16 %v4116
    %v4162 = vunpack.c.h.b16 %v4116
    %v4163 = vunpack.c.l.b16 %v4117
    %v4164 = vunpack.c.h.b16 %v4117
    %v4165 = vunpack.c.l.b16 %v4118
    %v4166 = vunpack.c.h.b16 %v4118
    %v4167 = vunpack.c.l.b16 %v4119
    %v4168 = vunpack.c.h.b16 %v4119
    %v4169 = vunpack.c.l.b16 %v4120
    %v4170 = vunpack.c.h.b16 %v4120
    %v4171 = vunpack.c.l.b16 %v4121
    %v4172 = vunpack.c.h.b16 %v4121
    %v4173 = vunpack.c.l.b16 %v4122
    %v4174 = vunpack.c.h.b16 %v4122
    %v4175 = vunpack.c.l.b16 %v4123
    %v4176 = vunpack.c.h.b16 %v4123
    %v4177 = vunpack.c.l.b16 %v4124
    %v4178 = vunpack.c.h.b16 %v4124
    %v4179 = vunpack.c.l.b16 %v4125
    %v4180 = vunpack.c.h.b16 %v4125
    %v4181 = vunpack.c.l.b16 %v4126
    %v4182 = vunpack.c.h.b16 %v4126
    %v4183 = vunpack.c.l.b16 %v4127
    %v4184 = vunpack.c.h.b16 %v4127
    %v4185 = vunpack.c.l.b16 %v4128
    %v4186 = vunpack.c.h.b16 %v4128
    %v4187 = vunpack.c.l.b16 %v4129
    %v4188 = vunpack.c.h.b16 %v4129
    %v4189 = vunpack.c.l.b16 %v4130
    %v4190 = vunpack.c.h.b16 %v4130
    %v4191 = vpack.c.b16 %v4161, %v4159
    %v4192 = vpack.c.b16 %v4162, %v4160
    %v4193 = vpack.c.b16 %v4165, %v4163
    %v4194 = vpack.c.b16 %v4166, %v4164
    %v4195 = vpack.c.b16 %v4169, %v4167
    %v4196 = vpack.c.b16 %v4170, %v4168
    %v4197 = vpack.c.b16 %v4173, %v4171
    %v4198 = vpack.c.b16 %v4174, %v4172
    %v4199 = vpack.c.b16 %v4177, %v4175
    %v4200 = vpack.c.b16 %v4178, %v4176
    %v4201 = vpack.c.b16 %v4181, %v4179
    %v4202 = vpack.c.b16 %v4182, %v4180
    %v4203 = vpack.c.b16 %v4185, %v4183
    %v4204 = vpack.c.b16 %v4186, %v4184
    %v4205 = vpack.c.b16 %v4189, %v4187
    %v4206 = vpack.c.b16 %v4190, %v4188
    %4223 = vmatprep.subr.bf16.mxu0 %v4192
    %4224 = vmatpush1.bf16.msra.mxu0 %v4191
    %4225 = vmatprep.subr.bf16.mxu0 %v4194
    %4226 = vmatpush1.bf16.msra.mxu0 %v4193
    %4227 = vmatprep.subr.bf16.mxu0 %v4196
    %4228 = vmatpush1.bf16.msra.mxu0 %v4195
    %4229 = vmatprep.subr.bf16.mxu0 %v4198
    %4230 = vmatpush1.bf16.msra.mxu0 %v4197
    %4231 = vmatprep.subr.bf16.mxu0 %v4200
    %4232 = vmatpush1.bf16.msra.mxu0 %v4199
    %4233 = vmatprep.subr.bf16.mxu0 %v4202
    %4234 = vmatpush1.bf16.msra.mxu0 %v4201
    %4235 = vmatprep.subr.bf16.mxu0 %v4204
    %4236 = vmatpush1.bf16.msra.mxu0 %v4203
    %4237 = vmatprep.subr.bf16.mxu0 %v4206
    %4238 = vmatpush1.bf16.msra.mxu0 %v4205
    %4239 = vmatprep.subr.bf16.mxu0 0
    %4240 = vmatpush1.bf16.msra.mxu0 0
    %4241 = vmatprep.subr.bf16.mxu0 0
    %4242 = vmatpush1.bf16.msra.mxu0 0
    %4243 = vmatprep.subr.bf16.mxu0 0
    %4244 = vmatpush1.bf16.msra.mxu0 0
    %4245 = vmatprep.subr.bf16.mxu0 0
    %4246 = vmatpush1.bf16.msra.mxu0 0
    %4247 = vmatprep.subr.bf16.mxu0 0
    %4248 = vmatpush1.bf16.msra.mxu0 0
    %4249 = vmatprep.subr.bf16.mxu0 0
    %4250 = vmatpush1.bf16.msra.mxu0 0
    %4251 = vmatprep.subr.bf16.mxu0 0
    %4252 = vmatpush1.bf16.msra.mxu0 0
    %4253 = vmatprep.subr.bf16.mxu0 0
    %4254 = vmatpush1.bf16.msra.mxu0 0
    %4255 = vmatprep.mubr.bf16.mxu0 0
    %4256 = vmatmul.mubr.bf16.gmra.mrb[0].mxu0 %v4114
    %v4257 = vpop.f32.mrb[0].mxu0
    %v4258 = vadd.f32 %v4136, %v4257
    %v4259 = vpop.f32.mrb[0].mxu0
    %v4260 = vadd.f32 %v4140, %v4259
    %v4261 = vpop.f32.mrb[0].mxu0
    %v4262 = vpop.f32.mrb[0].mxu0
    %4263 = vdwg.mxu0
    %4264 = vst [vmem:[#allocation13] sm:$0xff] %v4258
    %4265 = vst [vmem:[#allocation13 + $0x8] sm:$0xff] %v4260
    // Predicated region
    $region66: #{tpu_custom_call.1} parent=1 // pred_check
      _
    $region67: #{tpu_custom_call.1} parent=1 // pred_check_branch
      %4267 = sbr.rel (0) target = $region69
    $region68: #{tpu_custom_call.1} parent=1 // pred_region
      %s4269 = ssub.s32 256, 256
      %4270 = vsyncadd [#allocation4], %s4269
      %s4272 = sshll.u32 [#allocation13], 4
      %s4273 = int_to_ptr.vmem [resolvable:$true] %s4272
      %4275 = dma.vmem_to_hbm [thread:$0]  %s4273, 256, %s10, [#allocation4]
    $region69: #{tpu_custom_call.1} parent=1 // pred_fallthru
      _
    // Predicated region
    $region70: #{tpu_custom_call.1} parent=1 // pred_check
      _
    $region71: #{tpu_custom_call.1} parent=1 // pred_check_branch
      %4277 = sbr.rel (0) target = $region73
    $region72: #{tpu_custom_call.1} parent=1 // pred_region
      %4278 = dma.done [#allocation4], 256
    $region73: #{tpu_custom_call.1} parent=1 // pred_fallthru
      _
    %4279 = vsyncpa [#allocation3], 1
    %4280 = vsyncpa [#allocation6], 1
    %4281 = vsyncpa [#allocation9], 1
    %4282 = vsyncpa [#allocation12], 1
    %4283 = vsyncpa [#allocation4], 1

</llo_original>
